<compile_context>
chip_gen: v6e
topology: v6e:2x2x1
jax: 0.10.0
libtpu: 0.0.40
codegen_flags: <defaults>
</compile_context>

<pallas_src>
import jax
import jax.numpy as jnp
from jax import lax
from jax.experimental import pallas as pl
from jax.experimental.pallas import tpu as pltpu


# ----------------------------------------------------------------------------- #
# Kernel: one (Bblk, Nblk) tile per grid step; grid = (B/Bblk, N/Nblk).
# Input is the post-conv1 activation (lane-dense, 64 features).
# ----------------------------------------------------------------------------- #
def stn3d_kernel(
    h1_ref,                     # (Bblk, Nblk, 64) conv1+bn1+relu activation (bf16/f32)
    w2_ref, b2_ref,             # conv2: (64, 128)   matmul dtype, (1, 128) f32 [BN folded]
    w3_ref, b3_ref,             # conv3: (128, 1024) matmul dtype, (1, 1024) f32 [BN folded]
    fw1_ref, fb1_ref,           # fc1:   (1024, 512),(1, 512)  f32 bias [BN folded]
    fw2_ref, fb2_ref,           # fc2:   (512, 256), (1, 256)  f32 bias [BN folded]
    fw3_ref, fb3_ref,           # fc3:   (256, 128) padded, (1, 128)  [identity folded]
    o_ref,                      # (Bblk, 128) f32 (lane-dense; cols 9..127 are junk)
    acc_ref,                    # scratch (Bblk, 1024) f32 running RAW conv3 max
):
    k = pl.program_id(1)

    @pl.when(k == 0)
    def _init():
        # Raw (pre-bias, pre-ReLU) max accumulation -> must start at -inf.
        acc_ref[...] = jnp.full_like(acc_ref, -jnp.inf)

    bblk, nblk, f1 = h1_ref.shape
    rows = bblk * nblk
    h1 = h1_ref[...].reshape(rows, f1)                            # (rows, 64)

    # conv2 + bn2 + relu (folded): MXU matmul with f32 accumulation, f32 VPU
    # epilogue (portable to v5e which has no bf16 VPU path).
    h2 = jnp.dot(h1, w2_ref[...], preferred_element_type=jnp.float32)
    h2 = jnp.maximum(h2 + b2_ref[...], 0.0)                       # (rows, 128)
    h2 = h2.astype(w3_ref.dtype)

    # conv3: raw matmul tiled over output columns; per-chunk point-max fused
    # straight into the accumulator.  bias + ReLU are hoisted to finalize
    # (they commute with the max), which removes the two large per-step VPU
    # passes over the (rows, 1024) activation and caps the live intermediate
    # at (rows, 256) f32.
    ncols = acc_ref.shape[-1]                                     # 1024
    col_tile = min(256, ncols)
    for c0 in range(0, ncols, col_tile):
        h3c = jnp.dot(h2, w3_ref[:, c0:c0 + col_tile],
                      preferred_element_type=jnp.float32)         # (rows, 256)
        cm = jnp.max(h3c.reshape(bblk, nblk, col_tile), axis=1)   # (Bblk, 256)
        acc_ref[:, c0:c0 + col_tile] = jnp.maximum(
            acc_ref[:, c0:c0 + col_tile], cm)

    # FC head + lane-dense output store once per batch block.
    @pl.when(k == pl.num_programs(1) - 1)
    def _finalize():
        g = jnp.maximum(acc_ref[...] + b3_ref[...], 0.0)          # bn3 + relu on pooled max
        f = jnp.dot(g.astype(fw1_ref.dtype), fw1_ref[...],
                    preferred_element_type=jnp.float32)
        f = jnp.maximum(f + fb1_ref[...], 0.0)                    # (Bblk, 512)
        f = jnp.dot(f.astype(fw2_ref.dtype), fw2_ref[...],
                    preferred_element_type=jnp.float32)
        f = jnp.maximum(f + fb2_ref[...], 0.0)                    # (Bblk, 256)
        out = jnp.dot(f.astype(fw3_ref.dtype), fw3_ref[...],
                      preferred_element_type=jnp.float32)
        o_ref[...] = out + fb3_ref[...]                           # (Bblk, 128)


# ----------------------------------------------------------------------------- #
# Parameter folding: inference BN into weights/bias, identity into fc3 bias,
# fc3 padded to a lane-dense 128-wide output.
# ----------------------------------------------------------------------------- #
_PARAM_ORDER = ("w2", "b2", "w3", "b3",
                "fw1", "fb1", "fw2", "fb2", "fw3", "fb3")


def fold_params(raw, *, matmul_dtype=jnp.bfloat16):
    def fold(w, b, s, t):
        return w * s, b * s + t

    p = {}
    p["w1"], p["b1"] = fold(raw["w1"], raw["b1"], raw["s1"], raw["t1"])   # used by wrapper
    p["w2"], p["b2"] = fold(raw["w2"], raw["b2"], raw["s2"], raw["t2"])
    p["w3"], p["b3"] = fold(raw["w3"], raw["b3"], raw["s3"], raw["t3"])
    p["fw1"], p["fb1"] = fold(raw["fw1"], raw["fb1"], raw["s4"], raw["t4"])
    p["fw2"], p["fb2"] = fold(raw["fw2"], raw["fb2"], raw["s5"], raw["t5"])

    # fc3: fold flattened 3x3 identity into the bias; pad to 128 output lanes
    # for an unmasked, lane-dense store (extra columns sliced off in wrapper).
    iden = jnp.array([1, 0, 0, 0, 1, 0, 0, 0, 1], jnp.float32)[None, :]
    fb3 = raw["fb3"] + iden
    pad = 128 - fb3.shape[-1]
    p["fw3"] = jnp.pad(raw["fw3"], ((0, 0), (0, pad)))
    p["fb3"] = jnp.pad(fb3, ((0, 0), (0, pad)))

    # Only MXU-fed weights go to the matmul dtype (bf16 by default).  conv1
    # weight stays f32 (consumed by the wrapper einsum) and all biases stay
    # f32 (elementwise math is f32 everywhere — v5e has no bf16 VPU).
    for name in ("w2", "w3", "fw1", "fw2", "fw3"):
        p[name] = p[name].astype(matmul_dtype)
    return p


# ----------------------------------------------------------------------------- #
# Generation-aware VMEM limit: min(48 MiB, physical / 2)  (=> 32 MiB on v7x).
# ----------------------------------------------------------------------------- #
def _default_vmem_limit_bytes():
    try:
        cap = pltpu.get_tpu_info().vmem_capacity_bytes
    except Exception:          # info query unavailable -> conservative default
        cap = 128 * 1024 * 1024
    return min(48 * 1024 * 1024, cap // 2)


# ----------------------------------------------------------------------------- #
# Wrapper: conv1 prep (layout fix), tiling, padding, BlockSpecs, pallas_call.
# ----------------------------------------------------------------------------- #
def stn3d_forward(x_ncl, folded, *, bblk_max=8, nblk_max=512, vmem_limit_bytes=None):
    """x_ncl: (B, C, N) float32 (PyTorch NCL layout). Returns (B, 3, 3) f32."""
    B, C, N = x_ncl.shape
    if vmem_limit_bytes is None:
        vmem_limit_bytes = _default_vmem_limit_bytes()

    # Batch block: bblk_max=8 keeps the output block sublane-aligned whenever
    # Bblk < B and gives >=2 parallel grid blocks (megacore) as soon as B > 8.
    bblk = B if B <= bblk_max else bblk_max
    b_pad = -(-B // bblk) * bblk

    # Point chunk: full N for small clouds, otherwise a multiple-of-8 chunk.
    if N <= nblk_max:
        nblk = n_pad = N
    else:
        nblk = nblk_max
        n_pad = -(-N // nblk) * nblk

    x = x_ncl.astype(jnp.float32)
    if b_pad != B or n_pad != N:
        # Edge-pad only the tiny raw (B, C, N) input: replicated points leave
        # the max-pool unchanged; replicated batch rows are sliced off below.
        x = jnp.pad(x, ((0, b_pad - B), (0, 0), (0, n_pad - N)), mode="edge")

    # conv1 + bn1 + relu: C=3 is hopelessly lane-sparse on the MXU/VPU, so run
    # it as one fused XLA pass over the (tiny) raw input and hand the kernel a
    # lane-dense (B, N, 64) activation in the matmul dtype.
    act_dtype = folded["w2"].dtype
    h1 = jnp.einsum("bcn,cf->bnf", x, folded["w1"],
                    precision=lax.Precision.HIGHEST) + folded["b1"]
    h1 = jnp.maximum(h1, 0.0).astype(act_dtype)                   # (b_pad, n_pad, 64)

    plist = [folded[name] for name in _PARAM_ORDER]
    grid = (b_pad // bblk, n_pad // nblk)
    f1 = h1.shape[-1]                                             # 64
    f3 = folded["w3"].shape[-1]                                   # 1024
    out_w = folded["fw3"].shape[-1]                               # 128 (padded)

    in_specs = [pl.BlockSpec((bblk, nblk, f1), lambda b, k: (b, k, 0))]
    # Parameters: constant block index (all 2-D), resident across the grid.
    in_specs += [pl.BlockSpec(a.shape, lambda b, k: (0, 0)) for a in plist]
    out_spec = pl.BlockSpec((bblk, out_w), lambda b, k: (b, 0))

    out = pl.pallas_call(
        stn3d_kernel,
        out_shape=jax.ShapeDtypeStruct((b_pad, out_w), jnp.float32),
        grid=grid,
        in_specs=in_specs,
        out_specs=out_spec,
        scratch_shapes=[pltpu.VMEM((bblk, f3), jnp.float32)],
        compiler_params=pltpu.CompilerParams(
            dimension_semantics=("parallel", "arbitrary"),
            vmem_limit_bytes=vmem_limit_bytes,
        ),
    )(h1, *plist)

    return out[:B, :9].reshape(B, 3, 3)


# ----------------------------------------------------------------------------- #
# Deterministic synthetic parameters (no checkpoint).
# ----------------------------------------------------------------------------- #
def make_params(key, channel):
    dims = dict(c1=(channel, 64), c2=(64, 128), c3=(128, 1024),
                f1=(1024, 512), f2=(512, 256), f3=(256, 9))
    keys = jax.random.split(key, 64)
    ki = iter(range(64))
    eps = 1e-5

    def lin(fan_in, fan_out):
        w = jax.random.normal(keys[next(ki)], (fan_in, fan_out), jnp.float32)
        w = w / jnp.sqrt(jnp.float32(fan_in))
        b = 0.05 * jax.random.normal(keys[next(ki)], (1, fan_out), jnp.float32)
        return w, b

    def bn(nfeat):
        gamma = 1.0 + 0.1 * jax.random.normal(keys[next(ki)], (1, nfeat), jnp.float32)
        beta = 0.1 * jax.random.normal(keys[next(ki)], (1, nfeat), jnp.float32)
        mean = 0.1 * jax.random.normal(keys[next(ki)], (1, nfeat), jnp.float32)
        var = 1.0 + 0.2 * jnp.abs(jax.random.normal(keys[next(ki)], (1, nfeat), jnp.float32))
        scale = gamma / jnp.sqrt(var + eps)     # inference-mode BN, folded
        shift = beta - mean * scale
        return scale, shift

    p = {}
    p["w1"], p["b1"] = lin(*dims["c1"]); p["s1"], p["t1"] = bn(64)
    p["w2"], p["b2"] = lin(*dims["c2"]); p["s2"], p["t2"] = bn(128)
    p["w3"], p["b3"] = lin(*dims["c3"]); p["s3"], p["t3"] = bn(1024)
    p["fw1"], p["fb1"] = lin(*dims["f1"]); p["s4"], p["t4"] = bn(512)
    p["fw2"], p["fb2"] = lin(*dims["f2"]); p["s5"], p["t5"] = bn(256)
    p["fw3"], p["fb3"] = lin(*dims["f3"])
    return p


# ----------------------------------------------------------------------------- #
# Pure-JAX reference of the PyTorch module (exact f32 math via HIGHEST precision).
# ----------------------------------------------------------------------------- #
def stn3d_reference(x_ncl, p):
    hi = lax.Precision.HIGHEST
    xt = jnp.transpose(x_ncl, (0, 2, 1))                          # (B, N, C)
    h = jnp.einsum("bnc,cf->bnf", xt, p["w1"], precision=hi) + p["b1"]
    h = jnp.maximum(h * p["s1"] + p["t1"], 0.0)
    h = jnp.einsum("bnc,cf->bnf", h, p["w2"], precision=hi) + p["b2"]
    h = jnp.maximum(h * p["s2"] + p["t2"], 0.0)
    h = jnp.einsum("bnc,cf->bnf", h, p["w3"], precision=hi) + p["b3"]
    h = jnp.maximum(h * p["s3"] + p["t3"], 0.0)
    g = jnp.max(h, axis=1)                                        # (B, 1024)
    f = jnp.dot(g, p["fw1"], precision=hi) + p["fb1"]
    f = jnp.maximum(f * p["s4"] + p["t4"], 0.0)
    f = jnp.dot(f, p["fw2"], precision=hi) + p["fb2"]
    f = jnp.maximum(f * p["s5"] + p["t5"], 0.0)
    out = jnp.dot(f, p["fw3"], precision=hi) + p["fb3"]
    iden = jnp.array([1, 0, 0, 0, 1, 0, 0, 0, 1], jnp.float32)[None]
    return (out + iden).reshape(-1, 3, 3)


if __name__ == "__main__":
    key = jax.random.PRNGKey(0)
    k_x, k_p, k_x2 = jax.random.split(key, 3)

    # Small case: STN3d(channel=3), batch=2, 16 points.
    B, C, N = 2, 3, 16
    x = jax.random.normal(k_x, (B, C, N), jnp.float32)
    raw = make_params(k_p, C)
    ref = stn3d_reference(x, raw)

    # f32 MXU weights (accuracy reference point; portable everywhere).
    out_f32 = jax.block_until_ready(
        stn3d_forward(x, fold_params(raw, matmul_dtype=jnp.float32)))
    assert out_f32.shape == (B, 3, 3)
    assert jnp.allclose(out_f32, ref, rtol=3e-2, atol=3e-2), "f32 kernel mismatch"

    # bf16 MXU weights (default; native MXU dtype on v5e/v6e/v7x).
    folded_bf16 = fold_params(raw)
    out_bf16 = jax.block_until_ready(stn3d_forward(x, folded_bf16))
    assert out_bf16.shape == (B, 3, 3)
    assert jnp.allclose(out_bf16, ref, rtol=1.5e-1, atol=1.5e-1), "bf16 kernel mismatch"

    # Multi point-chunk + multi batch-block path (accumulator + edge padding).
    B2, N2 = 10, 640
    x2 = jax.random.normal(k_x2, (B2, C, N2), jnp.float32)
    ref2 = stn3d_reference(x2, raw)
    out2 = jax.block_until_ready(stn3d_forward(x2, folded_bf16))
    assert out2.shape == (B2, 3, 3)
    assert jnp.allclose(out2, ref2, rtol=1.5e-1, atol=1.5e-1), "multi-chunk mismatch"

    # TODO(synk): optional fp8 weight quantization for w3/fw1 on v7x (needs
    # accuracy validation against a real checkpoint) is not enabled.
    print("KERNEL_OK")
</pallas_src>

<mosaic_0001>
module attributes {stable_mosaic.version = 11 : i64} {
  func.func @stn3d_kernel(%arg0: i32, %arg1: i32, %arg2: memref<2x16x64xf32, #tpu.memory_space<vmem>>, %arg3: memref<64x128xf32, #tpu.memory_space<vmem>>, %arg4: memref<1x128xf32, #tpu.memory_space<vmem>>, %arg5: memref<128x1024xf32, #tpu.memory_space<vmem>>, %arg6: memref<1x1024xf32, #tpu.memory_space<vmem>>, %arg7: memref<1024x512xf32, #tpu.memory_space<vmem>>, %arg8: memref<1x512xf32, #tpu.memory_space<vmem>>, %arg9: memref<512x256xf32, #tpu.memory_space<vmem>>, %arg10: memref<1x256xf32, #tpu.memory_space<vmem>>, %arg11: memref<256x128xf32, #tpu.memory_space<vmem>>, %arg12: memref<1x128xf32, #tpu.memory_space<vmem>>, %arg13: memref<2x128xf32, #tpu.memory_space<vmem>>, %arg14: memref<2x1024xf32, #tpu.memory_space<vmem>>) attributes {dimension_semantics = [#tpu.dimension_semantics<parallel>, #tpu.dimension_semantics<arbitrary>], iteration_bounds = array<i64: 1, 1>, scalar_prefetch = 0 : i64, scratch_operands = 1 : i64, tpu.core_type = #tpu.core_type<tc>, window_params = [{transform_indices = @transform_0, window_bounds = array<i64: 2, 16, 64>}, {pipeline_mode = #tpu.pipeline_mode<synchronous>, transform_indices = @transform_1, window_bounds = array<i64: 64, 128>}, {pipeline_mode = #tpu.pipeline_mode<synchronous>, transform_indices = @transform_2, window_bounds = array<i64: 1, 128>}, {pipeline_mode = #tpu.pipeline_mode<synchronous>, transform_indices = @transform_3, window_bounds = array<i64: 128, 1024>}, {pipeline_mode = #tpu.pipeline_mode<synchronous>, transform_indices = @transform_4, window_bounds = array<i64: 1, 1024>}, {pipeline_mode = #tpu.pipeline_mode<synchronous>, transform_indices = @transform_5, window_bounds = array<i64: 1024, 512>}, {pipeline_mode = #tpu.pipeline_mode<synchronous>, transform_indices = @transform_6, window_bounds = array<i64: 1, 512>}, {pipeline_mode = #tpu.pipeline_mode<synchronous>, transform_indices = @transform_7, window_bounds = array<i64: 512, 256>}, {pipeline_mode = #tpu.pipeline_mode<synchronous>, transform_indices = @transform_8, window_bounds = array<i64: 1, 256>}, {pipeline_mode = #tpu.pipeline_mode<synchronous>, transform_indices = @transform_9, window_bounds = array<i64: 256, 128>}, {pipeline_mode = #tpu.pipeline_mode<synchronous>, transform_indices = @transform_10, window_bounds = array<i64: 1, 128>}, {transform_indices = @transform_11, window_bounds = array<i64: 2, 128>}]} {
    %c0_i32 = arith.constant 0 : i32
    %0 = arith.cmpi eq, %arg1, %c0_i32 : i32
    %1 = arith.extui %0 : i1 to i32
    %c0_i32_0 = arith.constant 0 : i32
    %2 = arith.cmpi ne, %1, %c0_i32_0 : i32
    scf.if %2 {
      %cst_39 = arith.constant 0xFF800000 : f32
      %43 = vector.broadcast %cst_39 : f32 to vector<2x1024xf32>
      %c0_40 = arith.constant 0 : index
      %c0_41 = arith.constant 0 : index
      %44 = vector.load %arg14[%c0_40, %c0_41] : memref<2x1024xf32, #tpu.memory_space<vmem>>, vector<2x1024xf32>
      tpu.vector_store %arg14[%c0_40, %c0_41], %43 {strides = array<i32>} : memref<2x1024xf32, #tpu.memory_space<vmem>>, vector<2x1024xf32>,
    } else {
    }
    %c0 = arith.constant 0 : index
    %c0_1 = arith.constant 0 : index
    %c0_2 = arith.constant 0 : index
    %3 = vector.load %arg2[%c0, %c0_1, %c0_2] : memref<2x16x64xf32, #tpu.memory_space<vmem>>, vector<2x16x64xf32>
    %4 = vector.shape_cast %3 : vector<2x16x64xf32> to vector<32x64xf32>
    %c0_3 = arith.constant 0 : index
    %c0_4 = arith.constant 0 : index
    %5 = vector.load %arg3[%c0_3, %c0_4] : memref<64x128xf32, #tpu.memory_space<vmem>>, vector<64x128xf32>
    %cst = arith.constant dense<0.000000e+00> : vector<32x128xf32>
    %6 = tpu.matmul %4, %5, %cst {dimension_numbers = #tpu.dot_dimension_numbers<[1], [0], [0], [1], [0, 0, 1, 1], [], []>} : vector<32x64xf32>, vector<64x128xf32>, vector<32x128xf32> -> vector<32x128xf32>
    %c0_5 = arith.constant 0 : index
    %c0_6 = arith.constant 0 : index
    %7 = vector.load %arg4[%c0_5, %c0_6] : memref<1x128xf32, #tpu.memory_space<vmem>>, vector<1x128xf32>
    %8 = vector.broadcast %7 : vector<1x128xf32> to vector<32x128xf32>
    %9 = arith.addf %6, %8 : vector<32x128xf32>
    %cst_7 = arith.constant 0.000000e+00 : f32
    %10 = vector.broadcast %cst_7 : f32 to vector<32x128xf32>
    %11 = arith.maximumf %9, %10 : vector<32x128xf32>
    %c0_8 = arith.constant 0 : index
    %c0_9 = arith.constant 0 : index
    %12 = vector.load %arg5[%c0_8, %c0_9] : memref<128x1024xf32, #tpu.memory_space<vmem>>, vector<128x256xf32>
    %cst_10 = arith.constant dense<0.000000e+00> : vector<32x256xf32>
    %13 = tpu.matmul %11, %12, %cst_10 {dimension_numbers = #tpu.dot_dimension_numbers<[1], [0], [0], [1], [0, 0, 1, 1], [], []>} : vector<32x128xf32>, vector<128x256xf32>, vector<32x256xf32> -> vector<32x256xf32>
    %14 = vector.shape_cast %13 : vector<32x256xf32> to vector<2x16x256xf32>
    %cst_11 = arith.constant dense<0xFF800000> : vector<2x256xf32>
    %15 = vector.multi_reduction <maximumf>, %14, %cst_11 [1] : vector<2x16x256xf32> to vector<2x256xf32>
    %c0_12 = arith.constant 0 : index
    %c0_13 = arith.constant 0 : index
    %16 = vector.load %arg14[%c0_12, %c0_13] : memref<2x1024xf32, #tpu.memory_space<vmem>>, vector<2x256xf32>
    %17 = arith.maximumf %16, %15 : vector<2x256xf32>
    %c0_14 = arith.constant 0 : index
    %c0_15 = arith.constant 0 : index
    %18 = vector.load %arg14[%c0_14, %c0_15] : memref<2x1024xf32, #tpu.memory_space<vmem>>, vector<2x256xf32>
    tpu.vector_store %arg14[%c0_14, %c0_15], %17 {strides = array<i32>} : memref<2x1024xf32, #tpu.memory_space<vmem>>, vector<2x256xf32>,
    %c0_16 = arith.constant 0 : index
    %c256 = arith.constant 256 : index
    %19 = vector.load %arg5[%c0_16, %c256] : memref<128x1024xf32, #tpu.memory_space<vmem>>, vector<128x256xf32>
    %cst_17 = arith.constant dense<0.000000e+00> : vector<32x256xf32>
    %20 = tpu.matmul %11, %19, %cst_17 {dimension_numbers = #tpu.dot_dimension_numbers<[1], [0], [0], [1], [0, 0, 1, 1], [], []>} : vector<32x128xf32>, vector<128x256xf32>, vector<32x256xf32> -> vector<32x256xf32>
    %21 = vector.shape_cast %20 : vector<32x256xf32> to vector<2x16x256xf32>
    %cst_18 = arith.constant dense<0xFF800000> : vector<2x256xf32>
    %22 = vector.multi_reduction <maximumf>, %21, %cst_18 [1] : vector<2x16x256xf32> to vector<2x256xf32>
    %c0_19 = arith.constant 0 : index
    %c256_20 = arith.constant 256 : index
    %23 = vector.load %arg14[%c0_19, %c256_20] : memref<2x1024xf32, #tpu.memory_space<vmem>>, vector<2x256xf32>
    %24 = arith.maximumf %23, %22 : vector<2x256xf32>
    %c0_21 = arith.constant 0 : index
    %c256_22 = arith.constant 256 : index
    %25 = vector.load %arg14[%c0_21, %c256_22] : memref<2x1024xf32, #tpu.memory_space<vmem>>, vector<2x256xf32>
    tpu.vector_store %arg14[%c0_21, %c256_22], %24 {strides = array<i32>} : memref<2x1024xf32, #tpu.memory_space<vmem>>, vector<2x256xf32>,
    %c0_23 = arith.constant 0 : index
    %c512 = arith.constant 512 : index
    %26 = vector.load %arg5[%c0_23, %c512] : memref<128x1024xf32, #tpu.memory_space<vmem>>, vector<128x256xf32>
    %cst_24 = arith.constant dense<0.000000e+00> : vector<32x256xf32>
    %27 = tpu.matmul %11, %26, %cst_24 {dimension_numbers = #tpu.dot_dimension_numbers<[1], [0], [0], [1], [0, 0, 1, 1], [], []>} : vector<32x128xf32>, vector<128x256xf32>, vector<32x256xf32> -> vector<32x256xf32>
    %28 = vector.shape_cast %27 : vector<32x256xf32> to vector<2x16x256xf32>
    %cst_25 = arith.constant dense<0xFF800000> : vector<2x256xf32>
    %29 = vector.multi_reduction <maximumf>, %28, %cst_25 [1] : vector<2x16x256xf32> to vector<2x256xf32>
    %c0_26 = arith.constant 0 : index
    %c512_27 = arith.constant 512 : index
    %30 = vector.load %arg14[%c0_26, %c512_27] : memref<2x1024xf32, #tpu.memory_space<vmem>>, vector<2x256xf32>
    %31 = arith.maximumf %30, %29 : vector<2x256xf32>
    %c0_28 = arith.constant 0 : index
    %c512_29 = arith.constant 512 : index
    %32 = vector.load %arg14[%c0_28, %c512_29] : memref<2x1024xf32, #tpu.memory_space<vmem>>, vector<2x256xf32>
    tpu.vector_store %arg14[%c0_28, %c512_29], %31 {strides = array<i32>} : memref<2x1024xf32, #tpu.memory_space<vmem>>, vector<2x256xf32>,
    %c0_30 = arith.constant 0 : index
    %c768 = arith.constant 768 : index
    %33 = vector.load %arg5[%c0_30, %c768] : memref<128x1024xf32, #tpu.memory_space<vmem>>, vector<128x256xf32>
    %cst_31 = arith.constant dense<0.000000e+00> : vector<32x256xf32>
    %34 = tpu.matmul %11, %33, %cst_31 {dimension_numbers = #tpu.dot_dimension_numbers<[1], [0], [0], [1], [0, 0, 1, 1], [], []>} : vector<32x128xf32>, vector<128x256xf32>, vector<32x256xf32> -> vector<32x256xf32>
    %35 = vector.shape_cast %34 : vector<32x256xf32> to vector<2x16x256xf32>
    %cst_32 = arith.constant dense<0xFF800000> : vector<2x256xf32>
    %36 = vector.multi_reduction <maximumf>, %35, %cst_32 [1] : vector<2x16x256xf32> to vector<2x256xf32>
    %c0_33 = arith.constant 0 : index
    %c768_34 = arith.constant 768 : index
    %37 = vector.load %arg14[%c0_33, %c768_34] : memref<2x1024xf32, #tpu.memory_space<vmem>>, vector<2x256xf32>
    %38 = arith.maximumf %37, %36 : vector<2x256xf32>
    %c0_35 = arith.constant 0 : index
    %c768_36 = arith.constant 768 : index
    %39 = vector.load %arg14[%c0_35, %c768_36] : memref<2x1024xf32, #tpu.memory_space<vmem>>, vector<2x256xf32>
    tpu.vector_store %arg14[%c0_35, %c768_36], %38 {strides = array<i32>} : memref<2x1024xf32, #tpu.memory_space<vmem>>, vector<2x256xf32>,
    %c0_i32_37 = arith.constant 0 : i32
    %40 = arith.cmpi eq, %arg1, %c0_i32_37 : i32
    %41 = arith.extui %40 : i1 to i32
    %c0_i32_38 = arith.constant 0 : i32
    %42 = arith.cmpi ne, %41, %c0_i32_38 : i32
    scf.if %42 {
      %c0_39 = arith.constant 0 : index
      %c0_40 = arith.constant 0 : index
      %43 = vector.load %arg14[%c0_39, %c0_40] : memref<2x1024xf32, #tpu.memory_space<vmem>>, vector<2x1024xf32>
      %c0_41 = arith.constant 0 : index
      %c0_42 = arith.constant 0 : index
      %44 = vector.load %arg6[%c0_41, %c0_42] : memref<1x1024xf32, #tpu.memory_space<vmem>>, vector<1x1024xf32>
      %45 = vector.broadcast %44 : vector<1x1024xf32> to vector<2x1024xf32>
      %46 = arith.addf %43, %45 : vector<2x1024xf32>
      %cst_43 = arith.constant 0.000000e+00 : f32
      %47 = vector.broadcast %cst_43 : f32 to vector<2x1024xf32>
      %48 = arith.maximumf %46, %47 : vector<2x1024xf32>
      %c0_44 = arith.constant 0 : index
      %c0_45 = arith.constant 0 : index
      %49 = vector.load %arg7[%c0_44, %c0_45] : memref<1024x512xf32, #tpu.memory_space<vmem>>, vector<1024x512xf32>
      %cst_46 = arith.constant dense<0.000000e+00> : vector<2x512xf32>
      %50 = tpu.matmul %48, %49, %cst_46 {dimension_numbers = #tpu.dot_dimension_numbers<[1], [0], [0], [1], [0, 0, 1, 1], [], []>} : vector<2x1024xf32>, vector<1024x512xf32>, vector<2x512xf32> -> vector<2x512xf32>
      %c0_47 = arith.constant 0 : index
      %c0_48 = arith.constant 0 : index
      %51 = vector.load %arg8[%c0_47, %c0_48] : memref<1x512xf32, #tpu.memory_space<vmem>>, vector<1x512xf32>
      %52 = vector.broadcast %51 : vector<1x512xf32> to vector<2x512xf32>
      %53 = arith.addf %50, %52 : vector<2x512xf32>
      %cst_49 = arith.constant 0.000000e+00 : f32
      %54 = vector.broadcast %cst_49 : f32 to vector<2x512xf32>
      %55 = arith.maximumf %53, %54 : vector<2x512xf32>
      %c0_50 = arith.constant 0 : index
      %c0_51 = arith.constant 0 : index
      %56 = vector.load %arg9[%c0_50, %c0_51] : memref<512x256xf32, #tpu.memory_space<vmem>>, vector<512x256xf32>
      %cst_52 = arith.constant dense<0.000000e+00> : vector<2x256xf32>
      %57 = tpu.matmul %55, %56, %cst_52 {dimension_numbers = #tpu.dot_dimension_numbers<[1], [0], [0], [1], [0, 0, 1, 1], [], []>} : vector<2x512xf32>, vector<512x256xf32>, vector<2x256xf32> -> vector<2x256xf32>
      %c0_53 = arith.constant 0 : index
      %c0_54 = arith.constant 0 : index
      %58 = vector.load %arg10[%c0_53, %c0_54] : memref<1x256xf32, #tpu.memory_space<vmem>>, vector<1x256xf32>
      %59 = vector.broadcast %58 : vector<1x256xf32> to vector<2x256xf32>
      %60 = arith.addf %57, %59 : vector<2x256xf32>
      %cst_55 = arith.constant 0.000000e+00 : f32
      %61 = vector.broadcast %cst_55 : f32 to vector<2x256xf32>
      %62 = arith.maximumf %60, %61 : vector<2x256xf32>
      %c0_56 = arith.constant 0 : index
      %c0_57 = arith.constant 0 : index
      %63 = vector.load %arg11[%c0_56, %c0_57] : memref<256x128xf32, #tpu.memory_space<vmem>>, vector<256x128xf32>
      %cst_58 = arith.constant dense<0.000000e+00> : vector<2x128xf32>
      %64 = tpu.matmul %62, %63, %cst_58 {dimension_numbers = #tpu.dot_dimension_numbers<[1], [0], [0], [1], [0, 0, 1, 1], [], []>} : vector<2x256xf32>, vector<256x128xf32>, vector<2x128xf32> -> vector<2x128xf32>
      %c0_59 = arith.constant 0 : index
      %c0_60 = arith.constant 0 : index
      %65 = vector.load %arg12[%c0_59, %c0_60] : memref<1x128xf32, #tpu.memory_space<vmem>>, vector<1x128xf32>
      %66 = vector.broadcast %65 : vector<1x128xf32> to vector<2x128xf32>
      %67 = arith.addf %64, %66 : vector<2x128xf32>
      %c0_61 = arith.constant 0 : index
      %c0_62 = arith.constant 0 : index
      %68 = vector.load %arg13[%c0_61, %c0_62] : memref<2x128xf32, #tpu.memory_space<vmem>>, vector<2x128xf32>
      tpu.vector_store %arg13[%c0_61, %c0_62], %67 {strides = array<i32>} : memref<2x128xf32, #tpu.memory_space<vmem>>, vector<2x128xf32>,
    } else {
    }
    return
  }
  func.func @transform_0(%arg0: i32, %arg1: i32) -> (i32, i32, i32) {
    %c0_i32 = arith.constant 0 : i32
    %c0_i32_0 = arith.constant 0 : i32
    return %arg0, %arg1, %c0_i32 : i32, i32, i32
  }
  func.func @transform_1(%arg0: i32, %arg1: i32) -> (i32, i32) {
    %c0_i32 = arith.constant 0 : i32
    %c0_i32_0 = arith.constant 0 : i32
    %c0_i32_1 = arith.constant 0 : i32
    return %c0_i32, %c0_i32_0 : i32, i32
  }
  func.func @transform_2(%arg0: i32, %arg1: i32) -> (i32, i32) {
    %c0_i32 = arith.constant 0 : i32
    %c0_i32_0 = arith.constant 0 : i32
    %c0_i32_1 = arith.constant 0 : i32
    return %c0_i32, %c0_i32_0 : i32, i32
  }
  func.func @transform_3(%arg0: i32, %arg1: i32) -> (i32, i32) {
    %c0_i32 = arith.constant 0 : i32
    %c0_i32_0 = arith.constant 0 : i32
    %c0_i32_1 = arith.constant 0 : i32
    return %c0_i32, %c0_i32_0 : i32, i32
  }
  func.func @transform_4(%arg0: i32, %arg1: i32) -> (i32, i32) {
    %c0_i32 = arith.constant 0 : i32
    %c0_i32_0 = arith.constant 0 : i32
    %c0_i32_1 = arith.constant 0 : i32
    return %c0_i32, %c0_i32_0 : i32, i32
  }
  func.func @transform_5(%arg0: i32, %arg1: i32) -> (i32, i32) {
    %c0_i32 = arith.constant 0 : i32
    %c0_i32_0 = arith.constant 0 : i32
    %c0_i32_1 = arith.constant 0 : i32
    return %c0_i32, %c0_i32_0 : i32, i32
  }
  func.func @transform_6(%arg0: i32, %arg1: i32) -> (i32, i32) {
    %c0_i32 = arith.constant 0 : i32
    %c0_i32_0 = arith.constant 0 : i32
    %c0_i32_1 = arith.constant 0 : i32
    return %c0_i32, %c0_i32_0 : i32, i32
  }
  func.func @transform_7(%arg0: i32, %arg1: i32) -> (i32, i32) {
    %c0_i32 = arith.constant 0 : i32
    %c0_i32_0 = arith.constant 0 : i32
    %c0_i32_1 = arith.constant 0 : i32
    return %c0_i32, %c0_i32_0 : i32, i32
  }
  func.func @transform_8(%arg0: i32, %arg1: i32) -> (i32, i32) {
    %c0_i32 = arith.constant 0 : i32
    %c0_i32_0 = arith.constant 0 : i32
    %c0_i32_1 = arith.constant 0 : i32
    return %c0_i32, %c0_i32_0 : i32, i32
  }
  func.func @transform_9(%arg0: i32, %arg1: i32) -> (i32, i32) {
    %c0_i32 = arith.constant 0 : i32
    %c0_i32_0 = arith.constant 0 : i32
    %c0_i32_1 = arith.constant 0 : i32
    return %c0_i32, %c0_i32_0 : i32, i32
  }
  func.func @transform_10(%arg0: i32, %arg1: i32) -> (i32, i32) {
    %c0_i32 = arith.constant 0 : i32
    %c0_i32_0 = arith.constant 0 : i32
    %c0_i32_1 = arith.constant 0 : i32
    return %c0_i32, %c0_i32_0 : i32, i32
  }
  func.func @transform_11(%arg0: i32, %arg1: i32) -> (i32, i32) {
    %c0_i32 = arith.constant 0 : i32
    %c0_i32_0 = arith.constant 0 : i32
    return %arg0, %c0_i32 : i32, i32
  }
}

</mosaic_0001>

<llo_original>
// kernel: tpu_custom_call.1
$region0: #{tpu_custom_call.1}
  #allocation0 [shape = 'u32[]', space=smem, size = 0x4, offset = 0x4, fixed_abs, tag = 'smem constant byte address 0x4 - core index']
  #allocation1 [shape = 'u32[144,128]{1,0:T(1,128)}', space=vmem, size = 0x12000, scoped, tag = 'internal scratch']
  #allocation2 [shape = 'f32[2,1024]{1,0:T(2,128)}', space=vmem, size = 0x2000, scoped, tag = 'scratch operand']
  %s0 = inlined_call_operand.hbm [shape: f32[2,16,64], index: 0, kind: input, shape index: {}]
  %s1 = inlined_call_operand.hbm [shape: f32[64,128], index: 1, kind: input, shape index: {}]
  %s2 = inlined_call_operand.hbm [shape: f32[1,128], index: 2, kind: input, shape index: {}]
  %s3 = inlined_call_operand.hbm [shape: f32[128,1024], index: 3, kind: input, shape index: {}]
  %s4 = inlined_call_operand.hbm [shape: f32[1,1024], index: 4, kind: input, shape index: {}]
  %s5 = inlined_call_operand.hbm [shape: f32[1024,512], index: 5, kind: input, shape index: {}]
  %s6 = inlined_call_operand.hbm [shape: f32[1,512], index: 6, kind: input, shape index: {}]
  %s7 = inlined_call_operand.hbm [shape: f32[512,256], index: 7, kind: input, shape index: {}]
  %s8 = inlined_call_operand.hbm [shape: f32[1,256], index: 8, kind: input, shape index: {}]
  %s9 = inlined_call_operand.hbm [shape: f32[256,128], index: 9, kind: input, shape index: {}]
  %s10 = inlined_call_operand.hbm [shape: f32[1,128], index: 10, kind: input, shape index: {}]
  %s11 = inlined_call_operand.hbm [shape: f32[2,128], index: 11, kind: output, shape index: {}]
  %s12 = sld [smem:[#allocation0]]
  $region106: #{tpu_custom_call.1} parent=0
    _
  %s14 = ssub.s32 1, %s12
  %s15 = scalar_select 0, %s14, %s12
  $region1: #{tpu_custom_call.1} parent=0
    #allocation3 [shape = 'u8[16384]{0}', space=vmem, size = 0x4000, scoped, tag = 'input window, operand 0, single buffered']
    #allocation4 [shape = 's32[1]{0}', space=sflag, size = 0x4, scoped, tag = 'scoped memory for tpu_custom_call.1']
    #allocation5 [shape = 's32[1]{0}', space=sflag, size = 0x4, scoped, tag = 'scoped memory for tpu_custom_call.1']
    #allocation6 [shape = 'u8[32768]{0}', space=vmem, size = 0x8000, scoped, tag = 'input window, operand 1, single buffered']
    #allocation7 [shape = 's32[1]{0}', space=sflag, size = 0x4, scoped, tag = 'scoped memory for tpu_custom_call.1']
    #allocation8 [shape = 'u8[512]{0}', space=vmem, size = 0x400, scoped, tag = 'input window, operand 2, single buffered']
    #allocation9 [shape = 'u8[524288]{0}', space=vmem, size = 0x80000, scoped, tag = 'input window, operand 3, single buffered']
    #allocation10 [shape = 's32[1]{0}', space=sflag, size = 0x4, scoped, tag = 'scoped memory for tpu_custom_call.1']
    #allocation11 [shape = 'u8[4096]{0}', space=vmem, size = 0x1000, scoped, tag = 'input window, operand 4, single buffered']
    #allocation12 [shape = 'u8[2097152]{0}', space=vmem, size = 0x200000, scoped, tag = 'input window, operand 5, single buffered']
    #allocation13 [shape = 's32[1]{0}', space=sflag, size = 0x4, scoped, tag = 'scoped memory for tpu_custom_call.1']
    #allocation14 [shape = 'u8[2048]{0}', space=vmem, size = 0x800, scoped, tag = 'input window, operand 6, single buffered']
    #allocation15 [shape = 'u8[524288]{0}', space=vmem, size = 0x80000, scoped, tag = 'input window, operand 7, single buffered']
    #allocation16 [shape = 's32[1]{0}', space=sflag, size = 0x4, scoped, tag = 'scoped memory for tpu_custom_call.1']
    #allocation17 [shape = 'u8[1024]{0}', space=vmem, size = 0x400, scoped, tag = 'input window, operand 8, single buffered']
    #allocation18 [shape = 'u8[131072]{0}', space=vmem, size = 0x20000, scoped, tag = 'input window, operand 9, single buffered']
    #allocation19 [shape = 's32[1]{0}', space=sflag, size = 0x4, scoped, tag = 'scoped memory for tpu_custom_call.1']
    #allocation20 [shape = 'u8[512]{0}', space=vmem, size = 0x400, scoped, tag = 'input window, operand 10, single buffered']
    #allocation21 [shape = 'u8[1024]{0}', space=vmem, size = 0x400, scoped, tag = 'output window, operand 0, single buffered']
    %16 = vsyncpa [#allocation4], 0
    %17 = vsyncpa [#allocation7], 0
    %18 = vsyncpa [#allocation10], 0
    %19 = vsyncpa [#allocation13], 0
    %20 = vsyncpa [#allocation16], 0
    %21 = vsyncpa [#allocation19], 0
    %22 = vsyncpa [#allocation5], 0
    // Predicated region
    $region2: #{tpu_custom_call.1} parent=1 // pred_check
      _
    $region3: #{tpu_custom_call.1} parent=1 // pred_check_branch
      %24 = sbr.rel (0) target = $region5
    $region4: #{tpu_custom_call.1} parent=1 // pred_region
      %s26 = ssub.s32 512, 512
      %27 = vsyncadd [#allocation4], %s26
      %s28 = sshll.u32 [#allocation3], 4
      %s29 = int_to_ptr.vmem [resolvable:$true] %s28
      %34 = dma.hbm_to_vmem [thread:$0]  %s0, 512, %s29, [#allocation4], 128, 128, 8
    $region5: #{tpu_custom_call.1} parent=1 // pred_fallthru
      _
    // Predicated region
    $region6: #{tpu_custom_call.1} parent=1 // pred_check
      _
    $region7: #{tpu_custom_call.1} parent=1 // pred_check_branch
      %36 = sbr.rel (0) target = $region9
    $region8: #{tpu_custom_call.1} parent=1 // pred_region
      %s38 = ssub.s32 1024, 1024
      %39 = vsyncadd [#allocation7], %s38
      %s40 = sshll.u32 [#allocation6], 4
      %s41 = int_to_ptr.vmem [resolvable:$true] %s40
      %46 = dma.hbm_to_vmem [thread:$0]  %s1, 1024, %s41, [#allocation7], 128, 128, 8
    $region9: #{tpu_custom_call.1} parent=1 // pred_fallthru
      _
    // Predicated region
    $region10: #{tpu_custom_call.1} parent=1 // pred_check
      _
    $region11: #{tpu_custom_call.1} parent=1 // pred_check_branch
      %48 = sbr.rel (0) target = $region13
    $region12: #{tpu_custom_call.1} parent=1 // pred_region
      %s50 = ssub.s32 16, 16
      %51 = vsyncadd [#allocation7], %s50
      %s53 = sshll.u32 [#allocation8], 4
      %s54 = int_to_ptr.vmem [resolvable:$true] %s53
      %56 = dma.hbm_to_vmem [thread:$0]  %s2, 16, %s54, [#allocation7]
    $region13: #{tpu_custom_call.1} parent=1 // pred_fallthru
      _
    // Predicated region
    $region14: #{tpu_custom_call.1} parent=1 // pred_check
      _
    $region15: #{tpu_custom_call.1} parent=1 // pred_check_branch
      %58 = sbr.rel (0) target = $region17
    $region16: #{tpu_custom_call.1} parent=1 // pred_region
      %s60 = ssub.s32 16384, 16384
      %61 = vsyncadd [#allocation10], %s60
      %s62 = sshll.u32 [#allocation9], 4
      %s63 = int_to_ptr.vmem [resolvable:$true] %s62
      %68 = dma.hbm_to_vmem [thread:$0]  %s3, 16384, %s63, [#allocation10], 1024, 1024, 64
    $region17: #{tpu_custom_call.1} parent=1 // pred_fallthru
      _
    // Predicated region
    $region18: #{tpu_custom_call.1} parent=1 // pred_check
      _
    $region19: #{tpu_custom_call.1} parent=1 // pred_check_branch
      %70 = sbr.rel (0) target = $region21
    $region20: #{tpu_custom_call.1} parent=1 // pred_region
      %s72 = ssub.s32 128, 128
      %73 = vsyncadd [#allocation10], %s72
      %s75 = sshll.u32 [#allocation11], 4
      %s76 = int_to_ptr.vmem [resolvable:$true] %s75
      %78 = dma.hbm_to_vmem [thread:$0]  %s4, 128, %s76, [#allocation10]
    $region21: #{tpu_custom_call.1} parent=1 // pred_fallthru
      _
    // Predicated region
    $region22: #{tpu_custom_call.1} parent=1 // pred_check
      _
    $region23: #{tpu_custom_call.1} parent=1 // pred_check_branch
      %80 = sbr.rel (0) target = $region25
    $region24: #{tpu_custom_call.1} parent=1 // pred_region
      %s82 = ssub.s32 65536, 65536
      %83 = vsyncadd [#allocation13], %s82
      %s84 = sshll.u32 [#allocation12], 4
      %s85 = int_to_ptr.vmem [resolvable:$true] %s84
      %90 = dma.hbm_to_vmem [thread:$0]  %s5, 65536, %s85, [#allocation13], 512, 512, 32
    $region25: #{tpu_custom_call.1} parent=1 // pred_fallthru
      _
    // Predicated region
    $region26: #{tpu_custom_call.1} parent=1 // pred_check
      _
    $region27: #{tpu_custom_call.1} parent=1 // pred_check_branch
      %92 = sbr.rel (0) target = $region29
    $region28: #{tpu_custom_call.1} parent=1 // pred_region
      %s94 = ssub.s32 64, 64
      %95 = vsyncadd [#allocation13], %s94
      %s97 = sshll.u32 [#allocation14], 4
      %s98 = int_to_ptr.vmem [resolvable:$true] %s97
      %100 = dma.hbm_to_vmem [thread:$0]  %s6, 64, %s98, [#allocation13]
    $region29: #{tpu_custom_call.1} parent=1 // pred_fallthru
      _
    // Predicated region
    $region30: #{tpu_custom_call.1} parent=1 // pred_check
      _
    $region31: #{tpu_custom_call.1} parent=1 // pred_check_branch
      %102 = sbr.rel (0) target = $region33
    $region32: #{tpu_custom_call.1} parent=1 // pred_region
      %s104 = ssub.s32 16384, 16384
      %105 = vsyncadd [#allocation16], %s104
      %s106 = sshll.u32 [#allocation15], 4
      %s107 = int_to_ptr.vmem [resolvable:$true] %s106
      %112 = dma.hbm_to_vmem [thread:$0]  %s7, 16384, %s107, [#allocation16], 256, 256, 16
    $region33: #{tpu_custom_call.1} parent=1 // pred_fallthru
      _
    // Predicated region
    $region34: #{tpu_custom_call.1} parent=1 // pred_check
      _
    $region35: #{tpu_custom_call.1} parent=1 // pred_check_branch
      %114 = sbr.rel (0) target = $region37
    $region36: #{tpu_custom_call.1} parent=1 // pred_region
      %s116 = ssub.s32 32, 32
      %117 = vsyncadd [#allocation16], %s116
      %s119 = sshll.u32 [#allocation17], 4
      %s120 = int_to_ptr.vmem [resolvable:$true] %s119
      %122 = dma.hbm_to_vmem [thread:$0]  %s8, 32, %s120, [#allocation16]
    $region37: #{tpu_custom_call.1} parent=1 // pred_fallthru
      _
    // Predicated region
    $region38: #{tpu_custom_call.1} parent=1 // pred_check
      _
    $region39: #{tpu_custom_call.1} parent=1 // pred_check_branch
      %124 = sbr.rel (0) target = $region41
    $region40: #{tpu_custom_call.1} parent=1 // pred_region
      %s126 = ssub.s32 4096, 4096
      %127 = vsyncadd [#allocation19], %s126
      %s128 = sshll.u32 [#allocation18], 4
      %s129 = int_to_ptr.vmem [resolvable:$true] %s128
      %134 = dma.hbm_to_vmem [thread:$0]  %s9, 4096, %s129, [#allocation19], 128, 128, 8
    $region41: #{tpu_custom_call.1} parent=1 // pred_fallthru
      _
    // Predicated region
    $region42: #{tpu_custom_call.1} parent=1 // pred_check
      _
    $region43: #{tpu_custom_call.1} parent=1 // pred_check_branch
      %136 = sbr.rel (0) target = $region45
    $region44: #{tpu_custom_call.1} parent=1 // pred_region
      %s138 = ssub.s32 16, 16
      %139 = vsyncadd [#allocation19], %s138
      %s141 = sshll.u32 [#allocation20], 4
      %s142 = int_to_ptr.vmem [resolvable:$true] %s141
      %144 = dma.hbm_to_vmem [thread:$0]  %s10, 16, %s142, [#allocation19]
    $region45: #{tpu_custom_call.1} parent=1 // pred_fallthru
      _
    // Predicated region
    $region46: #{tpu_custom_call.1} parent=1 // pred_check
      _
    $region47: #{tpu_custom_call.1} parent=1 // pred_check_branch
      %146 = sbr.rel (0) target = $region49
    $region48: #{tpu_custom_call.1} parent=1 // pred_region
      %147 = dma.done [#allocation4], 512
    $region49: #{tpu_custom_call.1} parent=1 // pred_fallthru
      _
    // Predicated region
    $region50: #{tpu_custom_call.1} parent=1 // pred_check
      _
    $region51: #{tpu_custom_call.1} parent=1 // pred_check_branch
      %149 = sbr.rel (0) target = $region53
    $region52: #{tpu_custom_call.1} parent=1 // pred_region
      %150 = dma.done [#allocation7], 1024
    $region53: #{tpu_custom_call.1} parent=1 // pred_fallthru
      _
    // Predicated region
    $region54: #{tpu_custom_call.1} parent=1 // pred_check
      _
    $region55: #{tpu_custom_call.1} parent=1 // pred_check_branch
      %152 = sbr.rel (0) target = $region57
    $region56: #{tpu_custom_call.1} parent=1 // pred_region
      %153 = dma.done [#allocation7], 16
    $region57: #{tpu_custom_call.1} parent=1 // pred_fallthru
      _
    // Predicated region
    $region58: #{tpu_custom_call.1} parent=1 // pred_check
      _
    $region59: #{tpu_custom_call.1} parent=1 // pred_check_branch
      %155 = sbr.rel (0) target = $region61
    $region60: #{tpu_custom_call.1} parent=1 // pred_region
      %156 = dma.done [#allocation10], 16384
    $region61: #{tpu_custom_call.1} parent=1 // pred_fallthru
      _
    // Predicated region
    $region62: #{tpu_custom_call.1} parent=1 // pred_check
      _
    $region63: #{tpu_custom_call.1} parent=1 // pred_check_branch
      %158 = sbr.rel (0) target = $region65
    $region64: #{tpu_custom_call.1} parent=1 // pred_region
      %159 = dma.done [#allocation10], 128
    $region65: #{tpu_custom_call.1} parent=1 // pred_fallthru
      _
    // Predicated region
    $region66: #{tpu_custom_call.1} parent=1 // pred_check
      _
    $region67: #{tpu_custom_call.1} parent=1 // pred_check_branch
      %161 = sbr.rel (0) target = $region69
    $region68: #{tpu_custom_call.1} parent=1 // pred_region
      %162 = dma.done [#allocation13], 65536
    $region69: #{tpu_custom_call.1} parent=1 // pred_fallthru
      _
    // Predicated region
    $region70: #{tpu_custom_call.1} parent=1 // pred_check
      _
    $region71: #{tpu_custom_call.1} parent=1 // pred_check_branch
      %164 = sbr.rel (0) target = $region73
    $region72: #{tpu_custom_call.1} parent=1 // pred_region
      %165 = dma.done [#allocation13], 64
    $region73: #{tpu_custom_call.1} parent=1 // pred_fallthru
      _
    // Predicated region
    $region74: #{tpu_custom_call.1} parent=1 // pred_check
      _
    $region75: #{tpu_custom_call.1} parent=1 // pred_check_branch
      %167 = sbr.rel (0) target = $region77
    $region76: #{tpu_custom_call.1} parent=1 // pred_region
      %168 = dma.done [#allocation16], 16384
    $region77: #{tpu_custom_call.1} parent=1 // pred_fallthru
      _
    // Predicated region
    $region78: #{tpu_custom_call.1} parent=1 // pred_check
      _
    $region79: #{tpu_custom_call.1} parent=1 // pred_check_branch
      %170 = sbr.rel (0) target = $region81
    $region80: #{tpu_custom_call.1} parent=1 // pred_region
      %171 = dma.done [#allocation16], 32
    $region81: #{tpu_custom_call.1} parent=1 // pred_fallthru
      _
    // Predicated region
    $region82: #{tpu_custom_call.1} parent=1 // pred_check
      _
    $region83: #{tpu_custom_call.1} parent=1 // pred_check_branch
      %173 = sbr.rel (0) target = $region85
    $region84: #{tpu_custom_call.1} parent=1 // pred_region
      %174 = dma.done [#allocation19], 4096
    $region85: #{tpu_custom_call.1} parent=1 // pred_fallthru
      _
    // Predicated region
    $region86: #{tpu_custom_call.1} parent=1 // pred_check
      _
    $region87: #{tpu_custom_call.1} parent=1 // pred_check_branch
      %176 = sbr.rel (0) target = $region89
    $region88: #{tpu_custom_call.1} parent=1 // pred_region
      %177 = dma.done [#allocation19], 16
    $region89: #{tpu_custom_call.1} parent=1 // pred_fallthru
      _
    %p178 = scmp.eq.s32.totalorder 0, 0
    // Predicated region
    $region90: #{tpu_custom_call.1} parent=1 // pred_check
      %p179 = pneg %p178
    $region91: #{tpu_custom_call.1} parent=1 // pred_check_branch
      %181 = sbr.rel (%p179) target = $region93
    $region92: #{tpu_custom_call.1} parent=1 // pred_region
      %182 = vst [vmem:[#allocation2] sm:$0xff] -inf
      %183 = vst [vmem:[#allocation2 + $0x8] sm:$0xff] -inf
    $region93: #{tpu_custom_call.1} parent=1 // pred_fallthru
      _
    %v184 = vld [vmem:[#allocation3] sm:$0xff]
    %v185 = vld [vmem:[#allocation3 + $0x8] sm:$0xff]
    %v186 = vld [vmem:[#allocation3 + $0x10] sm:$0xff]
    %v187 = vld [vmem:[#allocation3 + $0x18] sm:$0xff]
    %v188 = vld [vmem:[#allocation6] sm:$0xff]
    %v189 = vld [vmem:[#allocation6 + $0x8] sm:$0xff]
    %v190 = vld [vmem:[#allocation6 + $0x10] sm:$0xff]
    %v191 = vld [vmem:[#allocation6 + $0x18] sm:$0xff]
    %v192 = vld [vmem:[#allocation6 + $0x20] sm:$0xff]
    %v193 = vld [vmem:[#allocation6 + $0x28] sm:$0xff]
    %v194 = vld [vmem:[#allocation6 + $0x30] sm:$0xff]
    %v195 = vld [vmem:[#allocation6 + $0x38] sm:$0xff]
    %v196 = vld [vmem:[#allocation8] sm:$0x1]
    %v198 = vlaneseq
    %v199 = vshrl.u32 %v198, 7
    %v200 = vsub.s32 0, %v199
    %v201 = vrot.slane %v196, %v200
    %vm203 = vcmask 523264
    %v205 = vsel %vm203, %v184, 0
    %v208 = vsel %vm203, %v185, 0
    %v211 = vsel %vm203, %v186, 0
    %v214 = vsel %vm203, %v187, 0
    %216 = vmatprep.subr.mxu0 0.0
    %217 = vmatpush1.msra.mxu0 0.0
    %218 = vmatprep.subr.mxu0 0.0
    %219 = vmatpush1.msra.mxu0 0.0
    %220 = vmatprep.subr.mxu0 0.0
    %221 = vmatpush1.msra.mxu0 0.0
    %222 = vmatprep.subr.mxu0 0.0
    %223 = vmatpush1.msra.mxu0 0.0
    %224 = vmatprep.subr.mxu0 0.0
    %225 = vmatpush1.msra.mxu0 0.0
    %226 = vmatprep.subr.mxu0 0.0
    %227 = vmatpush1.msra.mxu0 0.0
    %228 = vmatprep.subr.mxu0 0.0
    %229 = vmatpush1.msra.mxu0 0.0
    %230 = vmatprep.subr.mxu0 0.0
    %231 = vmatpush1.msra.mxu0 0.0
    %232 = vmatprep.subr.mxu0 0.0
    %233 = vmatpush1.msra.mxu0 %v195
    %234 = vmatprep.subr.mxu0 0.0
    %235 = vmatpush1.msra.mxu0 %v194
    %236 = vmatprep.subr.mxu0 0.0
    %237 = vmatpush1.msra.mxu0 %v193
    %238 = vmatprep.subr.mxu0 0.0
    %239 = vmatpush1.msra.mxu0 %v192
    %240 = vmatprep.subr.mxu0 0.0
    %241 = vmatpush1.msra.mxu0 %v191
    %242 = vmatprep.subr.mxu0 0.0
    %243 = vmatpush1.msra.mxu0 %v190
    %244 = vmatprep.subr.mxu0 0.0
    %245 = vmatpush1.msra.mxu0 %v189
    %246 = vmatprep.subr.mxu0 0.0
    %247 = vmatpush1.msra.mxu0 %v188
    %248 = vmatprep.subr.mxu0 0.0
    %249 = vmatpush2.msra.mxu0 0.0
    %250 = vmatprep.subr.mxu0 0.0
    %251 = vmatpush2.msra.mxu0 0.0
    %252 = vmatprep.subr.mxu0 0.0
    %253 = vmatpush2.msra.mxu0 0.0
    %254 = vmatprep.subr.mxu0 0.0
    %255 = vmatpush2.msra.mxu0 0.0
    %256 = vmatprep.subr.mxu0 0.0
    %257 = vmatpush2.msra.mxu0 0.0
    %258 = vmatprep.subr.mxu0 0.0
    %259 = vmatpush2.msra.mxu0 0.0
    %260 = vmatprep.subr.mxu0 0.0
    %261 = vmatpush2.msra.mxu0 0.0
    %262 = vmatprep.subr.mxu0 0.0
    %263 = vmatpush2.msra.mxu0 0.0
    %264 = vmatprep.subr.mxu0 0.0
    %265 = vmatpush2.msra.mxu0 0.0
    %266 = vmatprep.subr.mxu0 0.0
    %267 = vmatpush2.msra.mxu0 0.0
    %268 = vmatprep.subr.mxu0 0.0
    %269 = vmatpush2.msra.mxu0 0.0
    %270 = vmatprep.subr.mxu0 0.0
    %271 = vmatpush2.msra.mxu0 0.0
    %272 = vmatprep.subr.mxu0 0.0
    %273 = vmatpush2.msra.mxu0 0.0
    %274 = vmatprep.subr.mxu0 0.0
    %275 = vmatpush2.msra.mxu0 0.0
    %276 = vmatprep.subr.mxu0 0.0
    %277 = vmatpush2.msra.mxu0 0.0
    %278 = vmatprep.subr.mxu0 0.0
    %279 = vmatpush2.msra.mxu0 0.0
    %280 = vmatprep.mubr.f32.mxu0 0.0
    %281 = vmatmul.mubr.f32.gmra.mxu0 %v205
    %v282 = vpop.f32.mrf.mxu0
    %v283 = vadd.f32 %v201, %v282
    %v284 = vpop.f32.mrf.mxu0
    %285 = vmatprep.mubr.f32.mxu0 0.0
    %286 = vmatmul.mubr.f32.gmra.mxu0 %v208
    %v287 = vpop.f32.mrf.mxu0
    %v288 = vadd.f32 %v201, %v287
    %v289 = vpop.f32.mrf.mxu0
    %290 = vmatprep.mubr.f32.mxu0 0.0
    %291 = vmatmul.mubr.f32.gmra.mxu0 %v211
    %v292 = vpop.f32.mrf.mxu0
    %v293 = vadd.f32 %v201, %v292
    %v294 = vpop.f32.mrf.mxu0
    %295 = vmatprep.mubr.f32.mxu0 0.0
    %296 = vmatmul.mubr.f32.gmra.mxu0 %v214
    %v297 = vpop.f32.mrf.mxu0
    %v298 = vadd.f32 %v201, %v297
    %v299 = vpop.f32.mrf.mxu0
    %300 = vdwg.mxu0
    %v301 = vmax.f32 %v283, 0.0
    %v302 = vmax.f32 %v288, 0.0
    %v303 = vmax.f32 %v293, 0.0
    %v304 = vmax.f32 %v298, 0.0
    %v305 = vld [vmem:[#allocation9] sm:$0xff]
    %v306 = vld [vmem:[#allocation9 + $0x8] sm:$0xff]
    %v307 = vld [vmem:[#allocation9 + $0x40] sm:$0xff]
    %v308 = vld [vmem:[#allocation9 + $0x48] sm:$0xff]
    %v309 = vld [vmem:[#allocation9 + $0x80] sm:$0xff]
    %v310 = vld [vmem:[#allocation9 + $0x88] sm:$0xff]
    %v311 = vld [vmem:[#allocation9 + $0xc0] sm:$0xff]
    %v312 = vld [vmem:[#allocation9 + $0xc8] sm:$0xff]
    %v313 = vld [vmem:[#allocation9 + $0x100] sm:$0xff]
    %v314 = vld [vmem:[#allocation9 + $0x108] sm:$0xff]
    %v315 = vld [vmem:[#allocation9 + $0x140] sm:$0xff]
    %v316 = vld [vmem:[#allocation9 + $0x148] sm:$0xff]
    %v317 = vld [vmem:[#allocation9 + $0x180] sm:$0xff]
    %v318 = vld [vmem:[#allocation9 + $0x188] sm:$0xff]
    %v319 = vld [vmem:[#allocation9 + $0x1c0] sm:$0xff]
    %v320 = vld [vmem:[#allocation9 + $0x1c8] sm:$0xff]
    %v321 = vld [vmem:[#allocation9 + $0x200] sm:$0xff]
    %v322 = vld [vmem:[#allocation9 + $0x208] sm:$0xff]
    %v323 = vld [vmem:[#allocation9 + $0x240] sm:$0xff]
    %v324 = vld [vmem:[#allocation9 + $0x248] sm:$0xff]
    %v325 = vld [vmem:[#allocation9 + $0x280] sm:$0xff]
    %v326 = vld [vmem:[#allocation9 + $0x288] sm:$0xff]
    %v327 = vld [vmem:[#allocation9 + $0x2c0] sm:$0xff]
    %v328 = vld [vmem:[#allocation9 + $0x2c8] sm:$0xff]
    %v329 = vld [vmem:[#allocation9 + $0x300] sm:$0xff]
    %v330 = vld [vmem:[#allocation9 + $0x308] sm:$0xff]
    %v331 = vld [vmem:[#allocation9 + $0x340] sm:$0xff]
    %v332 = vld [vmem:[#allocation9 + $0x348] sm:$0xff]
    %v333 = vld [vmem:[#allocation9 + $0x380] sm:$0xff]
    %v334 = vld [vmem:[#allocation9 + $0x388] sm:$0xff]
    %v335 = vld [vmem:[#allocation9 + $0x3c0] sm:$0xff]
    %v336 = vld [vmem:[#allocation9 + $0x3c8] sm:$0xff]
    %337 = vmatprep.subr.mxu0 %v336
    %338 = vmatpush1.msra.mxu0 %v335
    %339 = vmatprep.subr.mxu0 %v334
    %340 = vmatpush1.msra.mxu0 %v333
    %341 = vmatprep.subr.mxu0 %v332
    %342 = vmatpush1.msra.mxu0 %v331
    %343 = vmatprep.subr.mxu0 %v330
    %344 = vmatpush1.msra.mxu0 %v329
    %345 = vmatprep.subr.mxu0 %v328
    %346 = vmatpush1.msra.mxu0 %v327
    %347 = vmatprep.subr.mxu0 %v326
    %348 = vmatpush1.msra.mxu0 %v325
    %349 = vmatprep.subr.mxu0 %v324
    %350 = vmatpush1.msra.mxu0 %v323
    %351 = vmatprep.subr.mxu0 %v322
    %352 = vmatpush1.msra.mxu0 %v321
    %353 = vmatprep.subr.mxu0 %v320
    %354 = vmatpush1.msra.mxu0 %v319
    %355 = vmatprep.subr.mxu0 %v318
    %356 = vmatpush1.msra.mxu0 %v317
    %357 = vmatprep.subr.mxu0 %v316
    %358 = vmatpush1.msra.mxu0 %v315
    %359 = vmatprep.subr.mxu0 %v314
    %360 = vmatpush1.msra.mxu0 %v313
    %361 = vmatprep.subr.mxu0 %v312
    %362 = vmatpush1.msra.mxu0 %v311
    %363 = vmatprep.subr.mxu0 %v310
    %364 = vmatpush1.msra.mxu0 %v309
    %365 = vmatprep.subr.mxu0 %v308
    %366 = vmatpush1.msra.mxu0 %v307
    %367 = vmatprep.subr.mxu0 %v306
    %368 = vmatpush1.msra.mxu0 %v305
    %369 = vmatprep.subr.mxu0 0.0
    %370 = vmatpush2.msra.mxu0 0.0
    %371 = vmatprep.subr.mxu0 0.0
    %372 = vmatpush2.msra.mxu0 0.0
    %373 = vmatprep.subr.mxu0 0.0
    %374 = vmatpush2.msra.mxu0 0.0
    %375 = vmatprep.subr.mxu0 0.0
    %376 = vmatpush2.msra.mxu0 0.0
    %377 = vmatprep.subr.mxu0 0.0
    %378 = vmatpush2.msra.mxu0 0.0
    %379 = vmatprep.subr.mxu0 0.0
    %380 = vmatpush2.msra.mxu0 0.0
    %381 = vmatprep.subr.mxu0 0.0
    %382 = vmatpush2.msra.mxu0 0.0
    %383 = vmatprep.subr.mxu0 0.0
    %384 = vmatpush2.msra.mxu0 0.0
    %385 = vmatprep.subr.mxu0 0.0
    %386 = vmatpush2.msra.mxu0 0.0
    %387 = vmatprep.subr.mxu0 0.0
    %388 = vmatpush2.msra.mxu0 0.0
    %389 = vmatprep.subr.mxu0 0.0
    %390 = vmatpush2.msra.mxu0 0.0
    %391 = vmatprep.subr.mxu0 0.0
    %392 = vmatpush2.msra.mxu0 0.0
    %393 = vmatprep.subr.mxu0 0.0
    %394 = vmatpush2.msra.mxu0 0.0
    %395 = vmatprep.subr.mxu0 0.0
    %396 = vmatpush2.msra.mxu0 0.0
    %397 = vmatprep.subr.mxu0 0.0
    %398 = vmatpush2.msra.mxu0 0.0
    %399 = vmatprep.subr.mxu0 0.0
    %400 = vmatpush2.msra.mxu0 0.0
    %401 = vmatprep.mubr.f32.mxu0 0.0
    %402 = vmatmul.mubr.f32.gmra.mxu0 %v301
    %v403 = vpop.f32.mrf.mxu0
    %v404 = vadd.f32 0.0, %v403
    %v405 = vpop.f32.mrf.mxu0
    %v406 = vadd.f32 0.0, %v405
    %407 = vmatprep.mubr.f32.mxu0 0.0
    %408 = vmatmul.mubr.f32.gmra.mxu0 %v302
    %v409 = vpop.f32.mrf.mxu0
    %v410 = vadd.f32 0.0, %v409
    %v411 = vpop.f32.mrf.mxu0
    %v412 = vadd.f32 0.0, %v411
    %413 = vmatprep.mubr.f32.mxu0 0.0
    %414 = vmatmul.mubr.f32.gmra.mxu0 %v303
    %v415 = vpop.f32.mrf.mxu0
    %v416 = vadd.f32 0.0, %v415
    %v417 = vpop.f32.mrf.mxu0
    %v418 = vadd.f32 0.0, %v417
    %419 = vmatprep.mubr.f32.mxu0 0.0
    %420 = vmatmul.mubr.f32.gmra.mxu0 %v304
    %v421 = vpop.f32.mrf.mxu0
    %v422 = vadd.f32 0.0, %v421
    %v423 = vpop.f32.mrf.mxu0
    %v424 = vadd.f32 0.0, %v423
    %425 = vdwg.mxu0
    %v426 = vmax.f32 %v404, %v410
    %v427 = vrot.slane %v426, 4
    %v428 = vmax.f32 %v426, %v427
    %v429 = vrot.slane %v428, 2
    %v430 = vmax.f32 %v428, %v429
    %v431 = vrot.slane %v430, 1
    %v432 = vmax.f32 %v430, %v431
    %v433 = vmax.f32 %v406, %v412
    %v434 = vrot.slane %v433, 4
    %v435 = vmax.f32 %v433, %v434
    %v436 = vrot.slane %v435, 2
    %v437 = vmax.f32 %v435, %v436
    %v438 = vrot.slane %v437, 1
    %v439 = vmax.f32 %v437, %v438
    %v440 = vmax.f32 %v416, %v422
    %v441 = vrot.slane %v440, 4
    %v442 = vmax.f32 %v440, %v441
    %v443 = vrot.slane %v442, 2
    %v444 = vmax.f32 %v442, %v443
    %v445 = vrot.slane %v444, 1
    %v446 = vmax.f32 %v444, %v445
    %v447 = vmax.f32 %v418, %v424
    %v448 = vrot.slane %v447, 4
    %v449 = vmax.f32 %v447, %v448
    %v450 = vrot.slane %v449, 2
    %v451 = vmax.f32 %v449, %v450
    %v452 = vrot.slane %v451, 1
    %v453 = vmax.f32 %v451, %v452
    %v454 = vld [vmem:[#allocation2] sm:$0xf]
    %v459 = vcombine.low %v432, %v439
    %v461 = vunpack.c.l.s4 1983009808
    %v462 = vunpack.c.0.s8 %v461
    %v463 = vlaneseq
    %v464 = vshrl.u32 %v463, 7
    %v465 = vsub.s32 %v462, %v464
    %v466 = vrot.slane %v459, %v465
    %v467 = vcombine.low %v446, %v453
    %v469 = vunpack.c.l.s4 1983009808
    %v470 = vunpack.c.0.s8 %v469
    %v471 = vlaneseq
    %v472 = vshrl.u32 %v471, 7
    %v473 = vsub.s32 %v470, %v472
    %v474 = vrot.slane %v467, %v473
    %vm475 = vcmask 1044484
    %v476 = vsel %vm475, %v466, %v466
    %vm477 = vcmask 1046534
    %v478 = vsel %vm477, %v466, %v476
    %v479 = vrot.slane %v474, 7
    %vm480 = vcmask 1041409
    %v481 = vsel %vm480, %v479, %v478
    %vm482 = vcmask 1043459
    %v483 = vsel %vm482, %v479, %v481
    %vm484 = vcmask 1045509
    %v485 = vsel %vm484, %v479, %v483
    %vm486 = vcmask 1047559
    %v487 = vsel %vm486, %v479, %v485
    %v489 = vmax.f32 %v454, %v487
    %490 = vst [vmem:[#allocation2] sm:$0xf] %v489
    %v491 = vld [vmem:[#allocation9 + $0x10] sm:$0xff]
    %v492 = vld [vmem:[#allocation9 + $0x18] sm:$0xff]
    %v493 = vld [vmem:[#allocation9 + $0x50] sm:$0xff]
    %v494 = vld [vmem:[#allocation9 + $0x58] sm:$0xff]
    %v495 = vld [vmem:[#allocation9 + $0x90] sm:$0xff]
    %v496 = vld [vmem:[#allocation9 + $0x98] sm:$0xff]
    %v497 = vld [vmem:[#allocation9 + $0xd0] sm:$0xff]
    %v498 = vld [vmem:[#allocation9 + $0xd8] sm:$0xff]
    %v499 = vld [vmem:[#allocation9 + $0x110] sm:$0xff]
    %v500 = vld [vmem:[#allocation9 + $0x118] sm:$0xff]
    %v501 = vld [vmem:[#allocation9 + $0x150] sm:$0xff]
    %v502 = vld [vmem:[#allocation9 + $0x158] sm:$0xff]
    %v503 = vld [vmem:[#allocation9 + $0x190] sm:$0xff]
    %v504 = vld [vmem:[#allocation9 + $0x198] sm:$0xff]
    %v505 = vld [vmem:[#allocation9 + $0x1d0] sm:$0xff]
    %v506 = vld [vmem:[#allocation9 + $0x1d8] sm:$0xff]
    %v507 = vld [vmem:[#allocation9 + $0x210] sm:$0xff]
    %v508 = vld [vmem:[#allocation9 + $0x218] sm:$0xff]
    %v509 = vld [vmem:[#allocation9 + $0x250] sm:$0xff]
    %v510 = vld [vmem:[#allocation9 + $0x258] sm:$0xff]
    %v511 = vld [vmem:[#allocation9 + $0x290] sm:$0xff]
    %v512 = vld [vmem:[#allocation9 + $0x298] sm:$0xff]
    %v513 = vld [vmem:[#allocation9 + $0x2d0] sm:$0xff]
    %v514 = vld [vmem:[#allocation9 + $0x2d8] sm:$0xff]
    %v515 = vld [vmem:[#allocation9 + $0x310] sm:$0xff]
    %v516 = vld [vmem:[#allocation9 + $0x318] sm:$0xff]
    %v517 = vld [vmem:[#allocation9 + $0x350] sm:$0xff]
    %v518 = vld [vmem:[#allocation9 + $0x358] sm:$0xff]
    %v519 = vld [vmem:[#allocation9 + $0x390] sm:$0xff]
    %v520 = vld [vmem:[#allocation9 + $0x398] sm:$0xff]
    %v521 = vld [vmem:[#allocation9 + $0x3d0] sm:$0xff]
    %v522 = vld [vmem:[#allocation9 + $0x3d8] sm:$0xff]
    %523 = vmatprep.subr.mxu0 %v522
    %524 = vmatpush1.msra.mxu0 %v521
    %525 = vmatprep.subr.mxu0 %v520
    %526 = vmatpush1.msra.mxu0 %v519
    %527 = vmatprep.subr.mxu0 %v518
    %528 = vmatpush1.msra.mxu0 %v517
    %529 = vmatprep.subr.mxu0 %v516
    %530 = vmatpush1.msra.mxu0 %v515
    %531 = vmatprep.subr.mxu0 %v514
    %532 = vmatpush1.msra.mxu0 %v513
    %533 = vmatprep.subr.mxu0 %v512
    %534 = vmatpush1.msra.mxu0 %v511
    %535 = vmatprep.subr.mxu0 %v510
    %536 = vmatpush1.msra.mxu0 %v509
    %537 = vmatprep.subr.mxu0 %v508
    %538 = vmatpush1.msra.mxu0 %v507
    %539 = vmatprep.subr.mxu0 %v506
    %540 = vmatpush1.msra.mxu0 %v505
    %541 = vmatprep.subr.mxu0 %v504
    %542 = vmatpush1.msra.mxu0 %v503
    %543 = vmatprep.subr.mxu0 %v502
    %544 = vmatpush1.msra.mxu0 %v501
    %545 = vmatprep.subr.mxu0 %v500
    %546 = vmatpush1.msra.mxu0 %v499
    %547 = vmatprep.subr.mxu0 %v498
    %548 = vmatpush1.msra.mxu0 %v497
    %549 = vmatprep.subr.mxu0 %v496
    %550 = vmatpush1.msra.mxu0 %v495
    %551 = vmatprep.subr.mxu0 %v494
    %552 = vmatpush1.msra.mxu0 %v493
    %553 = vmatprep.subr.mxu0 %v492
    %554 = vmatpush1.msra.mxu0 %v491
    %555 = vmatprep.subr.mxu0 0.0
    %556 = vmatpush2.msra.mxu0 0.0
    %557 = vmatprep.subr.mxu0 0.0
    %558 = vmatpush2.msra.mxu0 0.0
    %559 = vmatprep.subr.mxu0 0.0
    %560 = vmatpush2.msra.mxu0 0.0
    %561 = vmatprep.subr.mxu0 0.0
    %562 = vmatpush2.msra.mxu0 0.0
    %563 = vmatprep.subr.mxu0 0.0
    %564 = vmatpush2.msra.mxu0 0.0
    %565 = vmatprep.subr.mxu0 0.0
    %566 = vmatpush2.msra.mxu0 0.0
    %567 = vmatprep.subr.mxu0 0.0
    %568 = vmatpush2.msra.mxu0 0.0
    %569 = vmatprep.subr.mxu0 0.0
    %570 = vmatpush2.msra.mxu0 0.0
    %571 = vmatprep.subr.mxu0 0.0
    %572 = vmatpush2.msra.mxu0 0.0
    %573 = vmatprep.subr.mxu0 0.0
    %574 = vmatpush2.msra.mxu0 0.0
    %575 = vmatprep.subr.mxu0 0.0
    %576 = vmatpush2.msra.mxu0 0.0
    %577 = vmatprep.subr.mxu0 0.0
    %578 = vmatpush2.msra.mxu0 0.0
    %579 = vmatprep.subr.mxu0 0.0
    %580 = vmatpush2.msra.mxu0 0.0
    %581 = vmatprep.subr.mxu0 0.0
    %582 = vmatpush2.msra.mxu0 0.0
    %583 = vmatprep.subr.mxu0 0.0
    %584 = vmatpush2.msra.mxu0 0.0
    %585 = vmatprep.subr.mxu0 0.0
    %586 = vmatpush2.msra.mxu0 0.0
    %587 = vmatprep.mubr.f32.mxu0 0.0
    %588 = vmatmul.mubr.f32.gmra.mxu0 %v301
    %v589 = vpop.f32.mrf.mxu0
    %v590 = vadd.f32 0.0, %v589
    %v591 = vpop.f32.mrf.mxu0
    %v592 = vadd.f32 0.0, %v591
    %593 = vmatprep.mubr.f32.mxu0 0.0
    %594 = vmatmul.mubr.f32.gmra.mxu0 %v302
    %v595 = vpop.f32.mrf.mxu0
    %v596 = vadd.f32 0.0, %v595
    %v597 = vpop.f32.mrf.mxu0
    %v598 = vadd.f32 0.0, %v597
    %599 = vmatprep.mubr.f32.mxu0 0.0
    %600 = vmatmul.mubr.f32.gmra.mxu0 %v303
    %v601 = vpop.f32.mrf.mxu0
    %v602 = vadd.f32 0.0, %v601
    %v603 = vpop.f32.mrf.mxu0
    %v604 = vadd.f32 0.0, %v603
    %605 = vmatprep.mubr.f32.mxu0 0.0
    %606 = vmatmul.mubr.f32.gmra.mxu0 %v304
    %v607 = vpop.f32.mrf.mxu0
    %v608 = vadd.f32 0.0, %v607
    %v609 = vpop.f32.mrf.mxu0
    %v610 = vadd.f32 0.0, %v609
    %611 = vdwg.mxu0
    %v612 = vmax.f32 %v590, %v596
    %v613 = vrot.slane %v612, 4
    %v614 = vmax.f32 %v612, %v613
    %v615 = vrot.slane %v614, 2
    %v616 = vmax.f32 %v614, %v615
    %v617 = vrot.slane %v616, 1
    %v618 = vmax.f32 %v616, %v617
    %v619 = vmax.f32 %v592, %v598
    %v620 = vrot.slane %v619, 4
    %v621 = vmax.f32 %v619, %v620
    %v622 = vrot.slane %v621, 2
    %v623 = vmax.f32 %v621, %v622
    %v624 = vrot.slane %v623, 1
    %v625 = vmax.f32 %v623, %v624
    %v626 = vmax.f32 %v602, %v608
    %v627 = vrot.slane %v626, 4
    %v628 = vmax.f32 %v626, %v627
    %v629 = vrot.slane %v628, 2
    %v630 = vmax.f32 %v628, %v629
    %v631 = vrot.slane %v630, 1
    %v632 = vmax.f32 %v630, %v631
    %v633 = vmax.f32 %v604, %v610
    %v634 = vrot.slane %v633, 4
    %v635 = vmax.f32 %v633, %v634
    %v636 = vrot.slane %v635, 2
    %v637 = vmax.f32 %v635, %v636
    %v638 = vrot.slane %v637, 1
    %v639 = vmax.f32 %v637, %v638
    %v640 = vld [vmem:[#allocation2 + $0x4] sm:$0xf]
    %v645 = vcombine.low %v618, %v625
    %v647 = vunpack.c.l.s4 1983009808
    %v648 = vunpack.c.0.s8 %v647
    %v649 = vlaneseq
    %v650 = vshrl.u32 %v649, 7
    %v651 = vsub.s32 %v648, %v650
    %v652 = vrot.slane %v645, %v651
    %v653 = vcombine.low %v632, %v639
    %v655 = vunpack.c.l.s4 1983009808
    %v656 = vunpack.c.0.s8 %v655
    %v657 = vlaneseq
    %v658 = vshrl.u32 %v657, 7
    %v659 = vsub.s32 %v656, %v658
    %v660 = vrot.slane %v653, %v659
    %v661 = vsel %vm475, %v652, %v652
    %v662 = vsel %vm477, %v652, %v661
    %v663 = vrot.slane %v660, 7
    %v664 = vsel %vm480, %v663, %v662
    %v665 = vsel %vm482, %v663, %v664
    %v666 = vsel %vm484, %v663, %v665
    %v667 = vsel %vm486, %v663, %v666
    %v669 = vmax.f32 %v640, %v667
    %670 = vst [vmem:[#allocation2 + $0x4] sm:$0xf] %v669
    %v671 = vld [vmem:[#allocation9 + $0x20] sm:$0xff]
    %v672 = vld [vmem:[#allocation9 + $0x28] sm:$0xff]
    %v673 = vld [vmem:[#allocation9 + $0x60] sm:$0xff]
    %v674 = vld [vmem:[#allocation9 + $0x68] sm:$0xff]
    %v675 = vld [vmem:[#allocation9 + $0xa0] sm:$0xff]
    %v676 = vld [vmem:[#allocation9 + $0xa8] sm:$0xff]
    %v677 = vld [vmem:[#allocation9 + $0xe0] sm:$0xff]
    %v678 = vld [vmem:[#allocation9 + $0xe8] sm:$0xff]
    %v679 = vld [vmem:[#allocation9 + $0x120] sm:$0xff]
    %v680 = vld [vmem:[#allocation9 + $0x128] sm:$0xff]
    %v681 = vld [vmem:[#allocation9 + $0x160] sm:$0xff]
    %v682 = vld [vmem:[#allocation9 + $0x168] sm:$0xff]
    %v683 = vld [vmem:[#allocation9 + $0x1a0] sm:$0xff]
    %v684 = vld [vmem:[#allocation9 + $0x1a8] sm:$0xff]
    %v685 = vld [vmem:[#allocation9 + $0x1e0] sm:$0xff]
    %v686 = vld [vmem:[#allocation9 + $0x1e8] sm:$0xff]
    %v687 = vld [vmem:[#allocation9 + $0x220] sm:$0xff]
    %v688 = vld [vmem:[#allocation9 + $0x228] sm:$0xff]
    %v689 = vld [vmem:[#allocation9 + $0x260] sm:$0xff]
    %v690 = vld [vmem:[#allocation9 + $0x268] sm:$0xff]
    %v691 = vld [vmem:[#allocation9 + $0x2a0] sm:$0xff]
    %v692 = vld [vmem:[#allocation9 + $0x2a8] sm:$0xff]
    %v693 = vld [vmem:[#allocation9 + $0x2e0] sm:$0xff]
    %v694 = vld [vmem:[#allocation9 + $0x2e8] sm:$0xff]
    %v695 = vld [vmem:[#allocation9 + $0x320] sm:$0xff]
    %v696 = vld [vmem:[#allocation9 + $0x328] sm:$0xff]
    %v697 = vld [vmem:[#allocation9 + $0x360] sm:$0xff]
    %v698 = vld [vmem:[#allocation9 + $0x368] sm:$0xff]
    %v699 = vld [vmem:[#allocation9 + $0x3a0] sm:$0xff]
    %v700 = vld [vmem:[#allocation9 + $0x3a8] sm:$0xff]
    %v701 = vld [vmem:[#allocation9 + $0x3e0] sm:$0xff]
    %v702 = vld [vmem:[#allocation9 + $0x3e8] sm:$0xff]
    %703 = vmatprep.subr.mxu0 %v702
    %704 = vmatpush1.msra.mxu0 %v701
    %705 = vmatprep.subr.mxu0 %v700
    %706 = vmatpush1.msra.mxu0 %v699
    %707 = vmatprep.subr.mxu0 %v698
    %708 = vmatpush1.msra.mxu0 %v697
    %709 = vmatprep.subr.mxu0 %v696
    %710 = vmatpush1.msra.mxu0 %v695
    %711 = vmatprep.subr.mxu0 %v694
    %712 = vmatpush1.msra.mxu0 %v693
    %713 = vmatprep.subr.mxu0 %v692
    %714 = vmatpush1.msra.mxu0 %v691
    %715 = vmatprep.subr.mxu0 %v690
    %716 = vmatpush1.msra.mxu0 %v689
    %717 = vmatprep.subr.mxu0 %v688
    %718 = vmatpush1.msra.mxu0 %v687
    %719 = vmatprep.subr.mxu0 %v686
    %720 = vmatpush1.msra.mxu0 %v685
    %721 = vmatprep.subr.mxu0 %v684
    %722 = vmatpush1.msra.mxu0 %v683
    %723 = vmatprep.subr.mxu0 %v682
    %724 = vmatpush1.msra.mxu0 %v681
    %725 = vmatprep.subr.mxu0 %v680
    %726 = vmatpush1.msra.mxu0 %v679
    %727 = vmatprep.subr.mxu0 %v678
    %728 = vmatpush1.msra.mxu0 %v677
    %729 = vmatprep.subr.mxu0 %v676
    %730 = vmatpush1.msra.mxu0 %v675
    %731 = vmatprep.subr.mxu0 %v674
    %732 = vmatpush1.msra.mxu0 %v673
    %733 = vmatprep.subr.mxu0 %v672
    %734 = vmatpush1.msra.mxu0 %v671
    %735 = vmatprep.subr.mxu0 0.0
    %736 = vmatpush2.msra.mxu0 0.0
    %737 = vmatprep.subr.mxu0 0.0
    %738 = vmatpush2.msra.mxu0 0.0
    %739 = vmatprep.subr.mxu0 0.0
    %740 = vmatpush2.msra.mxu0 0.0
    %741 = vmatprep.subr.mxu0 0.0
    %742 = vmatpush2.msra.mxu0 0.0
    %743 = vmatprep.subr.mxu0 0.0
    %744 = vmatpush2.msra.mxu0 0.0
    %745 = vmatprep.subr.mxu0 0.0
    %746 = vmatpush2.msra.mxu0 0.0
    %747 = vmatprep.subr.mxu0 0.0
    %748 = vmatpush2.msra.mxu0 0.0
    %749 = vmatprep.subr.mxu0 0.0
    %750 = vmatpush2.msra.mxu0 0.0
    %751 = vmatprep.subr.mxu0 0.0
    %752 = vmatpush2.msra.mxu0 0.0
    %753 = vmatprep.subr.mxu0 0.0
    %754 = vmatpush2.msra.mxu0 0.0
    %755 = vmatprep.subr.mxu0 0.0
    %756 = vmatpush2.msra.mxu0 0.0
    %757 = vmatprep.subr.mxu0 0.0
    %758 = vmatpush2.msra.mxu0 0.0
    %759 = vmatprep.subr.mxu0 0.0
    %760 = vmatpush2.msra.mxu0 0.0
    %761 = vmatprep.subr.mxu0 0.0
    %762 = vmatpush2.msra.mxu0 0.0
    %763 = vmatprep.subr.mxu0 0.0
    %764 = vmatpush2.msra.mxu0 0.0
    %765 = vmatprep.subr.mxu0 0.0
    %766 = vmatpush2.msra.mxu0 0.0
    %767 = vmatprep.mubr.f32.mxu0 0.0
    %768 = vmatmul.mubr.f32.gmra.mxu0 %v301
    %v769 = vpop.f32.mrf.mxu0
    %v770 = vadd.f32 0.0, %v769
    %v771 = vpop.f32.mrf.mxu0
    %v772 = vadd.f32 0.0, %v771
    %773 = vmatprep.mubr.f32.mxu0 0.0
    %774 = vmatmul.mubr.f32.gmra.mxu0 %v302
    %v775 = vpop.f32.mrf.mxu0
    %v776 = vadd.f32 0.0, %v775
    %v777 = vpop.f32.mrf.mxu0
    %v778 = vadd.f32 0.0, %v777
    %779 = vmatprep.mubr.f32.mxu0 0.0
    %780 = vmatmul.mubr.f32.gmra.mxu0 %v303
    %v781 = vpop.f32.mrf.mxu0
    %v782 = vadd.f32 0.0, %v781
    %v783 = vpop.f32.mrf.mxu0
    %v784 = vadd.f32 0.0, %v783
    %785 = vmatprep.mubr.f32.mxu0 0.0
    %786 = vmatmul.mubr.f32.gmra.mxu0 %v304
    %v787 = vpop.f32.mrf.mxu0
    %v788 = vadd.f32 0.0, %v787
    %v789 = vpop.f32.mrf.mxu0
    %v790 = vadd.f32 0.0, %v789
    %791 = vdwg.mxu0
    %v792 = vmax.f32 %v770, %v776
    %v793 = vrot.slane %v792, 4
    %v794 = vmax.f32 %v792, %v793
    %v795 = vrot.slane %v794, 2
    %v796 = vmax.f32 %v794, %v795
    %v797 = vrot.slane %v796, 1
    %v798 = vmax.f32 %v796, %v797
    %v799 = vmax.f32 %v772, %v778
    %v800 = vrot.slane %v799, 4
    %v801 = vmax.f32 %v799, %v800
    %v802 = vrot.slane %v801, 2
    %v803 = vmax.f32 %v801, %v802
    %v804 = vrot.slane %v803, 1
    %v805 = vmax.f32 %v803, %v804
    %v806 = vmax.f32 %v782, %v788
    %v807 = vrot.slane %v806, 4
    %v808 = vmax.f32 %v806, %v807
    %v809 = vrot.slane %v808, 2
    %v810 = vmax.f32 %v808, %v809
    %v811 = vrot.slane %v810, 1
    %v812 = vmax.f32 %v810, %v811
    %v813 = vmax.f32 %v784, %v790
    %v814 = vrot.slane %v813, 4
    %v815 = vmax.f32 %v813, %v814
    %v816 = vrot.slane %v815, 2
    %v817 = vmax.f32 %v815, %v816
    %v818 = vrot.slane %v817, 1
    %v819 = vmax.f32 %v817, %v818
    %v820 = vld [vmem:[#allocation2 + $0x8] sm:$0xf]
    %v825 = vcombine.low %v798, %v805
    %v827 = vunpack.c.l.s4 1983009808
    %v828 = vunpack.c.0.s8 %v827
    %v829 = vlaneseq
    %v830 = vshrl.u32 %v829, 7
    %v831 = vsub.s32 %v828, %v830
    %v832 = vrot.slane %v825, %v831
    %v833 = vcombine.low %v812, %v819
    %v835 = vunpack.c.l.s4 1983009808
    %v836 = vunpack.c.0.s8 %v835
    %v837 = vlaneseq
    %v838 = vshrl.u32 %v837, 7
    %v839 = vsub.s32 %v836, %v838
    %v840 = vrot.slane %v833, %v839
    %v841 = vsel %vm475, %v832, %v832
    %v842 = vsel %vm477, %v832, %v841
    %v843 = vrot.slane %v840, 7
    %v844 = vsel %vm480, %v843, %v842
    %v845 = vsel %vm482, %v843, %v844
    %v846 = vsel %vm484, %v843, %v845
    %v847 = vsel %vm486, %v843, %v846
    %v849 = vmax.f32 %v820, %v847
    %850 = vst [vmem:[#allocation2 + $0x8] sm:$0xf] %v849
    %v851 = vld [vmem:[#allocation9 + $0x30] sm:$0xff]
    %v852 = vld [vmem:[#allocation9 + $0x38] sm:$0xff]
    %v853 = vld [vmem:[#allocation9 + $0x70] sm:$0xff]
    %v854 = vld [vmem:[#allocation9 + $0x78] sm:$0xff]
    %v855 = vld [vmem:[#allocation9 + $0xb0] sm:$0xff]
    %v856 = vld [vmem:[#allocation9 + $0xb8] sm:$0xff]
    %v857 = vld [vmem:[#allocation9 + $0xf0] sm:$0xff]
    %v858 = vld [vmem:[#allocation9 + $0xf8] sm:$0xff]
    %v859 = vld [vmem:[#allocation9 + $0x130] sm:$0xff]
    %v860 = vld [vmem:[#allocation9 + $0x138] sm:$0xff]
    %v861 = vld [vmem:[#allocation9 + $0x170] sm:$0xff]
    %v862 = vld [vmem:[#allocation9 + $0x178] sm:$0xff]
    %v863 = vld [vmem:[#allocation9 + $0x1b0] sm:$0xff]
    %v864 = vld [vmem:[#allocation9 + $0x1b8] sm:$0xff]
    %v865 = vld [vmem:[#allocation9 + $0x1f0] sm:$0xff]
    %v866 = vld [vmem:[#allocation9 + $0x1f8] sm:$0xff]
    %v867 = vld [vmem:[#allocation9 + $0x230] sm:$0xff]
    %v868 = vld [vmem:[#allocation9 + $0x238] sm:$0xff]
    %v869 = vld [vmem:[#allocation9 + $0x270] sm:$0xff]
    %v870 = vld [vmem:[#allocation9 + $0x278] sm:$0xff]
    %v871 = vld [vmem:[#allocation9 + $0x2b0] sm:$0xff]
    %v872 = vld [vmem:[#allocation9 + $0x2b8] sm:$0xff]
    %v873 = vld [vmem:[#allocation9 + $0x2f0] sm:$0xff]
    %v874 = vld [vmem:[#allocation9 + $0x2f8] sm:$0xff]
    %v875 = vld [vmem:[#allocation9 + $0x330] sm:$0xff]
    %v876 = vld [vmem:[#allocation9 + $0x338] sm:$0xff]
    %v877 = vld [vmem:[#allocation9 + $0x370] sm:$0xff]
    %v878 = vld [vmem:[#allocation9 + $0x378] sm:$0xff]
    %v879 = vld [vmem:[#allocation9 + $0x3b0] sm:$0xff]
    %v880 = vld [vmem:[#allocation9 + $0x3b8] sm:$0xff]
    %v881 = vld [vmem:[#allocation9 + $0x3f0] sm:$0xff]
    %v882 = vld [vmem:[#allocation9 + $0x3f8] sm:$0xff]
    %883 = vmatprep.subr.mxu0 %v882
    %884 = vmatpush1.msra.mxu0 %v881
    %885 = vmatprep.subr.mxu0 %v880
    %886 = vmatpush1.msra.mxu0 %v879
    %887 = vmatprep.subr.mxu0 %v878
    %888 = vmatpush1.msra.mxu0 %v877
    %889 = vmatprep.subr.mxu0 %v876
    %890 = vmatpush1.msra.mxu0 %v875
    %891 = vmatprep.subr.mxu0 %v874
    %892 = vmatpush1.msra.mxu0 %v873
    %893 = vmatprep.subr.mxu0 %v872
    %894 = vmatpush1.msra.mxu0 %v871
    %895 = vmatprep.subr.mxu0 %v870
    %896 = vmatpush1.msra.mxu0 %v869
    %897 = vmatprep.subr.mxu0 %v868
    %898 = vmatpush1.msra.mxu0 %v867
    %899 = vmatprep.subr.mxu0 %v866
    %900 = vmatpush1.msra.mxu0 %v865
    %901 = vmatprep.subr.mxu0 %v864
    %902 = vmatpush1.msra.mxu0 %v863
    %903 = vmatprep.subr.mxu0 %v862
    %904 = vmatpush1.msra.mxu0 %v861
    %905 = vmatprep.subr.mxu0 %v860
    %906 = vmatpush1.msra.mxu0 %v859
    %907 = vmatprep.subr.mxu0 %v858
    %908 = vmatpush1.msra.mxu0 %v857
    %909 = vmatprep.subr.mxu0 %v856
    %910 = vmatpush1.msra.mxu0 %v855
    %911 = vmatprep.subr.mxu0 %v854
    %912 = vmatpush1.msra.mxu0 %v853
    %913 = vmatprep.subr.mxu0 %v852
    %914 = vmatpush1.msra.mxu0 %v851
    %915 = vmatprep.subr.mxu0 0.0
    %916 = vmatpush2.msra.mxu0 0.0
    %917 = vmatprep.subr.mxu0 0.0
    %918 = vmatpush2.msra.mxu0 0.0
    %919 = vmatprep.subr.mxu0 0.0
    %920 = vmatpush2.msra.mxu0 0.0
    %921 = vmatprep.subr.mxu0 0.0
    %922 = vmatpush2.msra.mxu0 0.0
    %923 = vmatprep.subr.mxu0 0.0
    %924 = vmatpush2.msra.mxu0 0.0
    %925 = vmatprep.subr.mxu0 0.0
    %926 = vmatpush2.msra.mxu0 0.0
    %927 = vmatprep.subr.mxu0 0.0
    %928 = vmatpush2.msra.mxu0 0.0
    %929 = vmatprep.subr.mxu0 0.0
    %930 = vmatpush2.msra.mxu0 0.0
    %931 = vmatprep.subr.mxu0 0.0
    %932 = vmatpush2.msra.mxu0 0.0
    %933 = vmatprep.subr.mxu0 0.0
    %934 = vmatpush2.msra.mxu0 0.0
    %935 = vmatprep.subr.mxu0 0.0
    %936 = vmatpush2.msra.mxu0 0.0
    %937 = vmatprep.subr.mxu0 0.0
    %938 = vmatpush2.msra.mxu0 0.0
    %939 = vmatprep.subr.mxu0 0.0
    %940 = vmatpush2.msra.mxu0 0.0
    %941 = vmatprep.subr.mxu0 0.0
    %942 = vmatpush2.msra.mxu0 0.0
    %943 = vmatprep.subr.mxu0 0.0
    %944 = vmatpush2.msra.mxu0 0.0
    %945 = vmatprep.subr.mxu0 0.0
    %946 = vmatpush2.msra.mxu0 0.0
    %947 = vmatprep.mubr.f32.mxu0 0.0
    %948 = vmatmul.mubr.f32.gmra.mxu0 %v301
    %v949 = vpop.f32.mrf.mxu0
    %v950 = vadd.f32 0.0, %v949
    %v951 = vpop.f32.mrf.mxu0
    %v952 = vadd.f32 0.0, %v951
    %953 = vmatprep.mubr.f32.mxu0 0.0
    %954 = vmatmul.mubr.f32.gmra.mxu0 %v302
    %v955 = vpop.f32.mrf.mxu0
    %v956 = vadd.f32 0.0, %v955
    %v957 = vpop.f32.mrf.mxu0
    %v958 = vadd.f32 0.0, %v957
    %959 = vmatprep.mubr.f32.mxu0 0.0
    %960 = vmatmul.mubr.f32.gmra.mxu0 %v303
    %v961 = vpop.f32.mrf.mxu0
    %v962 = vadd.f32 0.0, %v961
    %v963 = vpop.f32.mrf.mxu0
    %v964 = vadd.f32 0.0, %v963
    %965 = vmatprep.mubr.f32.mxu0 0.0
    %966 = vmatmul.mubr.f32.gmra.mxu0 %v304
    %v967 = vpop.f32.mrf.mxu0
    %v968 = vadd.f32 0.0, %v967
    %v969 = vpop.f32.mrf.mxu0
    %v970 = vadd.f32 0.0, %v969
    %971 = vdwg.mxu0
    %v972 = vmax.f32 %v950, %v956
    %v973 = vrot.slane %v972, 4
    %v974 = vmax.f32 %v972, %v973
    %v975 = vrot.slane %v974, 2
    %v976 = vmax.f32 %v974, %v975
    %v977 = vrot.slane %v976, 1
    %v978 = vmax.f32 %v976, %v977
    %v979 = vmax.f32 %v952, %v958
    %v980 = vrot.slane %v979, 4
    %v981 = vmax.f32 %v979, %v980
    %v982 = vrot.slane %v981, 2
    %v983 = vmax.f32 %v981, %v982
    %v984 = vrot.slane %v983, 1
    %v985 = vmax.f32 %v983, %v984
    %v986 = vmax.f32 %v962, %v968
    %v987 = vrot.slane %v986, 4
    %v988 = vmax.f32 %v986, %v987
    %v989 = vrot.slane %v988, 2
    %v990 = vmax.f32 %v988, %v989
    %v991 = vrot.slane %v990, 1
    %v992 = vmax.f32 %v990, %v991
    %v993 = vmax.f32 %v964, %v970
    %v994 = vrot.slane %v993, 4
    %v995 = vmax.f32 %v993, %v994
    %v996 = vrot.slane %v995, 2
    %v997 = vmax.f32 %v995, %v996
    %v998 = vrot.slane %v997, 1
    %v999 = vmax.f32 %v997, %v998
    %v1000 = vld [vmem:[#allocation2 + $0xc] sm:$0xf]
    %v1005 = vcombine.low %v978, %v985
    %v1007 = vunpack.c.l.s4 1983009808
    %v1008 = vunpack.c.0.s8 %v1007
    %v1009 = vlaneseq
    %v1010 = vshrl.u32 %v1009, 7
    %v1011 = vsub.s32 %v1008, %v1010
    %v1012 = vrot.slane %v1005, %v1011
    %v1013 = vcombine.low %v992, %v999
    %v1015 = vunpack.c.l.s4 1983009808
    %v1016 = vunpack.c.0.s8 %v1015
    %v1017 = vlaneseq
    %v1018 = vshrl.u32 %v1017, 7
    %v1019 = vsub.s32 %v1016, %v1018
    %v1020 = vrot.slane %v1013, %v1019
    %v1021 = vsel %vm475, %v1012, %v1012
    %v1022 = vsel %vm477, %v1012, %v1021
    %v1023 = vrot.slane %v1020, 7
    %v1024 = vsel %vm480, %v1023, %v1022
    %v1025 = vsel %vm482, %v1023, %v1024
    %v1026 = vsel %vm484, %v1023, %v1025
    %v1027 = vsel %vm486, %v1023, %v1026
    %v1029 = vmax.f32 %v1000, %v1027
    %1030 = vst [vmem:[#allocation2 + $0xc] sm:$0xf] %v1029
    // Predicated region
    $region94: #{tpu_custom_call.1} parent=1 // pred_check
      %p1031 = pneg %p178
    $region95: #{tpu_custom_call.1} parent=1 // pred_check_branch
      %1033 = sbr.rel (%p1031) target = $region97
    $region96: #{tpu_custom_call.1} parent=1 // pred_region
      %v1034 = vld [vmem:[#allocation2] sm:$0xff]
      %v1035 = vld [vmem:[#allocation2 + $0x8] sm:$0xff]
      %v1036 = vld [vmem:[#allocation11] sm:$0xff]
      %v1038 = vlaneseq
      %v1039 = vshrl.u32 %v1038, 7
      %v1040 = vsub.s32 0, %v1039
      %v1041 = vrot.slane %v1036, %v1040
      %v1042 = vlaneseq
      %v1043 = vshrl.u32 %v1042, 7
      %v1044 = vsub.s32 1, %v1043
      %v1045 = vrot.slane %v1036, %v1044
      %v1046 = vlaneseq
      %v1047 = vshrl.u32 %v1046, 7
      %v1048 = vsub.s32 2, %v1047
      %v1049 = vrot.slane %v1036, %v1048
      %v1050 = vlaneseq
      %v1051 = vshrl.u32 %v1050, 7
      %v1052 = vsub.s32 3, %v1051
      %v1053 = vrot.slane %v1036, %v1052
      %v1054 = vlaneseq
      %v1055 = vshrl.u32 %v1054, 7
      %v1056 = vsub.s32 4, %v1055
      %v1057 = vrot.slane %v1036, %v1056
      %v1058 = vlaneseq
      %v1059 = vshrl.u32 %v1058, 7
      %v1060 = vsub.s32 5, %v1059
      %v1061 = vrot.slane %v1036, %v1060
      %v1062 = vlaneseq
      %v1063 = vshrl.u32 %v1062, 7
      %v1064 = vsub.s32 6, %v1063
      %v1065 = vrot.slane %v1036, %v1064
      %v1066 = vlaneseq
      %v1067 = vshrl.u32 %v1066, 7
      %v1068 = vsub.s32 7, %v1067
      %v1069 = vrot.slane %v1036, %v1068
      %v1070 = vcombine.low %v1041, %v1045
      %v1071 = vcombine.low %v1049, %v1053
      %v1073 = vunpack.c.l.s4 1983009808
      %v1074 = vunpack.c.0.s8 %v1073
      %v1075 = vlaneseq
      %v1076 = vshrl.u32 %v1075, 7
      %v1077 = vsub.s32 %v1074, %v1076
      %v1078 = vrot.slane %v1070, %v1077
      %v1080 = vunpack.c.l.s4 1983009808
      %v1081 = vunpack.c.0.s8 %v1080
      %v1082 = vlaneseq
      %v1083 = vshrl.u32 %v1082, 7
      %v1084 = vsub.s32 %v1081, %v1083
      %v1085 = vrot.slane %v1071, %v1084
      %v1086 = vcombine.low %v1078, %v1085
      %v1087 = vcombine.low %v1057, %v1061
      %v1088 = vcombine.low %v1065, %v1069
      %v1090 = vunpack.c.l.s4 1983009808
      %v1091 = vunpack.c.0.s8 %v1090
      %v1092 = vlaneseq
      %v1093 = vshrl.u32 %v1092, 7
      %v1094 = vsub.s32 %v1091, %v1093
      %v1095 = vrot.slane %v1087, %v1094
      %v1097 = vunpack.c.l.s4 1983009808
      %v1098 = vunpack.c.0.s8 %v1097
      %v1099 = vlaneseq
      %v1100 = vshrl.u32 %v1099, 7
      %v1101 = vsub.s32 %v1098, %v1100
      %v1102 = vrot.slane %v1088, %v1101
      %v1103 = vcombine.low %v1095, %v1102
      %v1106 = vadd.f32 %v1034, %v1086
      %v1107 = vadd.f32 %v1035, %v1103
      %v1108 = vmax.f32 %v1106, 0.0
      %v1109 = vmax.f32 %v1107, 0.0
      %v1110 = vld [vmem:[#allocation12] sm:$0xff]
      %v1111 = vld [vmem:[#allocation12 + $0x8] sm:$0xff]
      %v1112 = vld [vmem:[#allocation12 + $0x10] sm:$0xff]
      %v1113 = vld [vmem:[#allocation12 + $0x18] sm:$0xff]
      %v1114 = vld [vmem:[#allocation12 + $0x20] sm:$0xff]
      %v1115 = vld [vmem:[#allocation12 + $0x28] sm:$0xff]
      %v1116 = vld [vmem:[#allocation12 + $0x30] sm:$0xff]
      %v1117 = vld [vmem:[#allocation12 + $0x38] sm:$0xff]
      %v1118 = vld [vmem:[#allocation12 + $0x40] sm:$0xff]
      %v1119 = vld [vmem:[#allocation12 + $0x48] sm:$0xff]
      %v1120 = vld [vmem:[#allocation12 + $0x50] sm:$0xff]
      %v1121 = vld [vmem:[#allocation12 + $0x58] sm:$0xff]
      %v1122 = vld [vmem:[#allocation12 + $0x60] sm:$0xff]
      %v1123 = vld [vmem:[#allocation12 + $0x68] sm:$0xff]
      %v1124 = vld [vmem:[#allocation12 + $0x70] sm:$0xff]
      %v1125 = vld [vmem:[#allocation12 + $0x78] sm:$0xff]
      %v1126 = vld [vmem:[#allocation12 + $0x80] sm:$0xff]
      %v1127 = vld [vmem:[#allocation12 + $0x88] sm:$0xff]
      %v1128 = vld [vmem:[#allocation12 + $0x90] sm:$0xff]
      %v1129 = vld [vmem:[#allocation12 + $0x98] sm:$0xff]
      %v1130 = vld [vmem:[#allocation12 + $0xa0] sm:$0xff]
      %v1131 = vld [vmem:[#allocation12 + $0xa8] sm:$0xff]
      %v1132 = vld [vmem:[#allocation12 + $0xb0] sm:$0xff]
      %v1133 = vld [vmem:[#allocation12 + $0xb8] sm:$0xff]
      %v1134 = vld [vmem:[#allocation12 + $0xc0] sm:$0xff]
      %v1135 = vld [vmem:[#allocation12 + $0xc8] sm:$0xff]
      %v1136 = vld [vmem:[#allocation12 + $0xd0] sm:$0xff]
      %v1137 = vld [vmem:[#allocation12 + $0xd8] sm:$0xff]
      %v1138 = vld [vmem:[#allocation12 + $0xe0] sm:$0xff]
      %v1139 = vld [vmem:[#allocation12 + $0xe8] sm:$0xff]
      %v1140 = vld [vmem:[#allocation12 + $0xf0] sm:$0xff]
      %v1141 = vld [vmem:[#allocation12 + $0xf8] sm:$0xff]
      %v1142 = vld [vmem:[#allocation12 + $0x100] sm:$0xff]
      %v1143 = vld [vmem:[#allocation12 + $0x108] sm:$0xff]
      %v1144 = vld [vmem:[#allocation12 + $0x110] sm:$0xff]
      %v1145 = vld [vmem:[#allocation12 + $0x118] sm:$0xff]
      %v1146 = vld [vmem:[#allocation12 + $0x120] sm:$0xff]
      %v1147 = vld [vmem:[#allocation12 + $0x128] sm:$0xff]
      %v1148 = vld [vmem:[#allocation12 + $0x130] sm:$0xff]
      %v1149 = vld [vmem:[#allocation12 + $0x138] sm:$0xff]
      %v1150 = vld [vmem:[#allocation12 + $0x140] sm:$0xff]
      %v1151 = vld [vmem:[#allocation12 + $0x148] sm:$0xff]
      %v1152 = vld [vmem:[#allocation12 + $0x150] sm:$0xff]
      %v1153 = vld [vmem:[#allocation12 + $0x158] sm:$0xff]
      %v1154 = vld [vmem:[#allocation12 + $0x160] sm:$0xff]
      %v1155 = vld [vmem:[#allocation12 + $0x168] sm:$0xff]
      %v1156 = vld [vmem:[#allocation12 + $0x170] sm:$0xff]
      %v1157 = vld [vmem:[#allocation12 + $0x178] sm:$0xff]
      %v1158 = vld [vmem:[#allocation12 + $0x180] sm:$0xff]
      %v1159 = vld [vmem:[#allocation12 + $0x188] sm:$0xff]
      %v1160 = vld [vmem:[#allocation12 + $0x190] sm:$0xff]
      %v1161 = vld [vmem:[#allocation12 + $0x198] sm:$0xff]
      %v1162 = vld [vmem:[#allocation12 + $0x1a0] sm:$0xff]
      %v1163 = vld [vmem:[#allocation12 + $0x1a8] sm:$0xff]
      %v1164 = vld [vmem:[#allocation12 + $0x1b0] sm:$0xff]
      %v1165 = vld [vmem:[#allocation12 + $0x1b8] sm:$0xff]
      %v1166 = vld [vmem:[#allocation12 + $0x1c0] sm:$0xff]
      %v1167 = vld [vmem:[#allocation12 + $0x1c8] sm:$0xff]
      %v1168 = vld [vmem:[#allocation12 + $0x1d0] sm:$0xff]
      %v1169 = vld [vmem:[#allocation12 + $0x1d8] sm:$0xff]
      %v1170 = vld [vmem:[#allocation12 + $0x1e0] sm:$0xff]
      %v1171 = vld [vmem:[#allocation12 + $0x1e8] sm:$0xff]
      %v1172 = vld [vmem:[#allocation12 + $0x1f0] sm:$0xff]
      %v1173 = vld [vmem:[#allocation12 + $0x1f8] sm:$0xff]
      %v1174 = vld [vmem:[#allocation12 + $0x200] sm:$0xff]
      %v1175 = vld [vmem:[#allocation12 + $0x208] sm:$0xff]
      %v1176 = vld [vmem:[#allocation12 + $0x210] sm:$0xff]
      %v1177 = vld [vmem:[#allocation12 + $0x218] sm:$0xff]
      %v1178 = vld [vmem:[#allocation12 + $0x220] sm:$0xff]
      %v1179 = vld [vmem:[#allocation12 + $0x228] sm:$0xff]
      %v1180 = vld [vmem:[#allocation12 + $0x230] sm:$0xff]
      %v1181 = vld [vmem:[#allocation12 + $0x238] sm:$0xff]
      %v1182 = vld [vmem:[#allocation12 + $0x240] sm:$0xff]
      %v1183 = vld [vmem:[#allocation12 + $0x248] sm:$0xff]
      %v1184 = vld [vmem:[#allocation12 + $0x250] sm:$0xff]
      %v1185 = vld [vmem:[#allocation12 + $0x258] sm:$0xff]
      %v1186 = vld [vmem:[#allocation12 + $0x260] sm:$0xff]
      %v1187 = vld [vmem:[#allocation12 + $0x268] sm:$0xff]
      %v1188 = vld [vmem:[#allocation12 + $0x270] sm:$0xff]
      %v1189 = vld [vmem:[#allocation12 + $0x278] sm:$0xff]
      %v1190 = vld [vmem:[#allocation12 + $0x280] sm:$0xff]
      %v1191 = vld [vmem:[#allocation12 + $0x288] sm:$0xff]
      %v1192 = vld [vmem:[#allocation12 + $0x290] sm:$0xff]
      %v1193 = vld [vmem:[#allocation12 + $0x298] sm:$0xff]
      %v1194 = vld [vmem:[#allocation12 + $0x2a0] sm:$0xff]
      %v1195 = vld [vmem:[#allocation12 + $0x2a8] sm:$0xff]
      %v1196 = vld [vmem:[#allocation12 + $0x2b0] sm:$0xff]
      %v1197 = vld [vmem:[#allocation12 + $0x2b8] sm:$0xff]
      %v1198 = vld [vmem:[#allocation12 + $0x2c0] sm:$0xff]
      %v1199 = vld [vmem:[#allocation12 + $0x2c8] sm:$0xff]
      %v1200 = vld [vmem:[#allocation12 + $0x2d0] sm:$0xff]
      %v1201 = vld [vmem:[#allocation12 + $0x2d8] sm:$0xff]
      %v1202 = vld [vmem:[#allocation12 + $0x2e0] sm:$0xff]
      %v1203 = vld [vmem:[#allocation12 + $0x2e8] sm:$0xff]
      %v1204 = vld [vmem:[#allocation12 + $0x2f0] sm:$0xff]
      %v1205 = vld [vmem:[#allocation12 + $0x2f8] sm:$0xff]
      %v1206 = vld [vmem:[#allocation12 + $0x300] sm:$0xff]
      %v1207 = vld [vmem:[#allocation12 + $0x308] sm:$0xff]
      %v1208 = vld [vmem:[#allocation12 + $0x310] sm:$0xff]
      %v1209 = vld [vmem:[#allocation12 + $0x318] sm:$0xff]
      %v1210 = vld [vmem:[#allocation12 + $0x320] sm:$0xff]
      %v1211 = vld [vmem:[#allocation12 + $0x328] sm:$0xff]
      %v1212 = vld [vmem:[#allocation12 + $0x330] sm:$0xff]
      %v1213 = vld [vmem:[#allocation12 + $0x338] sm:$0xff]
      %v1214 = vld [vmem:[#allocation12 + $0x340] sm:$0xff]
      %v1215 = vld [vmem:[#allocation12 + $0x348] sm:$0xff]
      %v1216 = vld [vmem:[#allocation12 + $0x350] sm:$0xff]
      %v1217 = vld [vmem:[#allocation12 + $0x358] sm:$0xff]
      %v1218 = vld [vmem:[#allocation12 + $0x360] sm:$0xff]
      %v1219 = vld [vmem:[#allocation12 + $0x368] sm:$0xff]
      %v1220 = vld [vmem:[#allocation12 + $0x370] sm:$0xff]
      %v1221 = vld [vmem:[#allocation12 + $0x378] sm:$0xff]
      %v1222 = vld [vmem:[#allocation12 + $0x380] sm:$0xff]
      %v1223 = vld [vmem:[#allocation12 + $0x388] sm:$0xff]
      %v1224 = vld [vmem:[#allocation12 + $0x390] sm:$0xff]
      %v1225 = vld [vmem:[#allocation12 + $0x398] sm:$0xff]
      %v1226 = vld [vmem:[#allocation12 + $0x3a0] sm:$0xff]
      %v1227 = vld [vmem:[#allocation12 + $0x3a8] sm:$0xff]
      %v1228 = vld [vmem:[#allocation12 + $0x3b0] sm:$0xff]
      %v1229 = vld [vmem:[#allocation12 + $0x3b8] sm:$0xff]
      %v1230 = vld [vmem:[#allocation12 + $0x3c0] sm:$0xff]
      %v1231 = vld [vmem:[#allocation12 + $0x3c8] sm:$0xff]
      %v1232 = vld [vmem:[#allocation12 + $0x3d0] sm:$0xff]
      %v1233 = vld [vmem:[#allocation12 + $0x3d8] sm:$0xff]
      %v1234 = vld [vmem:[#allocation12 + $0x3e0] sm:$0xff]
      %v1235 = vld [vmem:[#allocation12 + $0x3e8] sm:$0xff]
      %v1236 = vld [vmem:[#allocation12 + $0x3f0] sm:$0xff]
      %v1237 = vld [vmem:[#allocation12 + $0x3f8] sm:$0xff]
      %v1238 = vld [vmem:[#allocation12 + $0x400] sm:$0xff]
      %v1239 = vld [vmem:[#allocation12 + $0x408] sm:$0xff]
      %v1240 = vld [vmem:[#allocation12 + $0x410] sm:$0xff]
      %v1241 = vld [vmem:[#allocation12 + $0x418] sm:$0xff]
      %v1242 = vld [vmem:[#allocation12 + $0x420] sm:$0xff]
      %v1243 = vld [vmem:[#allocation12 + $0x428] sm:$0xff]
      %v1244 = vld [vmem:[#allocation12 + $0x430] sm:$0xff]
      %v1245 = vld [vmem:[#allocation12 + $0x438] sm:$0xff]
      %v1246 = vld [vmem:[#allocation12 + $0x440] sm:$0xff]
      %v1247 = vld [vmem:[#allocation12 + $0x448] sm:$0xff]
      %v1248 = vld [vmem:[#allocation12 + $0x450] sm:$0xff]
      %v1249 = vld [vmem:[#allocation12 + $0x458] sm:$0xff]
      %v1250 = vld [vmem:[#allocation12 + $0x460] sm:$0xff]
      %v1251 = vld [vmem:[#allocation12 + $0x468] sm:$0xff]
      %v1252 = vld [vmem:[#allocation12 + $0x470] sm:$0xff]
      %v1253 = vld [vmem:[#allocation12 + $0x478] sm:$0xff]
      %v1254 = vld [vmem:[#allocation12 + $0x480] sm:$0xff]
      %v1255 = vld [vmem:[#allocation12 + $0x488] sm:$0xff]
      %v1256 = vld [vmem:[#allocation12 + $0x490] sm:$0xff]
      %v1257 = vld [vmem:[#allocation12 + $0x498] sm:$0xff]
      %v1258 = vld [vmem:[#allocation12 + $0x4a0] sm:$0xff]
      %v1259 = vld [vmem:[#allocation12 + $0x4a8] sm:$0xff]
      %v1260 = vld [vmem:[#allocation12 + $0x4b0] sm:$0xff]
      %v1261 = vld [vmem:[#allocation12 + $0x4b8] sm:$0xff]
      %v1262 = vld [vmem:[#allocation12 + $0x4c0] sm:$0xff]
      %v1263 = vld [vmem:[#allocation12 + $0x4c8] sm:$0xff]
      %v1264 = vld [vmem:[#allocation12 + $0x4d0] sm:$0xff]
      %v1265 = vld [vmem:[#allocation12 + $0x4d8] sm:$0xff]
      %v1266 = vld [vmem:[#allocation12 + $0x4e0] sm:$0xff]
      %v1267 = vld [vmem:[#allocation12 + $0x4e8] sm:$0xff]
      %v1268 = vld [vmem:[#allocation12 + $0x4f0] sm:$0xff]
      %v1269 = vld [vmem:[#allocation12 + $0x4f8] sm:$0xff]
      %v1270 = vld [vmem:[#allocation12 + $0x500] sm:$0xff]
      %v1271 = vld [vmem:[#allocation12 + $0x508] sm:$0xff]
      %v1272 = vld [vmem:[#allocation12 + $0x510] sm:$0xff]
      %v1273 = vld [vmem:[#allocation12 + $0x518] sm:$0xff]
      %v1274 = vld [vmem:[#allocation12 + $0x520] sm:$0xff]
      %v1275 = vld [vmem:[#allocation12 + $0x528] sm:$0xff]
      %v1276 = vld [vmem:[#allocation12 + $0x530] sm:$0xff]
      %v1277 = vld [vmem:[#allocation12 + $0x538] sm:$0xff]
      %v1278 = vld [vmem:[#allocation12 + $0x540] sm:$0xff]
      %v1279 = vld [vmem:[#allocation12 + $0x548] sm:$0xff]
      %v1280 = vld [vmem:[#allocation12 + $0x550] sm:$0xff]
      %v1281 = vld [vmem:[#allocation12 + $0x558] sm:$0xff]
      %v1282 = vld [vmem:[#allocation12 + $0x560] sm:$0xff]
      %v1283 = vld [vmem:[#allocation12 + $0x568] sm:$0xff]
      %v1284 = vld [vmem:[#allocation12 + $0x570] sm:$0xff]
      %v1285 = vld [vmem:[#allocation12 + $0x578] sm:$0xff]
      %v1286 = vld [vmem:[#allocation12 + $0x580] sm:$0xff]
      %v1287 = vld [vmem:[#allocation12 + $0x588] sm:$0xff]
      %v1288 = vld [vmem:[#allocation12 + $0x590] sm:$0xff]
      %v1289 = vld [vmem:[#allocation12 + $0x598] sm:$0xff]
      %v1290 = vld [vmem:[#allocation12 + $0x5a0] sm:$0xff]
      %v1291 = vld [vmem:[#allocation12 + $0x5a8] sm:$0xff]
      %v1292 = vld [vmem:[#allocation12 + $0x5b0] sm:$0xff]
      %v1293 = vld [vmem:[#allocation12 + $0x5b8] sm:$0xff]
      %v1294 = vld [vmem:[#allocation12 + $0x5c0] sm:$0xff]
      %v1295 = vld [vmem:[#allocation12 + $0x5c8] sm:$0xff]
      %v1296 = vld [vmem:[#allocation12 + $0x5d0] sm:$0xff]
      %v1297 = vld [vmem:[#allocation12 + $0x5d8] sm:$0xff]
      %v1298 = vld [vmem:[#allocation12 + $0x5e0] sm:$0xff]
      %v1299 = vld [vmem:[#allocation12 + $0x5e8] sm:$0xff]
      %v1300 = vld [vmem:[#allocation12 + $0x5f0] sm:$0xff]
      %v1301 = vld [vmem:[#allocation12 + $0x5f8] sm:$0xff]
      %v1302 = vld [vmem:[#allocation12 + $0x600] sm:$0xff]
      %v1303 = vld [vmem:[#allocation12 + $0x608] sm:$0xff]
      %v1304 = vld [vmem:[#allocation12 + $0x610] sm:$0xff]
      %v1305 = vld [vmem:[#allocation12 + $0x618] sm:$0xff]
      %v1306 = vld [vmem:[#allocation12 + $0x620] sm:$0xff]
      %v1307 = vld [vmem:[#allocation12 + $0x628] sm:$0xff]
      %v1308 = vld [vmem:[#allocation12 + $0x630] sm:$0xff]
      %v1309 = vld [vmem:[#allocation12 + $0x638] sm:$0xff]
      %v1310 = vld [vmem:[#allocation12 + $0x640] sm:$0xff]
      %v1311 = vld [vmem:[#allocation12 + $0x648] sm:$0xff]
      %v1312 = vld [vmem:[#allocation12 + $0x650] sm:$0xff]
      %v1313 = vld [vmem:[#allocation12 + $0x658] sm:$0xff]
      %v1314 = vld [vmem:[#allocation12 + $0x660] sm:$0xff]
      %v1315 = vld [vmem:[#allocation12 + $0x668] sm:$0xff]
      %v1316 = vld [vmem:[#allocation12 + $0x670] sm:$0xff]
      %v1317 = vld [vmem:[#allocation12 + $0x678] sm:$0xff]
      %v1318 = vld [vmem:[#allocation12 + $0x680] sm:$0xff]
      %v1319 = vld [vmem:[#allocation12 + $0x688] sm:$0xff]
      %v1320 = vld [vmem:[#allocation12 + $0x690] sm:$0xff]
      %v1321 = vld [vmem:[#allocation12 + $0x698] sm:$0xff]
      %v1322 = vld [vmem:[#allocation12 + $0x6a0] sm:$0xff]
      %v1323 = vld [vmem:[#allocation12 + $0x6a8] sm:$0xff]
      %v1324 = vld [vmem:[#allocation12 + $0x6b0] sm:$0xff]
      %v1325 = vld [vmem:[#allocation12 + $0x6b8] sm:$0xff]
      %v1326 = vld [vmem:[#allocation12 + $0x6c0] sm:$0xff]
      %v1327 = vld [vmem:[#allocation12 + $0x6c8] sm:$0xff]
      %v1328 = vld [vmem:[#allocation12 + $0x6d0] sm:$0xff]
      %v1329 = vld [vmem:[#allocation12 + $0x6d8] sm:$0xff]
      %v1330 = vld [vmem:[#allocation12 + $0x6e0] sm:$0xff]
      %v1331 = vld [vmem:[#allocation12 + $0x6e8] sm:$0xff]
      %v1332 = vld [vmem:[#allocation12 + $0x6f0] sm:$0xff]
      %v1333 = vld [vmem:[#allocation12 + $0x6f8] sm:$0xff]
      %v1334 = vld [vmem:[#allocation12 + $0x700] sm:$0xff]
      %v1335 = vld [vmem:[#allocation12 + $0x708] sm:$0xff]
      %v1336 = vld [vmem:[#allocation12 + $0x710] sm:$0xff]
      %v1337 = vld [vmem:[#allocation12 + $0x718] sm:$0xff]
      %v1338 = vld [vmem:[#allocation12 + $0x720] sm:$0xff]
      %v1339 = vld [vmem:[#allocation12 + $0x728] sm:$0xff]
      %v1340 = vld [vmem:[#allocation12 + $0x730] sm:$0xff]
      %v1341 = vld [vmem:[#allocation12 + $0x738] sm:$0xff]
      %v1342 = vld [vmem:[#allocation12 + $0x740] sm:$0xff]
      %v1343 = vld [vmem:[#allocation12 + $0x748] sm:$0xff]
      %v1344 = vld [vmem:[#allocation12 + $0x750] sm:$0xff]
      %v1345 = vld [vmem:[#allocation12 + $0x758] sm:$0xff]
      %v1346 = vld [vmem:[#allocation12 + $0x760] sm:$0xff]
      %v1347 = vld [vmem:[#allocation12 + $0x768] sm:$0xff]
      %v1348 = vld [vmem:[#allocation12 + $0x770] sm:$0xff]
      %v1349 = vld [vmem:[#allocation12 + $0x778] sm:$0xff]
      %v1350 = vld [vmem:[#allocation12 + $0x780] sm:$0xff]
      %v1351 = vld [vmem:[#allocation12 + $0x788] sm:$0xff]
      %v1352 = vld [vmem:[#allocation12 + $0x790] sm:$0xff]
      %v1353 = vld [vmem:[#allocation12 + $0x798] sm:$0xff]
      %v1354 = vld [vmem:[#allocation12 + $0x7a0] sm:$0xff]
      %v1355 = vld [vmem:[#allocation12 + $0x7a8] sm:$0xff]
      %v1356 = vld [vmem:[#allocation12 + $0x7b0] sm:$0xff]
      %v1357 = vld [vmem:[#allocation12 + $0x7b8] sm:$0xff]
      %v1358 = vld [vmem:[#allocation12 + $0x7c0] sm:$0xff]
      %v1359 = vld [vmem:[#allocation12 + $0x7c8] sm:$0xff]
      %v1360 = vld [vmem:[#allocation12 + $0x7d0] sm:$0xff]
      %v1361 = vld [vmem:[#allocation12 + $0x7d8] sm:$0xff]
      %v1362 = vld [vmem:[#allocation12 + $0x7e0] sm:$0xff]
      %v1363 = vld [vmem:[#allocation12 + $0x7e8] sm:$0xff]
      %v1364 = vld [vmem:[#allocation12 + $0x7f0] sm:$0xff]
      %v1365 = vld [vmem:[#allocation12 + $0x7f8] sm:$0xff]
      %v1366 = vld [vmem:[#allocation12 + $0x800] sm:$0xff]
      %v1367 = vld [vmem:[#allocation12 + $0x808] sm:$0xff]
      %v1368 = vld [vmem:[#allocation12 + $0x810] sm:$0xff]
      %v1369 = vld [vmem:[#allocation12 + $0x818] sm:$0xff]
      %v1370 = vld [vmem:[#allocation12 + $0x820] sm:$0xff]
      %v1371 = vld [vmem:[#allocation12 + $0x828] sm:$0xff]
      %v1372 = vld [vmem:[#allocation12 + $0x830] sm:$0xff]
      %v1373 = vld [vmem:[#allocation12 + $0x838] sm:$0xff]
      %v1374 = vld [vmem:[#allocation12 + $0x840] sm:$0xff]
      %v1375 = vld [vmem:[#allocation12 + $0x848] sm:$0xff]
      %v1376 = vld [vmem:[#allocation12 + $0x850] sm:$0xff]
      %v1377 = vld [vmem:[#allocation12 + $0x858] sm:$0xff]
      %v1378 = vld [vmem:[#allocation12 + $0x860] sm:$0xff]
      %v1379 = vld [vmem:[#allocation12 + $0x868] sm:$0xff]
      %v1380 = vld [vmem:[#allocation12 + $0x870] sm:$0xff]
      %v1381 = vld [vmem:[#allocation12 + $0x878] sm:$0xff]
      %v1382 = vld [vmem:[#allocation12 + $0x880] sm:$0xff]
      %v1383 = vld [vmem:[#allocation12 + $0x888] sm:$0xff]
      %v1384 = vld [vmem:[#allocation12 + $0x890] sm:$0xff]
      %v1385 = vld [vmem:[#allocation12 + $0x898] sm:$0xff]
      %v1386 = vld [vmem:[#allocation12 + $0x8a0] sm:$0xff]
      %v1387 = vld [vmem:[#allocation12 + $0x8a8] sm:$0xff]
      %v1388 = vld [vmem:[#allocation12 + $0x8b0] sm:$0xff]
      %v1389 = vld [vmem:[#allocation12 + $0x8b8] sm:$0xff]
      %v1390 = vld [vmem:[#allocation12 + $0x8c0] sm:$0xff]
      %v1391 = vld [vmem:[#allocation12 + $0x8c8] sm:$0xff]
      %v1392 = vld [vmem:[#allocation12 + $0x8d0] sm:$0xff]
      %v1393 = vld [vmem:[#allocation12 + $0x8d8] sm:$0xff]
      %v1394 = vld [vmem:[#allocation12 + $0x8e0] sm:$0xff]
      %v1395 = vld [vmem:[#allocation12 + $0x8e8] sm:$0xff]
      %v1396 = vld [vmem:[#allocation12 + $0x8f0] sm:$0xff]
      %v1397 = vld [vmem:[#allocation12 + $0x8f8] sm:$0xff]
      %v1398 = vld [vmem:[#allocation12 + $0x900] sm:$0xff]
      %v1399 = vld [vmem:[#allocation12 + $0x908] sm:$0xff]
      %v1400 = vld [vmem:[#allocation12 + $0x910] sm:$0xff]
      %v1401 = vld [vmem:[#allocation12 + $0x918] sm:$0xff]
      %v1402 = vld [vmem:[#allocation12 + $0x920] sm:$0xff]
      %v1403 = vld [vmem:[#allocation12 + $0x928] sm:$0xff]
      %v1404 = vld [vmem:[#allocation12 + $0x930] sm:$0xff]
      %v1405 = vld [vmem:[#allocation12 + $0x938] sm:$0xff]
      %v1406 = vld [vmem:[#allocation12 + $0x940] sm:$0xff]
      %v1407 = vld [vmem:[#allocation12 + $0x948] sm:$0xff]
      %v1408 = vld [vmem:[#allocation12 + $0x950] sm:$0xff]
      %v1409 = vld [vmem:[#allocation12 + $0x958] sm:$0xff]
      %v1410 = vld [vmem:[#allocation12 + $0x960] sm:$0xff]
      %v1411 = vld [vmem:[#allocation12 + $0x968] sm:$0xff]
      %v1412 = vld [vmem:[#allocation12 + $0x970] sm:$0xff]
      %v1413 = vld [vmem:[#allocation12 + $0x978] sm:$0xff]
      %v1414 = vld [vmem:[#allocation12 + $0x980] sm:$0xff]
      %v1415 = vld [vmem:[#allocation12 + $0x988] sm:$0xff]
      %v1416 = vld [vmem:[#allocation12 + $0x990] sm:$0xff]
      %v1417 = vld [vmem:[#allocation12 + $0x998] sm:$0xff]
      %v1418 = vld [vmem:[#allocation12 + $0x9a0] sm:$0xff]
      %v1419 = vld [vmem:[#allocation12 + $0x9a8] sm:$0xff]
      %v1420 = vld [vmem:[#allocation12 + $0x9b0] sm:$0xff]
      %v1421 = vld [vmem:[#allocation12 + $0x9b8] sm:$0xff]
      %v1422 = vld [vmem:[#allocation12 + $0x9c0] sm:$0xff]
      %v1423 = vld [vmem:[#allocation12 + $0x9c8] sm:$0xff]
      %v1424 = vld [vmem:[#allocation12 + $0x9d0] sm:$0xff]
      %v1425 = vld [vmem:[#allocation12 + $0x9d8] sm:$0xff]
      %v1426 = vld [vmem:[#allocation12 + $0x9e0] sm:$0xff]
      %v1427 = vld [vmem:[#allocation12 + $0x9e8] sm:$0xff]
      %v1428 = vld [vmem:[#allocation12 + $0x9f0] sm:$0xff]
      %v1429 = vld [vmem:[#allocation12 + $0x9f8] sm:$0xff]
      %v1430 = vld [vmem:[#allocation12 + $0xa00] sm:$0xff]
      %v1431 = vld [vmem:[#allocation12 + $0xa08] sm:$0xff]
      %v1432 = vld [vmem:[#allocation12 + $0xa10] sm:$0xff]
      %v1433 = vld [vmem:[#allocation12 + $0xa18] sm:$0xff]
      %v1434 = vld [vmem:[#allocation12 + $0xa20] sm:$0xff]
      %v1435 = vld [vmem:[#allocation12 + $0xa28] sm:$0xff]
      %v1436 = vld [vmem:[#allocation12 + $0xa30] sm:$0xff]
      %v1437 = vld [vmem:[#allocation12 + $0xa38] sm:$0xff]
      %v1438 = vld [vmem:[#allocation12 + $0xa40] sm:$0xff]
      %v1439 = vld [vmem:[#allocation12 + $0xa48] sm:$0xff]
      %v1440 = vld [vmem:[#allocation12 + $0xa50] sm:$0xff]
      %v1441 = vld [vmem:[#allocation12 + $0xa58] sm:$0xff]
      %v1442 = vld [vmem:[#allocation12 + $0xa60] sm:$0xff]
      %v1443 = vld [vmem:[#allocation12 + $0xa68] sm:$0xff]
      %v1444 = vld [vmem:[#allocation12 + $0xa70] sm:$0xff]
      %v1445 = vld [vmem:[#allocation12 + $0xa78] sm:$0xff]
      %v1446 = vld [vmem:[#allocation12 + $0xa80] sm:$0xff]
      %v1447 = vld [vmem:[#allocation12 + $0xa88] sm:$0xff]
      %v1448 = vld [vmem:[#allocation12 + $0xa90] sm:$0xff]
      %v1449 = vld [vmem:[#allocation12 + $0xa98] sm:$0xff]
      %v1450 = vld [vmem:[#allocation12 + $0xaa0] sm:$0xff]
      %v1451 = vld [vmem:[#allocation12 + $0xaa8] sm:$0xff]
      %v1452 = vld [vmem:[#allocation12 + $0xab0] sm:$0xff]
      %v1453 = vld [vmem:[#allocation12 + $0xab8] sm:$0xff]
      %v1454 = vld [vmem:[#allocation12 + $0xac0] sm:$0xff]
      %v1455 = vld [vmem:[#allocation12 + $0xac8] sm:$0xff]
      %v1456 = vld [vmem:[#allocation12 + $0xad0] sm:$0xff]
      %v1457 = vld [vmem:[#allocation12 + $0xad8] sm:$0xff]
      %v1458 = vld [vmem:[#allocation12 + $0xae0] sm:$0xff]
      %v1459 = vld [vmem:[#allocation12 + $0xae8] sm:$0xff]
      %v1460 = vld [vmem:[#allocation12 + $0xaf0] sm:$0xff]
      %v1461 = vld [vmem:[#allocation12 + $0xaf8] sm:$0xff]
      %v1462 = vld [vmem:[#allocation12 + $0xb00] sm:$0xff]
      %v1463 = vld [vmem:[#allocation12 + $0xb08] sm:$0xff]
      %v1464 = vld [vmem:[#allocation12 + $0xb10] sm:$0xff]
      %v1465 = vld [vmem:[#allocation12 + $0xb18] sm:$0xff]
      %v1466 = vld [vmem:[#allocation12 + $0xb20] sm:$0xff]
      %v1467 = vld [vmem:[#allocation12 + $0xb28] sm:$0xff]
      %v1468 = vld [vmem:[#allocation12 + $0xb30] sm:$0xff]
      %v1469 = vld [vmem:[#allocation12 + $0xb38] sm:$0xff]
      %v1470 = vld [vmem:[#allocation12 + $0xb40] sm:$0xff]
      %v1471 = vld [vmem:[#allocation12 + $0xb48] sm:$0xff]
      %v1472 = vld [vmem:[#allocation12 + $0xb50] sm:$0xff]
      %v1473 = vld [vmem:[#allocation12 + $0xb58] sm:$0xff]
      %v1474 = vld [vmem:[#allocation12 + $0xb60] sm:$0xff]
      %v1475 = vld [vmem:[#allocation12 + $0xb68] sm:$0xff]
      %v1476 = vld [vmem:[#allocation12 + $0xb70] sm:$0xff]
      %v1477 = vld [vmem:[#allocation12 + $0xb78] sm:$0xff]
      %v1478 = vld [vmem:[#allocation12 + $0xb80] sm:$0xff]
      %v1479 = vld [vmem:[#allocation12 + $0xb88] sm:$0xff]
      %v1480 = vld [vmem:[#allocation12 + $0xb90] sm:$0xff]
      %v1481 = vld [vmem:[#allocation12 + $0xb98] sm:$0xff]
      %v1482 = vld [vmem:[#allocation12 + $0xba0] sm:$0xff]
      %v1483 = vld [vmem:[#allocation12 + $0xba8] sm:$0xff]
      %v1484 = vld [vmem:[#allocation12 + $0xbb0] sm:$0xff]
      %v1485 = vld [vmem:[#allocation12 + $0xbb8] sm:$0xff]
      %v1486 = vld [vmem:[#allocation12 + $0xbc0] sm:$0xff]
      %v1487 = vld [vmem:[#allocation12 + $0xbc8] sm:$0xff]
      %v1488 = vld [vmem:[#allocation12 + $0xbd0] sm:$0xff]
      %v1489 = vld [vmem:[#allocation12 + $0xbd8] sm:$0xff]
      %v1490 = vld [vmem:[#allocation12 + $0xbe0] sm:$0xff]
      %v1491 = vld [vmem:[#allocation12 + $0xbe8] sm:$0xff]
      %v1492 = vld [vmem:[#allocation12 + $0xbf0] sm:$0xff]
      %v1493 = vld [vmem:[#allocation12 + $0xbf8] sm:$0xff]
      %v1494 = vld [vmem:[#allocation12 + $0xc00] sm:$0xff]
      %v1495 = vld [vmem:[#allocation12 + $0xc08] sm:$0xff]
      %v1496 = vld [vmem:[#allocation12 + $0xc10] sm:$0xff]
      %v1497 = vld [vmem:[#allocation12 + $0xc18] sm:$0xff]
      %v1498 = vld [vmem:[#allocation12 + $0xc20] sm:$0xff]
      %v1499 = vld [vmem:[#allocation12 + $0xc28] sm:$0xff]
      %v1500 = vld [vmem:[#allocation12 + $0xc30] sm:$0xff]
      %v1501 = vld [vmem:[#allocation12 + $0xc38] sm:$0xff]
      %v1502 = vld [vmem:[#allocation12 + $0xc40] sm:$0xff]
      %v1503 = vld [vmem:[#allocation12 + $0xc48] sm:$0xff]
      %v1504 = vld [vmem:[#allocation12 + $0xc50] sm:$0xff]
      %v1505 = vld [vmem:[#allocation12 + $0xc58] sm:$0xff]
      %v1506 = vld [vmem:[#allocation12 + $0xc60] sm:$0xff]
      %v1507 = vld [vmem:[#allocation12 + $0xc68] sm:$0xff]
      %v1508 = vld [vmem:[#allocation12 + $0xc70] sm:$0xff]
      %v1509 = vld [vmem:[#allocation12 + $0xc78] sm:$0xff]
      %v1510 = vld [vmem:[#allocation12 + $0xc80] sm:$0xff]
      %v1511 = vld [vmem:[#allocation12 + $0xc88] sm:$0xff]
      %v1512 = vld [vmem:[#allocation12 + $0xc90] sm:$0xff]
      %v1513 = vld [vmem:[#allocation12 + $0xc98] sm:$0xff]
      %v1514 = vld [vmem:[#allocation12 + $0xca0] sm:$0xff]
      %v1515 = vld [vmem:[#allocation12 + $0xca8] sm:$0xff]
      %v1516 = vld [vmem:[#allocation12 + $0xcb0] sm:$0xff]
      %v1517 = vld [vmem:[#allocation12 + $0xcb8] sm:$0xff]
      %v1518 = vld [vmem:[#allocation12 + $0xcc0] sm:$0xff]
      %v1519 = vld [vmem:[#allocation12 + $0xcc8] sm:$0xff]
      %v1520 = vld [vmem:[#allocation12 + $0xcd0] sm:$0xff]
      %v1521 = vld [vmem:[#allocation12 + $0xcd8] sm:$0xff]
      %v1522 = vld [vmem:[#allocation12 + $0xce0] sm:$0xff]
      %v1523 = vld [vmem:[#allocation12 + $0xce8] sm:$0xff]
      %v1524 = vld [vmem:[#allocation12 + $0xcf0] sm:$0xff]
      %v1525 = vld [vmem:[#allocation12 + $0xcf8] sm:$0xff]
      %v1526 = vld [vmem:[#allocation12 + $0xd00] sm:$0xff]
      %v1527 = vld [vmem:[#allocation12 + $0xd08] sm:$0xff]
      %v1528 = vld [vmem:[#allocation12 + $0xd10] sm:$0xff]
      %v1529 = vld [vmem:[#allocation12 + $0xd18] sm:$0xff]
      %v1530 = vld [vmem:[#allocation12 + $0xd20] sm:$0xff]
      %v1531 = vld [vmem:[#allocation12 + $0xd28] sm:$0xff]
      %v1532 = vld [vmem:[#allocation12 + $0xd30] sm:$0xff]
      %v1533 = vld [vmem:[#allocation12 + $0xd38] sm:$0xff]
      %v1534 = vld [vmem:[#allocation12 + $0xd40] sm:$0xff]
      %v1535 = vld [vmem:[#allocation12 + $0xd48] sm:$0xff]
      %v1536 = vld [vmem:[#allocation12 + $0xd50] sm:$0xff]
      %v1537 = vld [vmem:[#allocation12 + $0xd58] sm:$0xff]
      %v1538 = vld [vmem:[#allocation12 + $0xd60] sm:$0xff]
      %v1539 = vld [vmem:[#allocation12 + $0xd68] sm:$0xff]
      %v1540 = vld [vmem:[#allocation12 + $0xd70] sm:$0xff]
      %v1541 = vld [vmem:[#allocation12 + $0xd78] sm:$0xff]
      %v1542 = vld [vmem:[#allocation12 + $0xd80] sm:$0xff]
      %v1543 = vld [vmem:[#allocation12 + $0xd88] sm:$0xff]
      %v1544 = vld [vmem:[#allocation12 + $0xd90] sm:$0xff]
      %v1545 = vld [vmem:[#allocation12 + $0xd98] sm:$0xff]
      %v1546 = vld [vmem:[#allocation12 + $0xda0] sm:$0xff]
      %v1547 = vld [vmem:[#allocation12 + $0xda8] sm:$0xff]
      %v1548 = vld [vmem:[#allocation12 + $0xdb0] sm:$0xff]
      %v1549 = vld [vmem:[#allocation12 + $0xdb8] sm:$0xff]
      %v1550 = vld [vmem:[#allocation12 + $0xdc0] sm:$0xff]
      %v1551 = vld [vmem:[#allocation12 + $0xdc8] sm:$0xff]
      %v1552 = vld [vmem:[#allocation12 + $0xdd0] sm:$0xff]
      %v1553 = vld [vmem:[#allocation12 + $0xdd8] sm:$0xff]
      %v1554 = vld [vmem:[#allocation12 + $0xde0] sm:$0xff]
      %v1555 = vld [vmem:[#allocation12 + $0xde8] sm:$0xff]
      %v1556 = vld [vmem:[#allocation12 + $0xdf0] sm:$0xff]
      %v1557 = vld [vmem:[#allocation12 + $0xdf8] sm:$0xff]
      %v1558 = vld [vmem:[#allocation12 + $0xe00] sm:$0xff]
      %v1559 = vld [vmem:[#allocation12 + $0xe08] sm:$0xff]
      %v1560 = vld [vmem:[#allocation12 + $0xe10] sm:$0xff]
      %v1561 = vld [vmem:[#allocation12 + $0xe18] sm:$0xff]
      %v1562 = vld [vmem:[#allocation12 + $0xe20] sm:$0xff]
      %v1563 = vld [vmem:[#allocation12 + $0xe28] sm:$0xff]
      %v1564 = vld [vmem:[#allocation12 + $0xe30] sm:$0xff]
      %v1565 = vld [vmem:[#allocation12 + $0xe38] sm:$0xff]
      %v1566 = vld [vmem:[#allocation12 + $0xe40] sm:$0xff]
      %v1567 = vld [vmem:[#allocation12 + $0xe48] sm:$0xff]
      %v1568 = vld [vmem:[#allocation12 + $0xe50] sm:$0xff]
      %v1569 = vld [vmem:[#allocation12 + $0xe58] sm:$0xff]
      %v1570 = vld [vmem:[#allocation12 + $0xe60] sm:$0xff]
      %v1571 = vld [vmem:[#allocation12 + $0xe68] sm:$0xff]
      %v1572 = vld [vmem:[#allocation12 + $0xe70] sm:$0xff]
      %v1573 = vld [vmem:[#allocation12 + $0xe78] sm:$0xff]
      %v1574 = vld [vmem:[#allocation12 + $0xe80] sm:$0xff]
      %v1575 = vld [vmem:[#allocation12 + $0xe88] sm:$0xff]
      %v1576 = vld [vmem:[#allocation12 + $0xe90] sm:$0xff]
      %v1577 = vld [vmem:[#allocation12 + $0xe98] sm:$0xff]
      %v1578 = vld [vmem:[#allocation12 + $0xea0] sm:$0xff]
      %v1579 = vld [vmem:[#allocation12 + $0xea8] sm:$0xff]
      %v1580 = vld [vmem:[#allocation12 + $0xeb0] sm:$0xff]
      %v1581 = vld [vmem:[#allocation12 + $0xeb8] sm:$0xff]
      %v1582 = vld [vmem:[#allocation12 + $0xec0] sm:$0xff]
      %v1583 = vld [vmem:[#allocation12 + $0xec8] sm:$0xff]
      %v1584 = vld [vmem:[#allocation12 + $0xed0] sm:$0xff]
      %v1585 = vld [vmem:[#allocation12 + $0xed8] sm:$0xff]
      %v1586 = vld [vmem:[#allocation12 + $0xee0] sm:$0xff]
      %v1587 = vld [vmem:[#allocation12 + $0xee8] sm:$0xff]
      %v1588 = vld [vmem:[#allocation12 + $0xef0] sm:$0xff]
      %v1589 = vld [vmem:[#allocation12 + $0xef8] sm:$0xff]
      %v1590 = vld [vmem:[#allocation12 + $0xf00] sm:$0xff]
      %v1591 = vld [vmem:[#allocation12 + $0xf08] sm:$0xff]
      %v1592 = vld [vmem:[#allocation12 + $0xf10] sm:$0xff]
      %v1593 = vld [vmem:[#allocation12 + $0xf18] sm:$0xff]
      %v1594 = vld [vmem:[#allocation12 + $0xf20] sm:$0xff]
      %v1595 = vld [vmem:[#allocation12 + $0xf28] sm:$0xff]
      %v1596 = vld [vmem:[#allocation12 + $0xf30] sm:$0xff]
      %v1597 = vld [vmem:[#allocation12 + $0xf38] sm:$0xff]
      %v1598 = vld [vmem:[#allocation12 + $0xf40] sm:$0xff]
      %v1599 = vld [vmem:[#allocation12 + $0xf48] sm:$0xff]
      %v1600 = vld [vmem:[#allocation12 + $0xf50] sm:$0xff]
      %v1601 = vld [vmem:[#allocation12 + $0xf58] sm:$0xff]
      %v1602 = vld [vmem:[#allocation12 + $0xf60] sm:$0xff]
      %v1603 = vld [vmem:[#allocation12 + $0xf68] sm:$0xff]
      %v1604 = vld [vmem:[#allocation12 + $0xf70] sm:$0xff]
      %v1605 = vld [vmem:[#allocation12 + $0xf78] sm:$0xff]
      %v1606 = vld [vmem:[#allocation12 + $0xf80] sm:$0xff]
      %v1607 = vld [vmem:[#allocation12 + $0xf88] sm:$0xff]
      %v1608 = vld [vmem:[#allocation12 + $0xf90] sm:$0xff]
      %v1609 = vld [vmem:[#allocation12 + $0xf98] sm:$0xff]
      %v1610 = vld [vmem:[#allocation12 + $0xfa0] sm:$0xff]
      %v1611 = vld [vmem:[#allocation12 + $0xfa8] sm:$0xff]
      %v1612 = vld [vmem:[#allocation12 + $0xfb0] sm:$0xff]
      %v1613 = vld [vmem:[#allocation12 + $0xfb8] sm:$0xff]
      %v1614 = vld [vmem:[#allocation12 + $0xfc0] sm:$0xff]
      %v1615 = vld [vmem:[#allocation12 + $0xfc8] sm:$0xff]
      %v1616 = vld [vmem:[#allocation12 + $0xfd0] sm:$0xff]
      %v1617 = vld [vmem:[#allocation12 + $0xfd8] sm:$0xff]
      %v1618 = vld [vmem:[#allocation12 + $0xfe0] sm:$0xff]
      %v1619 = vld [vmem:[#allocation12 + $0xfe8] sm:$0xff]
      %v1620 = vld [vmem:[#allocation12 + $0xff0] sm:$0xff]
      %v1621 = vld [vmem:[#allocation12 + $0xff8] sm:$0xff]
      %v1622 = vld [vmem:[#allocation14] sm:$0xf]
      %v1624 = vlaneseq
      %v1625 = vshrl.u32 %v1624, 7
      %v1626 = vsub.s32 0, %v1625
      %v1627 = vrot.slane %v1622, %v1626
      %v1628 = vlaneseq
      %v1629 = vshrl.u32 %v1628, 7
      %v1630 = vsub.s32 1, %v1629
      %v1631 = vrot.slane %v1622, %v1630
      %v1632 = vlaneseq
      %v1633 = vshrl.u32 %v1632, 7
      %v1634 = vsub.s32 2, %v1633
      %v1635 = vrot.slane %v1622, %v1634
      %v1636 = vlaneseq
      %v1637 = vshrl.u32 %v1636, 7
      %v1638 = vsub.s32 3, %v1637
      %v1639 = vrot.slane %v1622, %v1638
      %v1646 = vcombine.high %v1108, %v1108
      %v1648 = vunpack.c.l.s4 1983009808
      %v1649 = vunpack.c.0.s8 %v1648
      %v1650 = vlaneseq
      %v1651 = vshrl.u32 %v1650, 7
      %v1652 = vsub.s32 %v1649, %v1651
      %v1653 = vrot.slane %v1108, %v1652
      %v1655 = vunpack.c.l.s4 1983009808
      %v1656 = vunpack.c.0.s8 %v1655
      %v1657 = vlaneseq
      %v1658 = vshrl.u32 %v1657, 7
      %v1659 = vsub.s32 %v1656, %v1658
      %v1660 = vrot.slane %v1646, %v1659
      %v1661 = vcombine.high %v1653, %v1653
      %v1662 = vcombine.high %v1660, %v1660
      %v1663 = vcombine.high %v1109, %v1109
      %v1665 = vunpack.c.l.s4 1983009808
      %v1666 = vunpack.c.0.s8 %v1665
      %v1667 = vlaneseq
      %v1668 = vshrl.u32 %v1667, 7
      %v1669 = vsub.s32 %v1666, %v1668
      %v1670 = vrot.slane %v1109, %v1669
      %v1672 = vunpack.c.l.s4 1983009808
      %v1673 = vunpack.c.0.s8 %v1672
      %v1674 = vlaneseq
      %v1675 = vshrl.u32 %v1674, 7
      %v1676 = vsub.s32 %v1673, %v1675
      %v1677 = vrot.slane %v1663, %v1676
      %v1678 = vcombine.high %v1670, %v1670
      %v1679 = vcombine.high %v1677, %v1677
      %1688 = vmatprep.subr.mxu0 %v1171
      %1689 = vmatpush1.msra.mxu0 %v1170
      %1690 = vmatprep.subr.mxu0 %v1167
      %1691 = vmatpush1.msra.mxu0 %v1166
      %1692 = vmatprep.subr.mxu0 %v1163
      %1693 = vmatpush1.msra.mxu0 %v1162
      %1694 = vmatprep.subr.mxu0 %v1159
      %1695 = vmatpush1.msra.mxu0 %v1158
      %1696 = vmatprep.subr.mxu0 %v1155
      %1697 = vmatpush1.msra.mxu0 %v1154
      %1698 = vmatprep.subr.mxu0 %v1151
      %1699 = vmatpush1.msra.mxu0 %v1150
      %1700 = vmatprep.subr.mxu0 %v1147
      %1701 = vmatpush1.msra.mxu0 %v1146
      %1702 = vmatprep.subr.mxu0 %v1143
      %1703 = vmatpush1.msra.mxu0 %v1142
      %1704 = vmatprep.subr.mxu0 %v1139
      %1705 = vmatpush1.msra.mxu0 %v1138
      %1706 = vmatprep.subr.mxu0 %v1135
      %1707 = vmatpush1.msra.mxu0 %v1134
      %1708 = vmatprep.subr.mxu0 %v1131
      %1709 = vmatpush1.msra.mxu0 %v1130
      %1710 = vmatprep.subr.mxu0 %v1127
      %1711 = vmatpush1.msra.mxu0 %v1126
      %1712 = vmatprep.subr.mxu0 %v1123
      %1713 = vmatpush1.msra.mxu0 %v1122
      %1714 = vmatprep.subr.mxu0 %v1119
      %1715 = vmatpush1.msra.mxu0 %v1118
      %1716 = vmatprep.subr.mxu0 %v1115
      %1717 = vmatpush1.msra.mxu0 %v1114
      %1718 = vmatprep.subr.mxu0 %v1111
      %1719 = vmatpush1.msra.mxu0 %v1110
      %1720 = vmatprep.subr.mxu0 %v1235
      %1721 = vmatpush2.msra.mxu0 %v1234
      %1722 = vmatprep.subr.mxu0 %v1231
      %1723 = vmatpush2.msra.mxu0 %v1230
      %1724 = vmatprep.subr.mxu0 %v1227
      %1725 = vmatpush2.msra.mxu0 %v1226
      %1726 = vmatprep.subr.mxu0 %v1223
      %1727 = vmatpush2.msra.mxu0 %v1222
      %1728 = vmatprep.subr.mxu0 %v1219
      %1729 = vmatpush2.msra.mxu0 %v1218
      %1730 = vmatprep.subr.mxu0 %v1215
      %1731 = vmatpush2.msra.mxu0 %v1214
      %1732 = vmatprep.subr.mxu0 %v1211
      %1733 = vmatpush2.msra.mxu0 %v1210
      %1734 = vmatprep.subr.mxu0 %v1207
      %1735 = vmatpush2.msra.mxu0 %v1206
      %1736 = vmatprep.subr.mxu0 %v1203
      %1737 = vmatpush2.msra.mxu0 %v1202
      %1738 = vmatprep.subr.mxu0 %v1199
      %1739 = vmatpush2.msra.mxu0 %v1198
      %1740 = vmatprep.subr.mxu0 %v1195
      %1741 = vmatpush2.msra.mxu0 %v1194
      %1742 = vmatprep.subr.mxu0 %v1191
      %1743 = vmatpush2.msra.mxu0 %v1190
      %1744 = vmatprep.subr.mxu0 %v1187
      %1745 = vmatpush2.msra.mxu0 %v1186
      %1746 = vmatprep.subr.mxu0 %v1183
      %1747 = vmatpush2.msra.mxu0 %v1182
      %1748 = vmatprep.subr.mxu0 %v1179
      %1749 = vmatpush2.msra.mxu0 %v1178
      %1750 = vmatprep.subr.mxu0 %v1175
      %1751 = vmatpush2.msra.mxu0 %v1174
      %1752 = vmatprep.mubr.f32.mxu0 %v1661
      %1753 = vmatmul.mubr.f32.gmra.mxu0 %v1653
      %v1754 = vpop.f32.mrf.mxu0
      %v1755 = vadd.f32 %v1627, %v1754
      %v1756 = vpop.f32.mrf.mxu0
      %v1757 = vadd.f32 %v1631, %v1756
      %1758 = vdwg.mxu0
      %1759 = vmatprep.subr.mxu0 %v1299
      %1760 = vmatpush1.msra.mxu0 %v1298
      %1761 = vmatprep.subr.mxu0 %v1295
      %1762 = vmatpush1.msra.mxu0 %v1294
      %1763 = vmatprep.subr.mxu0 %v1291
      %1764 = vmatpush1.msra.mxu0 %v1290
      %1765 = vmatprep.subr.mxu0 %v1287
      %1766 = vmatpush1.msra.mxu0 %v1286
      %1767 = vmatprep.subr.mxu0 %v1283
      %1768 = vmatpush1.msra.mxu0 %v1282
      %1769 = vmatprep.subr.mxu0 %v1279
      %1770 = vmatpush1.msra.mxu0 %v1278
      %1771 = vmatprep.subr.mxu0 %v1275
      %1772 = vmatpush1.msra.mxu0 %v1274
      %1773 = vmatprep.subr.mxu0 %v1271
      %1774 = vmatpush1.msra.mxu0 %v1270
      %1775 = vmatprep.subr.mxu0 %v1267
      %1776 = vmatpush1.msra.mxu0 %v1266
      %1777 = vmatprep.subr.mxu0 %v1263
      %1778 = vmatpush1.msra.mxu0 %v1262
      %1779 = vmatprep.subr.mxu0 %v1259
      %1780 = vmatpush1.msra.mxu0 %v1258
      %1781 = vmatprep.subr.mxu0 %v1255
      %1782 = vmatpush1.msra.mxu0 %v1254
      %1783 = vmatprep.subr.mxu0 %v1251
      %1784 = vmatpush1.msra.mxu0 %v1250
      %1785 = vmatprep.subr.mxu0 %v1247
      %1786 = vmatpush1.msra.mxu0 %v1246
      %1787 = vmatprep.subr.mxu0 %v1243
      %1788 = vmatpush1.msra.mxu0 %v1242
      %1789 = vmatprep.subr.mxu0 %v1239
      %1790 = vmatpush1.msra.mxu0 %v1238
      %1791 = vmatprep.subr.mxu0 %v1363
      %1792 = vmatpush2.msra.mxu0 %v1362
      %1793 = vmatprep.subr.mxu0 %v1359
      %1794 = vmatpush2.msra.mxu0 %v1358
      %1795 = vmatprep.subr.mxu0 %v1355
      %1796 = vmatpush2.msra.mxu0 %v1354
      %1797 = vmatprep.subr.mxu0 %v1351
      %1798 = vmatpush2.msra.mxu0 %v1350
      %1799 = vmatprep.subr.mxu0 %v1347
      %1800 = vmatpush2.msra.mxu0 %v1346
      %1801 = vmatprep.subr.mxu0 %v1343
      %1802 = vmatpush2.msra.mxu0 %v1342
      %1803 = vmatprep.subr.mxu0 %v1339
      %1804 = vmatpush2.msra.mxu0 %v1338
      %1805 = vmatprep.subr.mxu0 %v1335
      %1806 = vmatpush2.msra.mxu0 %v1334
      %1807 = vmatprep.subr.mxu0 %v1331
      %1808 = vmatpush2.msra.mxu0 %v1330
      %1809 = vmatprep.subr.mxu0 %v1327
      %1810 = vmatpush2.msra.mxu0 %v1326
      %1811 = vmatprep.subr.mxu0 %v1323
      %1812 = vmatpush2.msra.mxu0 %v1322
      %1813 = vmatprep.subr.mxu0 %v1319
      %1814 = vmatpush2.msra.mxu0 %v1318
      %1815 = vmatprep.subr.mxu0 %v1315
      %1816 = vmatpush2.msra.mxu0 %v1314
      %1817 = vmatprep.subr.mxu0 %v1311
      %1818 = vmatpush2.msra.mxu0 %v1310
      %1819 = vmatprep.subr.mxu0 %v1307
      %1820 = vmatpush2.msra.mxu0 %v1306
      %1821 = vmatprep.subr.mxu0 %v1303
      %1822 = vmatpush2.msra.mxu0 %v1302
      %1823 = vmatprep.mubr.f32.mxu0 %v1662
      %1824 = vmatmul.mubr.f32.gmra.mxu0 %v1660
      %v1825 = vpop.f32.mrf.mxu0
      %v1826 = vadd.f32 %v1755, %v1825
      %v1827 = vpop.f32.mrf.mxu0
      %v1828 = vadd.f32 %v1757, %v1827
      %1829 = vdwg.mxu0
      %1830 = vmatprep.subr.mxu0 %v1427
      %1831 = vmatpush1.msra.mxu0 %v1426
      %1832 = vmatprep.subr.mxu0 %v1423
      %1833 = vmatpush1.msra.mxu0 %v1422
      %1834 = vmatprep.subr.mxu0 %v1419
      %1835 = vmatpush1.msra.mxu0 %v1418
      %1836 = vmatprep.subr.mxu0 %v1415
      %1837 = vmatpush1.msra.mxu0 %v1414
      %1838 = vmatprep.subr.mxu0 %v1411
      %1839 = vmatpush1.msra.mxu0 %v1410
      %1840 = vmatprep.subr.mxu0 %v1407
      %1841 = vmatpush1.msra.mxu0 %v1406
      %1842 = vmatprep.subr.mxu0 %v1403
      %1843 = vmatpush1.msra.mxu0 %v1402
      %1844 = vmatprep.subr.mxu0 %v1399
      %1845 = vmatpush1.msra.mxu0 %v1398
      %1846 = vmatprep.subr.mxu0 %v1395
      %1847 = vmatpush1.msra.mxu0 %v1394
      %1848 = vmatprep.subr.mxu0 %v1391
      %1849 = vmatpush1.msra.mxu0 %v1390
      %1850 = vmatprep.subr.mxu0 %v1387
      %1851 = vmatpush1.msra.mxu0 %v1386
      %1852 = vmatprep.subr.mxu0 %v1383
      %1853 = vmatpush1.msra.mxu0 %v1382
      %1854 = vmatprep.subr.mxu0 %v1379
      %1855 = vmatpush1.msra.mxu0 %v1378
      %1856 = vmatprep.subr.mxu0 %v1375
      %1857 = vmatpush1.msra.mxu0 %v1374
      %1858 = vmatprep.subr.mxu0 %v1371
      %1859 = vmatpush1.msra.mxu0 %v1370
      %1860 = vmatprep.subr.mxu0 %v1367
      %1861 = vmatpush1.msra.mxu0 %v1366
      %1862 = vmatprep.subr.mxu0 %v1491
      %1863 = vmatpush2.msra.mxu0 %v1490
      %1864 = vmatprep.subr.mxu0 %v1487
      %1865 = vmatpush2.msra.mxu0 %v1486
      %1866 = vmatprep.subr.mxu0 %v1483
      %1867 = vmatpush2.msra.mxu0 %v1482
      %1868 = vmatprep.subr.mxu0 %v1479
      %1869 = vmatpush2.msra.mxu0 %v1478
      %1870 = vmatprep.subr.mxu0 %v1475
      %1871 = vmatpush2.msra.mxu0 %v1474
      %1872 = vmatprep.subr.mxu0 %v1471
      %1873 = vmatpush2.msra.mxu0 %v1470
      %1874 = vmatprep.subr.mxu0 %v1467
      %1875 = vmatpush2.msra.mxu0 %v1466
      %1876 = vmatprep.subr.mxu0 %v1463
      %1877 = vmatpush2.msra.mxu0 %v1462
      %1878 = vmatprep.subr.mxu0 %v1459
      %1879 = vmatpush2.msra.mxu0 %v1458
      %1880 = vmatprep.subr.mxu0 %v1455
      %1881 = vmatpush2.msra.mxu0 %v1454
      %1882 = vmatprep.subr.mxu0 %v1451
      %1883 = vmatpush2.msra.mxu0 %v1450
      %1884 = vmatprep.subr.mxu0 %v1447
      %1885 = vmatpush2.msra.mxu0 %v1446
      %1886 = vmatprep.subr.mxu0 %v1443
      %1887 = vmatpush2.msra.mxu0 %v1442
      %1888 = vmatprep.subr.mxu0 %v1439
      %1889 = vmatpush2.msra.mxu0 %v1438
      %1890 = vmatprep.subr.mxu0 %v1435
      %1891 = vmatpush2.msra.mxu0 %v1434
      %1892 = vmatprep.subr.mxu0 %v1431
      %1893 = vmatpush2.msra.mxu0 %v1430
      %1894 = vmatprep.mubr.f32.mxu0 %v1678
      %1895 = vmatmul.mubr.f32.gmra.mxu0 %v1670
      %v1896 = vpop.f32.mrf.mxu0
      %v1897 = vadd.f32 %v1826, %v1896
      %v1898 = vpop.f32.mrf.mxu0
      %v1899 = vadd.f32 %v1828, %v1898
      %1900 = vdwg.mxu0
      %1901 = vmatprep.subr.mxu0 %v1555
      %1902 = vmatpush1.msra.mxu0 %v1554
      %1903 = vmatprep.subr.mxu0 %v1551
      %1904 = vmatpush1.msra.mxu0 %v1550
      %1905 = vmatprep.subr.mxu0 %v1547
      %1906 = vmatpush1.msra.mxu0 %v1546
      %1907 = vmatprep.subr.mxu0 %v1543
      %1908 = vmatpush1.msra.mxu0 %v1542
      %1909 = vmatprep.subr.mxu0 %v1539
      %1910 = vmatpush1.msra.mxu0 %v1538
      %1911 = vmatprep.subr.mxu0 %v1535
      %1912 = vmatpush1.msra.mxu0 %v1534
      %1913 = vmatprep.subr.mxu0 %v1531
      %1914 = vmatpush1.msra.mxu0 %v1530
      %1915 = vmatprep.subr.mxu0 %v1527
      %1916 = vmatpush1.msra.mxu0 %v1526
      %1917 = vmatprep.subr.mxu0 %v1523
      %1918 = vmatpush1.msra.mxu0 %v1522
      %1919 = vmatprep.subr.mxu0 %v1519
      %1920 = vmatpush1.msra.mxu0 %v1518
      %1921 = vmatprep.subr.mxu0 %v1515
      %1922 = vmatpush1.msra.mxu0 %v1514
      %1923 = vmatprep.subr.mxu0 %v1511
      %1924 = vmatpush1.msra.mxu0 %v1510
      %1925 = vmatprep.subr.mxu0 %v1507
      %1926 = vmatpush1.msra.mxu0 %v1506
      %1927 = vmatprep.subr.mxu0 %v1503
      %1928 = vmatpush1.msra.mxu0 %v1502
      %1929 = vmatprep.subr.mxu0 %v1499
      %1930 = vmatpush1.msra.mxu0 %v1498
      %1931 = vmatprep.subr.mxu0 %v1495
      %1932 = vmatpush1.msra.mxu0 %v1494
      %1933 = vmatprep.subr.mxu0 %v1619
      %1934 = vmatpush2.msra.mxu0 %v1618
      %1935 = vmatprep.subr.mxu0 %v1615
      %1936 = vmatpush2.msra.mxu0 %v1614
      %1937 = vmatprep.subr.mxu0 %v1611
      %1938 = vmatpush2.msra.mxu0 %v1610
      %1939 = vmatprep.subr.mxu0 %v1607
      %1940 = vmatpush2.msra.mxu0 %v1606
      %1941 = vmatprep.subr.mxu0 %v1603
      %1942 = vmatpush2.msra.mxu0 %v1602
      %1943 = vmatprep.subr.mxu0 %v1599
      %1944 = vmatpush2.msra.mxu0 %v1598
      %1945 = vmatprep.subr.mxu0 %v1595
      %1946 = vmatpush2.msra.mxu0 %v1594
      %1947 = vmatprep.subr.mxu0 %v1591
      %1948 = vmatpush2.msra.mxu0 %v1590
      %1949 = vmatprep.subr.mxu0 %v1587
      %1950 = vmatpush2.msra.mxu0 %v1586
      %1951 = vmatprep.subr.mxu0 %v1583
      %1952 = vmatpush2.msra.mxu0 %v1582
      %1953 = vmatprep.subr.mxu0 %v1579
      %1954 = vmatpush2.msra.mxu0 %v1578
      %1955 = vmatprep.subr.mxu0 %v1575
      %1956 = vmatpush2.msra.mxu0 %v1574
      %1957 = vmatprep.subr.mxu0 %v1571
      %1958 = vmatpush2.msra.mxu0 %v1570
      %1959 = vmatprep.subr.mxu0 %v1567
      %1960 = vmatpush2.msra.mxu0 %v1566
      %1961 = vmatprep.subr.mxu0 %v1563
      %1962 = vmatpush2.msra.mxu0 %v1562
      %1963 = vmatprep.subr.mxu0 %v1559
      %1964 = vmatpush2.msra.mxu0 %v1558
      %1965 = vmatprep.mubr.f32.mxu0 %v1679
      %1966 = vmatmul.mubr.f32.gmra.mxu0 %v1677
      %v1967 = vpop.f32.mrf.mxu0
      %v1968 = vadd.f32 %v1897, %v1967
      %v1969 = vpop.f32.mrf.mxu0
      %v1970 = vadd.f32 %v1899, %v1969
      %1971 = vdwg.mxu0
      %1972 = vmatprep.subr.mxu0 %v1173
      %1973 = vmatpush1.msra.mxu0 %v1172
      %1974 = vmatprep.subr.mxu0 %v1169
      %1975 = vmatpush1.msra.mxu0 %v1168
      %1976 = vmatprep.subr.mxu0 %v1165
      %1977 = vmatpush1.msra.mxu0 %v1164
      %1978 = vmatprep.subr.mxu0 %v1161
      %1979 = vmatpush1.msra.mxu0 %v1160
      %1980 = vmatprep.subr.mxu0 %v1157
      %1981 = vmatpush1.msra.mxu0 %v1156
      %1982 = vmatprep.subr.mxu0 %v1153
      %1983 = vmatpush1.msra.mxu0 %v1152
      %1984 = vmatprep.subr.mxu0 %v1149
      %1985 = vmatpush1.msra.mxu0 %v1148
      %1986 = vmatprep.subr.mxu0 %v1145
      %1987 = vmatpush1.msra.mxu0 %v1144
      %1988 = vmatprep.subr.mxu0 %v1141
      %1989 = vmatpush1.msra.mxu0 %v1140
      %1990 = vmatprep.subr.mxu0 %v1137
      %1991 = vmatpush1.msra.mxu0 %v1136
      %1992 = vmatprep.subr.mxu0 %v1133
      %1993 = vmatpush1.msra.mxu0 %v1132
      %1994 = vmatprep.subr.mxu0 %v1129
      %1995 = vmatpush1.msra.mxu0 %v1128
      %1996 = vmatprep.subr.mxu0 %v1125
      %1997 = vmatpush1.msra.mxu0 %v1124
      %1998 = vmatprep.subr.mxu0 %v1121
      %1999 = vmatpush1.msra.mxu0 %v1120
      %2000 = vmatprep.subr.mxu0 %v1117
      %2001 = vmatpush1.msra.mxu0 %v1116
      %2002 = vmatprep.subr.mxu0 %v1113
      %2003 = vmatpush1.msra.mxu0 %v1112
      %2004 = vmatprep.subr.mxu0 %v1237
      %2005 = vmatpush2.msra.mxu0 %v1236
      %2006 = vmatprep.subr.mxu0 %v1233
      %2007 = vmatpush2.msra.mxu0 %v1232
      %2008 = vmatprep.subr.mxu0 %v1229
      %2009 = vmatpush2.msra.mxu0 %v1228
      %2010 = vmatprep.subr.mxu0 %v1225
      %2011 = vmatpush2.msra.mxu0 %v1224
      %2012 = vmatprep.subr.mxu0 %v1221
      %2013 = vmatpush2.msra.mxu0 %v1220
      %2014 = vmatprep.subr.mxu0 %v1217
      %2015 = vmatpush2.msra.mxu0 %v1216
      %2016 = vmatprep.subr.mxu0 %v1213
      %2017 = vmatpush2.msra.mxu0 %v1212
      %2018 = vmatprep.subr.mxu0 %v1209
      %2019 = vmatpush2.msra.mxu0 %v1208
      %2020 = vmatprep.subr.mxu0 %v1205
      %2021 = vmatpush2.msra.mxu0 %v1204
      %2022 = vmatprep.subr.mxu0 %v1201
      %2023 = vmatpush2.msra.mxu0 %v1200
      %2024 = vmatprep.subr.mxu0 %v1197
      %2025 = vmatpush2.msra.mxu0 %v1196
      %2026 = vmatprep.subr.mxu0 %v1193
      %2027 = vmatpush2.msra.mxu0 %v1192
      %2028 = vmatprep.subr.mxu0 %v1189
      %2029 = vmatpush2.msra.mxu0 %v1188
      %2030 = vmatprep.subr.mxu0 %v1185
      %2031 = vmatpush2.msra.mxu0 %v1184
      %2032 = vmatprep.subr.mxu0 %v1181
      %2033 = vmatpush2.msra.mxu0 %v1180
      %2034 = vmatprep.subr.mxu0 %v1177
      %2035 = vmatpush2.msra.mxu0 %v1176
      %2036 = vmatprep.mubr.f32.mxu0 %v1661
      %2037 = vmatmul.mubr.f32.gmra.mxu0 %v1653
      %v2038 = vpop.f32.mrf.mxu0
      %v2039 = vadd.f32 %v1635, %v2038
      %v2040 = vpop.f32.mrf.mxu0
      %v2041 = vadd.f32 %v1639, %v2040
      %2042 = vdwg.mxu0
      %2043 = vmatprep.subr.mxu0 %v1301
      %2044 = vmatpush1.msra.mxu0 %v1300
      %2045 = vmatprep.subr.mxu0 %v1297
      %2046 = vmatpush1.msra.mxu0 %v1296
      %2047 = vmatprep.subr.mxu0 %v1293
      %2048 = vmatpush1.msra.mxu0 %v1292
      %2049 = vmatprep.subr.mxu0 %v1289
      %2050 = vmatpush1.msra.mxu0 %v1288
      %2051 = vmatprep.subr.mxu0 %v1285
      %2052 = vmatpush1.msra.mxu0 %v1284
      %2053 = vmatprep.subr.mxu0 %v1281
      %2054 = vmatpush1.msra.mxu0 %v1280
      %2055 = vmatprep.subr.mxu0 %v1277
      %2056 = vmatpush1.msra.mxu0 %v1276
      %2057 = vmatprep.subr.mxu0 %v1273
      %2058 = vmatpush1.msra.mxu0 %v1272
      %2059 = vmatprep.subr.mxu0 %v1269
      %2060 = vmatpush1.msra.mxu0 %v1268
      %2061 = vmatprep.subr.mxu0 %v1265
      %2062 = vmatpush1.msra.mxu0 %v1264
      %2063 = vmatprep.subr.mxu0 %v1261
      %2064 = vmatpush1.msra.mxu0 %v1260
      %2065 = vmatprep.subr.mxu0 %v1257
      %2066 = vmatpush1.msra.mxu0 %v1256
      %2067 = vmatprep.subr.mxu0 %v1253
      %2068 = vmatpush1.msra.mxu0 %v1252
      %2069 = vmatprep.subr.mxu0 %v1249
      %2070 = vmatpush1.msra.mxu0 %v1248
      %2071 = vmatprep.subr.mxu0 %v1245
      %2072 = vmatpush1.msra.mxu0 %v1244
      %2073 = vmatprep.subr.mxu0 %v1241
      %2074 = vmatpush1.msra.mxu0 %v1240
      %2075 = vmatprep.subr.mxu0 %v1365
      %2076 = vmatpush2.msra.mxu0 %v1364
      %2077 = vmatprep.subr.mxu0 %v1361
      %2078 = vmatpush2.msra.mxu0 %v1360
      %2079 = vmatprep.subr.mxu0 %v1357
      %2080 = vmatpush2.msra.mxu0 %v1356
      %2081 = vmatprep.subr.mxu0 %v1353
      %2082 = vmatpush2.msra.mxu0 %v1352
      %2083 = vmatprep.subr.mxu0 %v1349
      %2084 = vmatpush2.msra.mxu0 %v1348
      %2085 = vmatprep.subr.mxu0 %v1345
      %2086 = vmatpush2.msra.mxu0 %v1344
      %2087 = vmatprep.subr.mxu0 %v1341
      %2088 = vmatpush2.msra.mxu0 %v1340
      %2089 = vmatprep.subr.mxu0 %v1337
      %2090 = vmatpush2.msra.mxu0 %v1336
      %2091 = vmatprep.subr.mxu0 %v1333
      %2092 = vmatpush2.msra.mxu0 %v1332
      %2093 = vmatprep.subr.mxu0 %v1329
      %2094 = vmatpush2.msra.mxu0 %v1328
      %2095 = vmatprep.subr.mxu0 %v1325
      %2096 = vmatpush2.msra.mxu0 %v1324
      %2097 = vmatprep.subr.mxu0 %v1321
      %2098 = vmatpush2.msra.mxu0 %v1320
      %2099 = vmatprep.subr.mxu0 %v1317
      %2100 = vmatpush2.msra.mxu0 %v1316
      %2101 = vmatprep.subr.mxu0 %v1313
      %2102 = vmatpush2.msra.mxu0 %v1312
      %2103 = vmatprep.subr.mxu0 %v1309
      %2104 = vmatpush2.msra.mxu0 %v1308
      %2105 = vmatprep.subr.mxu0 %v1305
      %2106 = vmatpush2.msra.mxu0 %v1304
      %2107 = vmatprep.mubr.f32.mxu0 %v1662
      %2108 = vmatmul.mubr.f32.gmra.mxu0 %v1660
      %v2109 = vpop.f32.mrf.mxu0
      %v2110 = vadd.f32 %v2039, %v2109
      %v2111 = vpop.f32.mrf.mxu0
      %v2112 = vadd.f32 %v2041, %v2111
      %2113 = vdwg.mxu0
      %2114 = vmatprep.subr.mxu0 %v1429
      %2115 = vmatpush1.msra.mxu0 %v1428
      %2116 = vmatprep.subr.mxu0 %v1425
      %2117 = vmatpush1.msra.mxu0 %v1424
      %2118 = vmatprep.subr.mxu0 %v1421
      %2119 = vmatpush1.msra.mxu0 %v1420
      %2120 = vmatprep.subr.mxu0 %v1417
      %2121 = vmatpush1.msra.mxu0 %v1416
      %2122 = vmatprep.subr.mxu0 %v1413
      %2123 = vmatpush1.msra.mxu0 %v1412
      %2124 = vmatprep.subr.mxu0 %v1409
      %2125 = vmatpush1.msra.mxu0 %v1408
      %2126 = vmatprep.subr.mxu0 %v1405
      %2127 = vmatpush1.msra.mxu0 %v1404
      %2128 = vmatprep.subr.mxu0 %v1401
      %2129 = vmatpush1.msra.mxu0 %v1400
      %2130 = vmatprep.subr.mxu0 %v1397
      %2131 = vmatpush1.msra.mxu0 %v1396
      %2132 = vmatprep.subr.mxu0 %v1393
      %2133 = vmatpush1.msra.mxu0 %v1392
      %2134 = vmatprep.subr.mxu0 %v1389
      %2135 = vmatpush1.msra.mxu0 %v1388
      %2136 = vmatprep.subr.mxu0 %v1385
      %2137 = vmatpush1.msra.mxu0 %v1384
      %2138 = vmatprep.subr.mxu0 %v1381
      %2139 = vmatpush1.msra.mxu0 %v1380
      %2140 = vmatprep.subr.mxu0 %v1377
      %2141 = vmatpush1.msra.mxu0 %v1376
      %2142 = vmatprep.subr.mxu0 %v1373
      %2143 = vmatpush1.msra.mxu0 %v1372
      %2144 = vmatprep.subr.mxu0 %v1369
      %2145 = vmatpush1.msra.mxu0 %v1368
      %2146 = vmatprep.subr.mxu0 %v1493
      %2147 = vmatpush2.msra.mxu0 %v1492
      %2148 = vmatprep.subr.mxu0 %v1489
      %2149 = vmatpush2.msra.mxu0 %v1488
      %2150 = vmatprep.subr.mxu0 %v1485
      %2151 = vmatpush2.msra.mxu0 %v1484
      %2152 = vmatprep.subr.mxu0 %v1481
      %2153 = vmatpush2.msra.mxu0 %v1480
      %2154 = vmatprep.subr.mxu0 %v1477
      %2155 = vmatpush2.msra.mxu0 %v1476
      %2156 = vmatprep.subr.mxu0 %v1473
      %2157 = vmatpush2.msra.mxu0 %v1472
      %2158 = vmatprep.subr.mxu0 %v1469
      %2159 = vmatpush2.msra.mxu0 %v1468
      %2160 = vmatprep.subr.mxu0 %v1465
      %2161 = vmatpush2.msra.mxu0 %v1464
      %2162 = vmatprep.subr.mxu0 %v1461
      %2163 = vmatpush2.msra.mxu0 %v1460
      %2164 = vmatprep.subr.mxu0 %v1457
      %2165 = vmatpush2.msra.mxu0 %v1456
      %2166 = vmatprep.subr.mxu0 %v1453
      %2167 = vmatpush2.msra.mxu0 %v1452
      %2168 = vmatprep.subr.mxu0 %v1449
      %2169 = vmatpush2.msra.mxu0 %v1448
      %2170 = vmatprep.subr.mxu0 %v1445
      %2171 = vmatpush2.msra.mxu0 %v1444
      %2172 = vmatprep.subr.mxu0 %v1441
      %2173 = vmatpush2.msra.mxu0 %v1440
      %2174 = vmatprep.subr.mxu0 %v1437
      %2175 = vmatpush2.msra.mxu0 %v1436
      %2176 = vmatprep.subr.mxu0 %v1433
      %2177 = vmatpush2.msra.mxu0 %v1432
      %2178 = vmatprep.mubr.f32.mxu0 %v1678
      %2179 = vmatmul.mubr.f32.gmra.mxu0 %v1670
      %v2180 = vpop.f32.mrf.mxu0
      %v2181 = vadd.f32 %v2110, %v2180
      %v2182 = vpop.f32.mrf.mxu0
      %v2183 = vadd.f32 %v2112, %v2182
      %2184 = vdwg.mxu0
      %2185 = vmatprep.subr.mxu0 %v1557
      %2186 = vmatpush1.msra.mxu0 %v1556
      %2187 = vmatprep.subr.mxu0 %v1553
      %2188 = vmatpush1.msra.mxu0 %v1552
      %2189 = vmatprep.subr.mxu0 %v1549
      %2190 = vmatpush1.msra.mxu0 %v1548
      %2191 = vmatprep.subr.mxu0 %v1545
      %2192 = vmatpush1.msra.mxu0 %v1544
      %2193 = vmatprep.subr.mxu0 %v1541
      %2194 = vmatpush1.msra.mxu0 %v1540
      %2195 = vmatprep.subr.mxu0 %v1537
      %2196 = vmatpush1.msra.mxu0 %v1536
      %2197 = vmatprep.subr.mxu0 %v1533
      %2198 = vmatpush1.msra.mxu0 %v1532
      %2199 = vmatprep.subr.mxu0 %v1529
      %2200 = vmatpush1.msra.mxu0 %v1528
      %2201 = vmatprep.subr.mxu0 %v1525
      %2202 = vmatpush1.msra.mxu0 %v1524
      %2203 = vmatprep.subr.mxu0 %v1521
      %2204 = vmatpush1.msra.mxu0 %v1520
      %2205 = vmatprep.subr.mxu0 %v1517
      %2206 = vmatpush1.msra.mxu0 %v1516
      %2207 = vmatprep.subr.mxu0 %v1513
      %2208 = vmatpush1.msra.mxu0 %v1512
      %2209 = vmatprep.subr.mxu0 %v1509
      %2210 = vmatpush1.msra.mxu0 %v1508
      %2211 = vmatprep.subr.mxu0 %v1505
      %2212 = vmatpush1.msra.mxu0 %v1504
      %2213 = vmatprep.subr.mxu0 %v1501
      %2214 = vmatpush1.msra.mxu0 %v1500
      %2215 = vmatprep.subr.mxu0 %v1497
      %2216 = vmatpush1.msra.mxu0 %v1496
      %2217 = vmatprep.subr.mxu0 %v1621
      %2218 = vmatpush2.msra.mxu0 %v1620
      %2219 = vmatprep.subr.mxu0 %v1617
      %2220 = vmatpush2.msra.mxu0 %v1616
      %2221 = vmatprep.subr.mxu0 %v1613
      %2222 = vmatpush2.msra.mxu0 %v1612
      %2223 = vmatprep.subr.mxu0 %v1609
      %2224 = vmatpush2.msra.mxu0 %v1608
      %2225 = vmatprep.subr.mxu0 %v1605
      %2226 = vmatpush2.msra.mxu0 %v1604
      %2227 = vmatprep.subr.mxu0 %v1601
      %2228 = vmatpush2.msra.mxu0 %v1600
      %2229 = vmatprep.subr.mxu0 %v1597
      %2230 = vmatpush2.msra.mxu0 %v1596
      %2231 = vmatprep.subr.mxu0 %v1593
      %2232 = vmatpush2.msra.mxu0 %v1592
      %2233 = vmatprep.subr.mxu0 %v1589
      %2234 = vmatpush2.msra.mxu0 %v1588
      %2235 = vmatprep.subr.mxu0 %v1585
      %2236 = vmatpush2.msra.mxu0 %v1584
      %2237 = vmatprep.subr.mxu0 %v1581
      %2238 = vmatpush2.msra.mxu0 %v1580
      %2239 = vmatprep.subr.mxu0 %v1577
      %2240 = vmatpush2.msra.mxu0 %v1576
      %2241 = vmatprep.subr.mxu0 %v1573
      %2242 = vmatpush2.msra.mxu0 %v1572
      %2243 = vmatprep.subr.mxu0 %v1569
      %2244 = vmatpush2.msra.mxu0 %v1568
      %2245 = vmatprep.subr.mxu0 %v1565
      %2246 = vmatpush2.msra.mxu0 %v1564
      %2247 = vmatprep.subr.mxu0 %v1561
      %2248 = vmatpush2.msra.mxu0 %v1560
      %2249 = vmatprep.mubr.f32.mxu0 %v1679
      %2250 = vmatmul.mubr.f32.gmra.mxu0 %v1677
      %v2251 = vpop.f32.mrf.mxu0
      %v2252 = vadd.f32 %v2181, %v2251
      %v2253 = vpop.f32.mrf.mxu0
      %v2254 = vadd.f32 %v2183, %v2253
      %2255 = vdwg.mxu0
      %v2256 = vmax.f32 %v1968, 0.0
      %v2257 = vmax.f32 %v1970, 0.0
      %v2258 = vmax.f32 %v2252, 0.0
      %v2259 = vmax.f32 %v2254, 0.0
      %v2260 = vld [vmem:[#allocation15] sm:$0xff]
      %v2261 = vld [vmem:[#allocation15 + $0x8] sm:$0xff]
      %v2262 = vld [vmem:[#allocation15 + $0x10] sm:$0xff]
      %v2263 = vld [vmem:[#allocation15 + $0x18] sm:$0xff]
      %v2264 = vld [vmem:[#allocation15 + $0x20] sm:$0xff]
      %v2265 = vld [vmem:[#allocation15 + $0x28] sm:$0xff]
      %v2266 = vld [vmem:[#allocation15 + $0x30] sm:$0xff]
      %v2267 = vld [vmem:[#allocation15 + $0x38] sm:$0xff]
      %v2268 = vld [vmem:[#allocation15 + $0x40] sm:$0xff]
      %v2269 = vld [vmem:[#allocation15 + $0x48] sm:$0xff]
      %v2270 = vld [vmem:[#allocation15 + $0x50] sm:$0xff]
      %v2271 = vld [vmem:[#allocation15 + $0x58] sm:$0xff]
      %v2272 = vld [vmem:[#allocation15 + $0x60] sm:$0xff]
      %v2273 = vld [vmem:[#allocation15 + $0x68] sm:$0xff]
      %v2274 = vld [vmem:[#allocation15 + $0x70] sm:$0xff]
      %v2275 = vld [vmem:[#allocation15 + $0x78] sm:$0xff]
      %v2276 = vld [vmem:[#allocation15 + $0x80] sm:$0xff]
      %v2277 = vld [vmem:[#allocation15 + $0x88] sm:$0xff]
      %v2278 = vld [vmem:[#allocation15 + $0x90] sm:$0xff]
      %v2279 = vld [vmem:[#allocation15 + $0x98] sm:$0xff]
      %v2280 = vld [vmem:[#allocation15 + $0xa0] sm:$0xff]
      %v2281 = vld [vmem:[#allocation15 + $0xa8] sm:$0xff]
      %v2282 = vld [vmem:[#allocation15 + $0xb0] sm:$0xff]
      %v2283 = vld [vmem:[#allocation15 + $0xb8] sm:$0xff]
      %v2284 = vld [vmem:[#allocation15 + $0xc0] sm:$0xff]
      %v2285 = vld [vmem:[#allocation15 + $0xc8] sm:$0xff]
      %v2286 = vld [vmem:[#allocation15 + $0xd0] sm:$0xff]
      %v2287 = vld [vmem:[#allocation15 + $0xd8] sm:$0xff]
      %v2288 = vld [vmem:[#allocation15 + $0xe0] sm:$0xff]
      %v2289 = vld [vmem:[#allocation15 + $0xe8] sm:$0xff]
      %v2290 = vld [vmem:[#allocation15 + $0xf0] sm:$0xff]
      %v2291 = vld [vmem:[#allocation15 + $0xf8] sm:$0xff]
      %v2292 = vld [vmem:[#allocation15 + $0x100] sm:$0xff]
      %v2293 = vld [vmem:[#allocation15 + $0x108] sm:$0xff]
      %v2294 = vld [vmem:[#allocation15 + $0x110] sm:$0xff]
      %v2295 = vld [vmem:[#allocation15 + $0x118] sm:$0xff]
      %v2296 = vld [vmem:[#allocation15 + $0x120] sm:$0xff]
      %v2297 = vld [vmem:[#allocation15 + $0x128] sm:$0xff]
      %v2298 = vld [vmem:[#allocation15 + $0x130] sm:$0xff]
      %v2299 = vld [vmem:[#allocation15 + $0x138] sm:$0xff]
      %v2300 = vld [vmem:[#allocation15 + $0x140] sm:$0xff]
      %v2301 = vld [vmem:[#allocation15 + $0x148] sm:$0xff]
      %v2302 = vld [vmem:[#allocation15 + $0x150] sm:$0xff]
      %v2303 = vld [vmem:[#allocation15 + $0x158] sm:$0xff]
      %v2304 = vld [vmem:[#allocation15 + $0x160] sm:$0xff]
      %v2305 = vld [vmem:[#allocation15 + $0x168] sm:$0xff]
      %v2306 = vld [vmem:[#allocation15 + $0x170] sm:$0xff]
      %v2307 = vld [vmem:[#allocation15 + $0x178] sm:$0xff]
      %v2308 = vld [vmem:[#allocation15 + $0x180] sm:$0xff]
      %v2309 = vld [vmem:[#allocation15 + $0x188] sm:$0xff]
      %v2310 = vld [vmem:[#allocation15 + $0x190] sm:$0xff]
      %v2311 = vld [vmem:[#allocation15 + $0x198] sm:$0xff]
      %v2312 = vld [vmem:[#allocation15 + $0x1a0] sm:$0xff]
      %v2313 = vld [vmem:[#allocation15 + $0x1a8] sm:$0xff]
      %v2314 = vld [vmem:[#allocation15 + $0x1b0] sm:$0xff]
      %v2315 = vld [vmem:[#allocation15 + $0x1b8] sm:$0xff]
      %v2316 = vld [vmem:[#allocation15 + $0x1c0] sm:$0xff]
      %v2317 = vld [vmem:[#allocation15 + $0x1c8] sm:$0xff]
      %v2318 = vld [vmem:[#allocation15 + $0x1d0] sm:$0xff]
      %v2319 = vld [vmem:[#allocation15 + $0x1d8] sm:$0xff]
      %v2320 = vld [vmem:[#allocation15 + $0x1e0] sm:$0xff]
      %v2321 = vld [vmem:[#allocation15 + $0x1e8] sm:$0xff]
      %v2322 = vld [vmem:[#allocation15 + $0x1f0] sm:$0xff]
      %v2323 = vld [vmem:[#allocation15 + $0x1f8] sm:$0xff]
      %v2324 = vld [vmem:[#allocation15 + $0x200] sm:$0xff]
      %v2325 = vld [vmem:[#allocation15 + $0x208] sm:$0xff]
      %v2326 = vld [vmem:[#allocation15 + $0x210] sm:$0xff]
      %v2327 = vld [vmem:[#allocation15 + $0x218] sm:$0xff]
      %v2328 = vld [vmem:[#allocation15 + $0x220] sm:$0xff]
      %v2329 = vld [vmem:[#allocation15 + $0x228] sm:$0xff]
      %v2330 = vld [vmem:[#allocation15 + $0x230] sm:$0xff]
      %v2331 = vld [vmem:[#allocation15 + $0x238] sm:$0xff]
      %v2332 = vld [vmem:[#allocation15 + $0x240] sm:$0xff]
      %v2333 = vld [vmem:[#allocation15 + $0x248] sm:$0xff]
      %v2334 = vld [vmem:[#allocation15 + $0x250] sm:$0xff]
      %v2335 = vld [vmem:[#allocation15 + $0x258] sm:$0xff]
      %v2336 = vld [vmem:[#allocation15 + $0x260] sm:$0xff]
      %v2337 = vld [vmem:[#allocation15 + $0x268] sm:$0xff]
      %v2338 = vld [vmem:[#allocation15 + $0x270] sm:$0xff]
      %v2339 = vld [vmem:[#allocation15 + $0x278] sm:$0xff]
      %v2340 = vld [vmem:[#allocation15 + $0x280] sm:$0xff]
      %v2341 = vld [vmem:[#allocation15 + $0x288] sm:$0xff]
      %v2342 = vld [vmem:[#allocation15 + $0x290] sm:$0xff]
      %v2343 = vld [vmem:[#allocation15 + $0x298] sm:$0xff]
      %v2344 = vld [vmem:[#allocation15 + $0x2a0] sm:$0xff]
      %v2345 = vld [vmem:[#allocation15 + $0x2a8] sm:$0xff]
      %v2346 = vld [vmem:[#allocation15 + $0x2b0] sm:$0xff]
      %v2347 = vld [vmem:[#allocation15 + $0x2b8] sm:$0xff]
      %v2348 = vld [vmem:[#allocation15 + $0x2c0] sm:$0xff]
      %v2349 = vld [vmem:[#allocation15 + $0x2c8] sm:$0xff]
      %v2350 = vld [vmem:[#allocation15 + $0x2d0] sm:$0xff]
      %v2351 = vld [vmem:[#allocation15 + $0x2d8] sm:$0xff]
      %v2352 = vld [vmem:[#allocation15 + $0x2e0] sm:$0xff]
      %v2353 = vld [vmem:[#allocation15 + $0x2e8] sm:$0xff]
      %v2354 = vld [vmem:[#allocation15 + $0x2f0] sm:$0xff]
      %v2355 = vld [vmem:[#allocation15 + $0x2f8] sm:$0xff]
      %v2356 = vld [vmem:[#allocation15 + $0x300] sm:$0xff]
      %v2357 = vld [vmem:[#allocation15 + $0x308] sm:$0xff]
      %v2358 = vld [vmem:[#allocation15 + $0x310] sm:$0xff]
      %v2359 = vld [vmem:[#allocation15 + $0x318] sm:$0xff]
      %v2360 = vld [vmem:[#allocation15 + $0x320] sm:$0xff]
      %v2361 = vld [vmem:[#allocation15 + $0x328] sm:$0xff]
      %v2362 = vld [vmem:[#allocation15 + $0x330] sm:$0xff]
      %v2363 = vld [vmem:[#allocation15 + $0x338] sm:$0xff]
      %v2364 = vld [vmem:[#allocation15 + $0x340] sm:$0xff]
      %v2365 = vld [vmem:[#allocation15 + $0x348] sm:$0xff]
      %v2366 = vld [vmem:[#allocation15 + $0x350] sm:$0xff]
      %v2367 = vld [vmem:[#allocation15 + $0x358] sm:$0xff]
      %v2368 = vld [vmem:[#allocation15 + $0x360] sm:$0xff]
      %v2369 = vld [vmem:[#allocation15 + $0x368] sm:$0xff]
      %v2370 = vld [vmem:[#allocation15 + $0x370] sm:$0xff]
      %v2371 = vld [vmem:[#allocation15 + $0x378] sm:$0xff]
      %v2372 = vld [vmem:[#allocation15 + $0x380] sm:$0xff]
      %v2373 = vld [vmem:[#allocation15 + $0x388] sm:$0xff]
      %v2374 = vld [vmem:[#allocation15 + $0x390] sm:$0xff]
      %v2375 = vld [vmem:[#allocation15 + $0x398] sm:$0xff]
      %v2376 = vld [vmem:[#allocation15 + $0x3a0] sm:$0xff]
      %v2377 = vld [vmem:[#allocation15 + $0x3a8] sm:$0xff]
      %v2378 = vld [vmem:[#allocation15 + $0x3b0] sm:$0xff]
      %v2379 = vld [vmem:[#allocation15 + $0x3b8] sm:$0xff]
      %v2380 = vld [vmem:[#allocation15 + $0x3c0] sm:$0xff]
      %v2381 = vld [vmem:[#allocation15 + $0x3c8] sm:$0xff]
      %v2382 = vld [vmem:[#allocation15 + $0x3d0] sm:$0xff]
      %v2383 = vld [vmem:[#allocation15 + $0x3d8] sm:$0xff]
      %v2384 = vld [vmem:[#allocation15 + $0x3e0] sm:$0xff]
      %v2385 = vld [vmem:[#allocation15 + $0x3e8] sm:$0xff]
      %v2386 = vld [vmem:[#allocation15 + $0x3f0] sm:$0xff]
      %v2387 = vld [vmem:[#allocation15 + $0x3f8] sm:$0xff]
      %v2388 = vld [vmem:[#allocation17] sm:$0x3]
      %v2390 = vlaneseq
      %v2391 = vshrl.u32 %v2390, 7
      %v2392 = vsub.s32 0, %v2391
      %v2393 = vrot.slane %v2388, %v2392
      %v2394 = vlaneseq
      %v2395 = vshrl.u32 %v2394, 7
      %v2396 = vsub.s32 1, %v2395
      %v2397 = vrot.slane %v2388, %v2396
      %2400 = vmatprep.subr.mxu0 %v2291
      %2401 = vmatpush1.msra.mxu0 %v2290
      %2402 = vmatprep.subr.mxu0 %v2289
      %2403 = vmatpush1.msra.mxu0 %v2288
      %2404 = vmatprep.subr.mxu0 %v2287
      %2405 = vmatpush1.msra.mxu0 %v2286
      %2406 = vmatprep.subr.mxu0 %v2285
      %2407 = vmatpush1.msra.mxu0 %v2284
      %2408 = vmatprep.subr.mxu0 %v2283
      %2409 = vmatpush1.msra.mxu0 %v2282
      %2410 = vmatprep.subr.mxu0 %v2281
      %2411 = vmatpush1.msra.mxu0 %v2280
      %2412 = vmatprep.subr.mxu0 %v2279
      %2413 = vmatpush1.msra.mxu0 %v2278
      %2414 = vmatprep.subr.mxu0 %v2277
      %2415 = vmatpush1.msra.mxu0 %v2276
      %2416 = vmatprep.subr.mxu0 %v2275
      %2417 = vmatpush1.msra.mxu0 %v2274
      %2418 = vmatprep.subr.mxu0 %v2273
      %2419 = vmatpush1.msra.mxu0 %v2272
      %2420 = vmatprep.subr.mxu0 %v2271
      %2421 = vmatpush1.msra.mxu0 %v2270
      %2422 = vmatprep.subr.mxu0 %v2269
      %2423 = vmatpush1.msra.mxu0 %v2268
      %2424 = vmatprep.subr.mxu0 %v2267
      %2425 = vmatpush1.msra.mxu0 %v2266
      %2426 = vmatprep.subr.mxu0 %v2265
      %2427 = vmatpush1.msra.mxu0 %v2264
      %2428 = vmatprep.subr.mxu0 %v2263
      %2429 = vmatpush1.msra.mxu0 %v2262
      %2430 = vmatprep.subr.mxu0 %v2261
      %2431 = vmatpush1.msra.mxu0 %v2260
      %2432 = vmatprep.subr.mxu0 %v2323
      %2433 = vmatpush2.msra.mxu0 %v2322
      %2434 = vmatprep.subr.mxu0 %v2321
      %2435 = vmatpush2.msra.mxu0 %v2320
      %2436 = vmatprep.subr.mxu0 %v2319
      %2437 = vmatpush2.msra.mxu0 %v2318
      %2438 = vmatprep.subr.mxu0 %v2317
      %2439 = vmatpush2.msra.mxu0 %v2316
      %2440 = vmatprep.subr.mxu0 %v2315
      %2441 = vmatpush2.msra.mxu0 %v2314
      %2442 = vmatprep.subr.mxu0 %v2313
      %2443 = vmatpush2.msra.mxu0 %v2312
      %2444 = vmatprep.subr.mxu0 %v2311
      %2445 = vmatpush2.msra.mxu0 %v2310
      %2446 = vmatprep.subr.mxu0 %v2309
      %2447 = vmatpush2.msra.mxu0 %v2308
      %2448 = vmatprep.subr.mxu0 %v2307
      %2449 = vmatpush2.msra.mxu0 %v2306
      %2450 = vmatprep.subr.mxu0 %v2305
      %2451 = vmatpush2.msra.mxu0 %v2304
      %2452 = vmatprep.subr.mxu0 %v2303
      %2453 = vmatpush2.msra.mxu0 %v2302
      %2454 = vmatprep.subr.mxu0 %v2301
      %2455 = vmatpush2.msra.mxu0 %v2300
      %2456 = vmatprep.subr.mxu0 %v2299
      %2457 = vmatpush2.msra.mxu0 %v2298
      %2458 = vmatprep.subr.mxu0 %v2297
      %2459 = vmatpush2.msra.mxu0 %v2296
      %2460 = vmatprep.subr.mxu0 %v2295
      %2461 = vmatpush2.msra.mxu0 %v2294
      %2462 = vmatprep.subr.mxu0 %v2293
      %2463 = vmatpush2.msra.mxu0 %v2292
      %2464 = vmatprep.mubr.f32.mxu0 %v2257
      %2465 = vmatmul.mubr.f32.gmra.mxu0 %v2256
      %v2466 = vpop.f32.mrf.mxu0
      %v2467 = vadd.f32 %v2393, %v2466
      %v2468 = vpop.f32.mrf.mxu0
      %v2469 = vadd.f32 %v2397, %v2468
      %2470 = vdwg.mxu0
      %2471 = vmatprep.subr.mxu0 %v2355
      %2472 = vmatpush1.msra.mxu0 %v2354
      %2473 = vmatprep.subr.mxu0 %v2353
      %2474 = vmatpush1.msra.mxu0 %v2352
      %2475 = vmatprep.subr.mxu0 %v2351
      %2476 = vmatpush1.msra.mxu0 %v2350
      %2477 = vmatprep.subr.mxu0 %v2349
      %2478 = vmatpush1.msra.mxu0 %v2348
      %2479 = vmatprep.subr.mxu0 %v2347
      %2480 = vmatpush1.msra.mxu0 %v2346
      %2481 = vmatprep.subr.mxu0 %v2345
      %2482 = vmatpush1.msra.mxu0 %v2344
      %2483 = vmatprep.subr.mxu0 %v2343
      %2484 = vmatpush1.msra.mxu0 %v2342
      %2485 = vmatprep.subr.mxu0 %v2341
      %2486 = vmatpush1.msra.mxu0 %v2340
      %2487 = vmatprep.subr.mxu0 %v2339
      %2488 = vmatpush1.msra.mxu0 %v2338
      %2489 = vmatprep.subr.mxu0 %v2337
      %2490 = vmatpush1.msra.mxu0 %v2336
      %2491 = vmatprep.subr.mxu0 %v2335
      %2492 = vmatpush1.msra.mxu0 %v2334
      %2493 = vmatprep.subr.mxu0 %v2333
      %2494 = vmatpush1.msra.mxu0 %v2332
      %2495 = vmatprep.subr.mxu0 %v2331
      %2496 = vmatpush1.msra.mxu0 %v2330
      %2497 = vmatprep.subr.mxu0 %v2329
      %2498 = vmatpush1.msra.mxu0 %v2328
      %2499 = vmatprep.subr.mxu0 %v2327
      %2500 = vmatpush1.msra.mxu0 %v2326
      %2501 = vmatprep.subr.mxu0 %v2325
      %2502 = vmatpush1.msra.mxu0 %v2324
      %2503 = vmatprep.subr.mxu0 %v2387
      %2504 = vmatpush2.msra.mxu0 %v2386
      %2505 = vmatprep.subr.mxu0 %v2385
      %2506 = vmatpush2.msra.mxu0 %v2384
      %2507 = vmatprep.subr.mxu0 %v2383
      %2508 = vmatpush2.msra.mxu0 %v2382
      %2509 = vmatprep.subr.mxu0 %v2381
      %2510 = vmatpush2.msra.mxu0 %v2380
      %2511 = vmatprep.subr.mxu0 %v2379
      %2512 = vmatpush2.msra.mxu0 %v2378
      %2513 = vmatprep.subr.mxu0 %v2377
      %2514 = vmatpush2.msra.mxu0 %v2376
      %2515 = vmatprep.subr.mxu0 %v2375
      %2516 = vmatpush2.msra.mxu0 %v2374
      %2517 = vmatprep.subr.mxu0 %v2373
      %2518 = vmatpush2.msra.mxu0 %v2372
      %2519 = vmatprep.subr.mxu0 %v2371
      %2520 = vmatpush2.msra.mxu0 %v2370
      %2521 = vmatprep.subr.mxu0 %v2369
      %2522 = vmatpush2.msra.mxu0 %v2368
      %2523 = vmatprep.subr.mxu0 %v2367
      %2524 = vmatpush2.msra.mxu0 %v2366
      %2525 = vmatprep.subr.mxu0 %v2365
      %2526 = vmatpush2.msra.mxu0 %v2364
      %2527 = vmatprep.subr.mxu0 %v2363
      %2528 = vmatpush2.msra.mxu0 %v2362
      %2529 = vmatprep.subr.mxu0 %v2361
      %2530 = vmatpush2.msra.mxu0 %v2360
      %2531 = vmatprep.subr.mxu0 %v2359
      %2532 = vmatpush2.msra.mxu0 %v2358
      %2533 = vmatprep.subr.mxu0 %v2357
      %2534 = vmatpush2.msra.mxu0 %v2356
      %2535 = vmatprep.mubr.f32.mxu0 %v2259
      %2536 = vmatmul.mubr.f32.gmra.mxu0 %v2258
      %v2537 = vpop.f32.mrf.mxu0
      %v2538 = vadd.f32 %v2467, %v2537
      %v2539 = vpop.f32.mrf.mxu0
      %v2540 = vadd.f32 %v2469, %v2539
      %2541 = vdwg.mxu0
      %v2542 = vmax.f32 %v2538, 0.0
      %v2543 = vmax.f32 %v2540, 0.0
      %v2544 = vld [vmem:[#allocation18] sm:$0xff]
      %v2545 = vld [vmem:[#allocation18 + $0x8] sm:$0xff]
      %v2546 = vld [vmem:[#allocation18 + $0x10] sm:$0xff]
      %v2547 = vld [vmem:[#allocation18 + $0x18] sm:$0xff]
      %v2548 = vld [vmem:[#allocation18 + $0x20] sm:$0xff]
      %v2549 = vld [vmem:[#allocation18 + $0x28] sm:$0xff]
      %v2550 = vld [vmem:[#allocation18 + $0x30] sm:$0xff]
      %v2551 = vld [vmem:[#allocation18 + $0x38] sm:$0xff]
      %v2552 = vld [vmem:[#allocation18 + $0x40] sm:$0xff]
      %v2553 = vld [vmem:[#allocation18 + $0x48] sm:$0xff]
      %v2554 = vld [vmem:[#allocation18 + $0x50] sm:$0xff]
      %v2555 = vld [vmem:[#allocation18 + $0x58] sm:$0xff]
      %v2556 = vld [vmem:[#allocation18 + $0x60] sm:$0xff]
      %v2557 = vld [vmem:[#allocation18 + $0x68] sm:$0xff]
      %v2558 = vld [vmem:[#allocation18 + $0x70] sm:$0xff]
      %v2559 = vld [vmem:[#allocation18 + $0x78] sm:$0xff]
      %v2560 = vld [vmem:[#allocation18 + $0x80] sm:$0xff]
      %v2561 = vld [vmem:[#allocation18 + $0x88] sm:$0xff]
      %v2562 = vld [vmem:[#allocation18 + $0x90] sm:$0xff]
      %v2563 = vld [vmem:[#allocation18 + $0x98] sm:$0xff]
      %v2564 = vld [vmem:[#allocation18 + $0xa0] sm:$0xff]
      %v2565 = vld [vmem:[#allocation18 + $0xa8] sm:$0xff]
      %v2566 = vld [vmem:[#allocation18 + $0xb0] sm:$0xff]
      %v2567 = vld [vmem:[#allocation18 + $0xb8] sm:$0xff]
      %v2568 = vld [vmem:[#allocation18 + $0xc0] sm:$0xff]
      %v2569 = vld [vmem:[#allocation18 + $0xc8] sm:$0xff]
      %v2570 = vld [vmem:[#allocation18 + $0xd0] sm:$0xff]
      %v2571 = vld [vmem:[#allocation18 + $0xd8] sm:$0xff]
      %v2572 = vld [vmem:[#allocation18 + $0xe0] sm:$0xff]
      %v2573 = vld [vmem:[#allocation18 + $0xe8] sm:$0xff]
      %v2574 = vld [vmem:[#allocation18 + $0xf0] sm:$0xff]
      %v2575 = vld [vmem:[#allocation18 + $0xf8] sm:$0xff]
      %v2576 = vld [vmem:[#allocation20] sm:$0x1]
      %v2578 = vlaneseq
      %v2579 = vshrl.u32 %v2578, 7
      %v2580 = vsub.s32 0, %v2579
      %v2581 = vrot.slane %v2576, %v2580
      %2583 = vmatprep.subr.mxu0 0.0
      %2584 = vmatpush1.msra.mxu0 %v2559
      %2585 = vmatprep.subr.mxu0 0.0
      %2586 = vmatpush1.msra.mxu0 %v2558
      %2587 = vmatprep.subr.mxu0 0.0
      %2588 = vmatpush1.msra.mxu0 %v2557
      %2589 = vmatprep.subr.mxu0 0.0
      %2590 = vmatpush1.msra.mxu0 %v2556
      %2591 = vmatprep.subr.mxu0 0.0
      %2592 = vmatpush1.msra.mxu0 %v2555
      %2593 = vmatprep.subr.mxu0 0.0
      %2594 = vmatpush1.msra.mxu0 %v2554
      %2595 = vmatprep.subr.mxu0 0.0
      %2596 = vmatpush1.msra.mxu0 %v2553
      %2597 = vmatprep.subr.mxu0 0.0
      %2598 = vmatpush1.msra.mxu0 %v2552
      %2599 = vmatprep.subr.mxu0 0.0
      %2600 = vmatpush1.msra.mxu0 %v2551
      %2601 = vmatprep.subr.mxu0 0.0
      %2602 = vmatpush1.msra.mxu0 %v2550
      %2603 = vmatprep.subr.mxu0 0.0
      %2604 = vmatpush1.msra.mxu0 %v2549
      %2605 = vmatprep.subr.mxu0 0.0
      %2606 = vmatpush1.msra.mxu0 %v2548
      %2607 = vmatprep.subr.mxu0 0.0
      %2608 = vmatpush1.msra.mxu0 %v2547
      %2609 = vmatprep.subr.mxu0 0.0
      %2610 = vmatpush1.msra.mxu0 %v2546
      %2611 = vmatprep.subr.mxu0 0.0
      %2612 = vmatpush1.msra.mxu0 %v2545
      %2613 = vmatprep.subr.mxu0 0.0
      %2614 = vmatpush1.msra.mxu0 %v2544
      %2615 = vmatprep.subr.mxu0 0.0
      %2616 = vmatpush2.msra.mxu0 %v2575
      %2617 = vmatprep.subr.mxu0 0.0
      %2618 = vmatpush2.msra.mxu0 %v2574
      %2619 = vmatprep.subr.mxu0 0.0
      %2620 = vmatpush2.msra.mxu0 %v2573
      %2621 = vmatprep.subr.mxu0 0.0
      %2622 = vmatpush2.msra.mxu0 %v2572
      %2623 = vmatprep.subr.mxu0 0.0
      %2624 = vmatpush2.msra.mxu0 %v2571
      %2625 = vmatprep.subr.mxu0 0.0
      %2626 = vmatpush2.msra.mxu0 %v2570
      %2627 = vmatprep.subr.mxu0 0.0
      %2628 = vmatpush2.msra.mxu0 %v2569
      %2629 = vmatprep.subr.mxu0 0.0
      %2630 = vmatpush2.msra.mxu0 %v2568
      %2631 = vmatprep.subr.mxu0 0.0
      %2632 = vmatpush2.msra.mxu0 %v2567
      %2633 = vmatprep.subr.mxu0 0.0
      %2634 = vmatpush2.msra.mxu0 %v2566
      %2635 = vmatprep.subr.mxu0 0.0
      %2636 = vmatpush2.msra.mxu0 %v2565
      %2637 = vmatprep.subr.mxu0 0.0
      %2638 = vmatpush2.msra.mxu0 %v2564
      %2639 = vmatprep.subr.mxu0 0.0
      %2640 = vmatpush2.msra.mxu0 %v2563
      %2641 = vmatprep.subr.mxu0 0.0
      %2642 = vmatpush2.msra.mxu0 %v2562
      %2643 = vmatprep.subr.mxu0 0.0
      %2644 = vmatpush2.msra.mxu0 %v2561
      %2645 = vmatprep.subr.mxu0 0.0
      %2646 = vmatpush2.msra.mxu0 %v2560
      %2647 = vmatprep.mubr.f32.mxu0 %v2543
      %2648 = vmatmul.mubr.f32.gmra.mxu0 %v2542
      %v2649 = vpop.f32.mrf.mxu0
      %v2650 = vadd.f32 %v2581, %v2649
      %v2651 = vpop.f32.mrf.mxu0
      %2652 = vdwg.mxu0
      %2653 = vst [vmem:[#allocation21] sm:$0x3] %v2650
    $region97: #{tpu_custom_call.1} parent=1 // pred_fallthru
      _
    // Predicated region
    $region98: #{tpu_custom_call.1} parent=1 // pred_check
      _
    $region99: #{tpu_custom_call.1} parent=1 // pred_check_branch
      %2655 = sbr.rel (0) target = $region101
    $region100: #{tpu_custom_call.1} parent=1 // pred_region
      %s2657 = ssub.s32 32, 32
      %2658 = vsyncadd [#allocation5], %s2657
      %s2660 = sshll.u32 [#allocation21], 4
      %s2661 = int_to_ptr.vmem [resolvable:$true] %s2660
      %2663 = dma.vmem_to_hbm [thread:$0]  %s2661, 32, %s11, [#allocation5]
    $region101: #{tpu_custom_call.1} parent=1 // pred_fallthru
      _
    // Predicated region
    $region102: #{tpu_custom_call.1} parent=1 // pred_check
      _
    $region103: #{tpu_custom_call.1} parent=1 // pred_check_branch
      %2665 = sbr.rel (0) target = $region105
    $region104: #{tpu_custom_call.1} parent=1 // pred_region
      %2666 = dma.done [#allocation5], 32
    $region105: #{tpu_custom_call.1} parent=1 // pred_fallthru
      _
    %2667 = vsyncpa [#allocation4], 1
    %2668 = vsyncpa [#allocation7], 1
    %2669 = vsyncpa [#allocation10], 1
    %2670 = vsyncpa [#allocation13], 1
    %2671 = vsyncpa [#allocation16], 1
    %2672 = vsyncpa [#allocation19], 1
    %2673 = vsyncpa [#allocation5], 1

</llo_original>
